<compile_context>
chip_gen: v7x
topology: tpu7x:2x2x1
jax: 0.10.0
libtpu: 0.0.40
codegen_flags: <defaults>
</compile_context>

<pallas_src>
import numpy as np
import jax
import jax.numpy as jnp
from jax.experimental import pallas as pl
from jax.experimental.pallas import tpu as pltpu

# ----------------------------- hyperparameters (hp) --------------------------
INPUT_SIZE = 4        # hp.input_size
OUT_CHANNELS = 8      # hp.out_channels
KERNEL_SIZE = 3       # hp.kernel_size (F.pad(1,1) keeps seq length)
NUM_CNN_LAYERS = 2    # hp.num_cnn_layers
HIDDEN = 32           # hp.hidden_size
NHEAD = 4             # hp.nhead
HEAD_DIM = HIDDEN // NHEAD
DIM_FF = 64           # hp.dim_feedforward
NUM_LAYERS = 2        # hp.num_layers
OUTPUT_SIZE = 4       # hp.output_size
MAX_LEN = 64          # hp.max_position_embeddings
LN_EPS = 1e-5

BATCH = 2
SEQ = 16
N_ROWS = BATCH * SEQ          # batch folded into the GEMM M dimension
LANE = 128                    # TPU lane width; also the padded output width

PAD_OFF = 8                   # aligned sublane offset where h is staged
PAD_ROWS = 48                 # >= PAD_OFF + N_ROWS + 1, multiple of 8


# --------------------- parameter slab layout (static) ------------------------
def _param_shapes():
    shapes = [
        ("cw0", (KERNEL_SIZE * INPUT_SIZE, OUT_CHANNELS)),
        ("cb0", (1, OUT_CHANNELS)),
        ("cw1", (KERNEL_SIZE * OUT_CHANNELS, OUT_CHANNELS)),
        ("cb1", (1, OUT_CHANNELS)),
        ("fc1w", (OUT_CHANNELS, HIDDEN)),
        ("fc1b", (1, HIDDEN)),
        ("pe", (N_ROWS, HIDDEN)),
    ]
    for l in range(NUM_LAYERS):
        shapes += [
            (f"ipw{l}", (HIDDEN, 3 * HIDDEN)),
            (f"ipb{l}", (1, 3 * HIDDEN)),
            (f"opw{l}", (HIDDEN, HIDDEN)),
            (f"opb{l}", (1, HIDDEN)),
            (f"l1w{l}", (1, HIDDEN)),
            (f"l1b{l}", (1, HIDDEN)),
            (f"f1w{l}", (HIDDEN, DIM_FF)),
            (f"f1b{l}", (1, DIM_FF)),
            (f"f2w{l}", (DIM_FF, HIDDEN)),
            (f"f2b{l}", (1, HIDDEN)),
            (f"l2w{l}", (1, HIDDEN)),
            (f"l2b{l}", (1, HIDDEN)),
        ]
    shapes += [
        ("fc2w", (HIDDEN, LANE)),              # lane-padded -> full-lane store
        ("fc2b", (1, LANE)),
        ("amask", (N_ROWS, N_ROWS)),           # block-diag additive attn mask
        ("hsel", (NHEAD * N_ROWS, NHEAD)),     # per-head row-sum selector
        ("bmask", (N_ROWS, 2)),                # conv segment-boundary keep masks
    ]
    return shapes


PARAM_SHAPES = _param_shapes()


def _round8(n):
    return ((n + 7) // 8) * 8


def _build_layout():
    layout, off = {}, 0
    for name, (r, c) in PARAM_SHAPES:
        assert c <= LANE, name
        layout[name] = (off, r, c)      # row offset (8-aligned), rows, cols
        off += _round8(r)
    return layout, off


LAYOUT, SLAB_ROWS = _build_layout()


# ------------------------------- fused kernel --------------------------------
def fused_forward_kernel(x_ref, p_ref, o_ref, pad_ref):
    """Entire CNNTransformerModel.forward in one kernel invocation (eval mode).

    The batch is folded into the row (sublane) dimension, so every GEMM sees
    (B*SEQ, features) operands; cross-batch mixing is prevented by the
    precomputed block-diagonal attention mask and the conv boundary masks.
    """
    f32 = jnp.float32
    N = N_ROWS

    def P(name):                      # static view into the packed param slab
        off, r, c = LAYOUT[name]
        return p_ref[off:off + r, :c]

    def matmul(a, b):
        return jnp.dot(a, b, preferred_element_type=f32)

    def matmul_nt(a, b):              # a @ b.T without materialising a transpose
        return jax.lax.dot_general(a, b, (((1,), (1,)), ((), ())),
                                   preferred_element_type=f32)

    def layer_norm(y, w, b):
        mu = jnp.mean(y, axis=-1, keepdims=True)
        var = jnp.mean((y - mu) * (y - mu), axis=-1, keepdims=True)
        return (y - mu) * jax.lax.rsqrt(var + LN_EPS) * w + b

    # precomputed constants riding in the parameter slab (no in-kernel iota)
    amask = P("amask")                     # (N, N) 0 / -1e30 block-diag mask
    hsel = P("hsel")                       # (NHEAD*N, NHEAD) sum selector
    bmask = P("bmask")                     # (N, 2) conv boundary keep-masks
    keep_prev = bmask[:, 0:1]
    keep_next = bmask[:, 1:2]

    # staging buffer for the +-1 row shift of the conv taps: one aligned store,
    # two cheap sublane-offset loads per conv layer -- no MXU shift matmuls.
    pad_ref[...] = jnp.zeros_like(pad_ref)

    def conv1d_relu(h, w, b):
        # Conv1d(kernel=3) on F.pad(x,(1,1)):  y[l] = w0.h[l-1]+w1.h[l]+w2.h[l+1]
        # fused into ONE GEMM on the lane-concatenated taps (N, 3*Cin).
        cin = h.shape[1]
        pad_ref[PAD_OFF:PAD_OFF + N, :cin] = h
        h_prev = pad_ref[PAD_OFF - 1:PAD_OFF - 1 + N, :cin] * keep_prev
        h_next = pad_ref[PAD_OFF + 1:PAD_OFF + 1 + N, :cin] * keep_next
        taps = jnp.concatenate([h_prev, h, h_next], axis=-1)
        return jnp.maximum(matmul(taps, w) + b, 0.0)   # dropout (eval) == identity

    # ---- CNN encoder ---------------------------------------------------------
    h = conv1d_relu(x_ref[...], P("cw0"), P("cb0"))
    h = conv1d_relu(h, P("cw1"), P("cb1"))

    # ---- fc1 + positional encoding -------------------------------------------
    # pe already holds pe[row // SEQ] for every folded row: reproduces the
    # PyTorch quirk where pe is indexed with x.size(0)=batch for a batch_first
    # input and broadcast over the sequence axis.
    h = matmul(h, P("fc1w")) + P("fc1b") + P("pe")

    # ---- Transformer encoder (post-norm, relu activation, dropout identity) --
    scale = 1.0 / float(np.sqrt(HEAD_DIM))
    for l in range(NUM_LAYERS):
        qkv = matmul(h, P(f"ipw{l}")) + P(f"ipb{l}")        # (N, 3H), one GEMM
        qs = qkv[:, :HIDDEN] * scale

        # per-head scores (exact per-head max subtraction), lane-packed so the
        # exp runs once on full 128-lane vregs instead of 4x 25%-occupied ones.
        s_list = []
        for hd in range(NHEAD):
            lo = hd * HEAD_DIM
            sh = matmul_nt(qs[:, lo:lo + HEAD_DIM],
                           qkv[:, HIDDEN + lo:HIDDEN + lo + HEAD_DIM]) + amask
            s_list.append(sh - jnp.max(sh, axis=-1, keepdims=True))
        p = jnp.exp(jnp.concatenate(s_list, axis=-1))       # (N, NHEAD*N)

        denom = matmul(p, hsel)                             # (N, NHEAD) row sums
        recip = pl.reciprocal(denom)                        # exact (tiny)

        # per-head (p @ v) lane-packed, then ONE out-projection GEMM
        pv_list = []
        for hd in range(NHEAD):
            lo = hd * HEAD_DIM
            p_h = p[:, hd * N:(hd + 1) * N] * recip[:, hd:hd + 1]
            pv_list.append(matmul(
                p_h, qkv[:, 2 * HIDDEN + lo:2 * HIDDEN + lo + HEAD_DIM]))
        attn = jnp.concatenate(pv_list, axis=-1)            # (N, HIDDEN)
        sa = matmul(attn, P(f"opw{l}")) + P(f"opb{l}")

        x1 = layer_norm(h + sa, P(f"l1w{l}"), P(f"l1b{l}"))
        ff = jnp.maximum(matmul(x1, P(f"f1w{l}")) + P(f"f1b{l}"), 0.0)
        ff = matmul(ff, P(f"f2w{l}")) + P(f"f2b{l}")
        h = layer_norm(x1 + ff, P(f"l2w{l}"), P(f"l2b{l}"))

    # ---- fc2 (weights lane-padded to 128 -> single full-lane store) ----------
    o_ref[...] = matmul(h, P("fc2w")) + P("fc2b")


# ------------------------------ wrapper ---------------------------------------
def forward(x, slab):
    b, l, _ = x.shape
    assert b * l == N_ROWS and x.shape[-1] == INPUT_SIZE
    x2d = x.reshape(b * l, INPUT_SIZE)                 # fold batch into GEMM M dim
    out_pad = pl.pallas_call(
        fused_forward_kernel,
        out_shape=jax.ShapeDtypeStruct((N_ROWS, LANE), jnp.float32),
        # grid-free: whole-array VMEM residency, no pipeline scaffolding.
        in_specs=[pl.BlockSpec(memory_space=pltpu.MemorySpace.VMEM),
                  pl.BlockSpec(memory_space=pltpu.MemorySpace.VMEM)],
        out_specs=pl.BlockSpec(memory_space=pltpu.MemorySpace.VMEM),
        scratch_shapes=[pltpu.VMEM((PAD_ROWS, OUT_CHANNELS), jnp.float32)],
    )(x2d, slab)
    return out_pad[:, :OUTPUT_SIZE].reshape(b, l, OUTPUT_SIZE)


# --------------------------- parameter construction ---------------------------
def make_params(key):
    keys = iter(jax.random.split(key, 64))

    def rnd(shape, scale):
        return np.asarray(jax.random.normal(next(keys), shape, jnp.float32)) * scale

    p = {}
    # CNN conv weights reshaped to (K*Cin, Cout): row block k is the tap applied
    # to x[l-1+k]   (w_kernel[k*Cin+ci, co] == torch_w[co, ci, k]).
    p["cw0"] = rnd((KERNEL_SIZE * INPUT_SIZE, OUT_CHANNELS),
                   1.0 / np.sqrt(INPUT_SIZE * KERNEL_SIZE))
    p["cb0"] = rnd((1, OUT_CHANNELS), 0.02)
    p["cw1"] = rnd((KERNEL_SIZE * OUT_CHANNELS, OUT_CHANNELS),
                   1.0 / np.sqrt(OUT_CHANNELS * KERNEL_SIZE))
    p["cb1"] = rnd((1, OUT_CHANNELS), 0.02)

    p["fc1w"] = rnd((OUT_CHANNELS, HIDDEN), 1.0 / np.sqrt(OUT_CHANNELS))
    p["fc1b"] = rnd((1, HIDDEN), 0.02)

    # Sinusoidal positional encoding, pre-broadcast to the folded (B*SEQ, H)
    # layout (PyTorch quirk: pe row is chosen by the batch index).
    position = np.arange(MAX_LEN, dtype=np.float64)[:, None]
    div_term = np.exp(np.arange(0, HIDDEN, 2, dtype=np.float64)
                      * (-np.log(10000.0) / HIDDEN))
    pe = np.zeros((MAX_LEN, HIDDEN), np.float32)
    pe[:, 0::2] = np.sin(position * div_term)
    pe[:, 1::2] = np.cos(position * div_term)
    p["pe"] = np.repeat(pe[:BATCH], SEQ, axis=0)

    for l in range(NUM_LAYERS):
        p[f"ipw{l}"] = rnd((HIDDEN, 3 * HIDDEN), 1.0 / np.sqrt(HIDDEN))
        p[f"ipb{l}"] = rnd((1, 3 * HIDDEN), 0.02)
        p[f"opw{l}"] = rnd((HIDDEN, HIDDEN), 1.0 / np.sqrt(HIDDEN))
        p[f"opb{l}"] = rnd((1, HIDDEN), 0.02)
        p[f"l1w{l}"] = np.ones((1, HIDDEN), np.float32)
        p[f"l1b{l}"] = np.zeros((1, HIDDEN), np.float32)
        p[f"f1w{l}"] = rnd((HIDDEN, DIM_FF), 1.0 / np.sqrt(HIDDEN))
        p[f"f1b{l}"] = rnd((1, DIM_FF), 0.02)
        p[f"f2w{l}"] = rnd((DIM_FF, HIDDEN), 1.0 / np.sqrt(DIM_FF))
        p[f"f2b{l}"] = rnd((1, HIDDEN), 0.02)
        p[f"l2w{l}"] = np.ones((1, HIDDEN), np.float32)
        p[f"l2b{l}"] = np.zeros((1, HIDDEN), np.float32)

    # fc2, lane-padded to 128 so the kernel's only HBM store is full-lane.
    p["fc2w"] = np.pad(rnd((HIDDEN, OUTPUT_SIZE), 1.0 / np.sqrt(HIDDEN)),
                       ((0, 0), (0, LANE - OUTPUT_SIZE)))
    p["fc2b"] = np.pad(rnd((1, OUTPUT_SIZE), 0.02),
                       ((0, 0), (0, LANE - OUTPUT_SIZE)))

    # Precomputed index constants (ride in the slab; no in-kernel iota/select).
    rows = np.arange(N_ROWS)
    same = (rows[:, None] // SEQ) == (rows[None, :] // SEQ)
    p["amask"] = np.where(same, 0.0, -1e30).astype(np.float32)
    hr = np.arange(NHEAD * N_ROWS)
    p["hsel"] = (hr[:, None] // N_ROWS
                 == np.arange(NHEAD)[None, :]).astype(np.float32)
    bm = np.ones((N_ROWS, 2), np.float32)
    bm[rows % SEQ == 0, 0] = 0.0               # no h[l-1] at segment start
    bm[rows % SEQ == SEQ - 1, 1] = 0.0         # no h[l+1] at segment end
    p["bmask"] = bm
    return p


def pack_params(p):
    """Pack all parameters into one contiguous (SLAB_ROWS, 128) f32 slab."""
    slab = np.zeros((SLAB_ROWS, LANE), np.float32)
    for name, (r, c) in PARAM_SHAPES:
        off, _, _ = LAYOUT[name]
        arr = np.asarray(p[name], np.float32)
        assert arr.shape == (r, c), (name, arr.shape, (r, c))
        slab[off:off + r, :c] = arr
    return jnp.asarray(slab)


# --------------------------------- main ---------------------------------------
if __name__ == "__main__":
    key = jax.random.PRNGKey(0)
    k_x, k_p = jax.random.split(key)
    # model input: (batch, seq, input_size) — the PyTorch module transposes to
    # NCW for the conv internally; here the conv is expressed channels-last.
    x = jax.random.normal(k_x, (BATCH, SEQ, INPUT_SIZE), jnp.float32)
    slab = pack_params(make_params(k_p))

    out = jax.jit(forward)(x, slab)
    out = jax.block_until_ready(out)
    assert out.shape == (BATCH, SEQ, OUTPUT_SIZE), out.shape
    assert bool(jnp.all(jnp.isfinite(out)))
    print("KERNEL_OK")
</pallas_src>

<mosaic_0001>
module attributes {stable_mosaic.version = 11 : i64} {
  func.func @fused_forward_kernel(%arg0: memref<32x4xf32, #tpu.memory_space<vmem>>, %arg1: memref<784x128xf32, #tpu.memory_space<vmem>>, %arg2: memref<32x128xf32, #tpu.memory_space<vmem>>, %arg3: memref<48x8xf32, #tpu.memory_space<vmem>>) attributes {dimension_semantics = [], scalar_prefetch = 0 : i64, scratch_operands = 1 : i64, tpu.core_type = #tpu.core_type<tc>} {
    %c592 = arith.constant 592 : index
    %c0 = arith.constant 0 : index
    %0 = vector.load %arg1[%c592, %c0] : memref<784x128xf32, #tpu.memory_space<vmem>>, vector<32x32xf32>
    %c624 = arith.constant 624 : index
    %c0_0 = arith.constant 0 : index
    %1 = vector.load %arg1[%c624, %c0_0] : memref<784x128xf32, #tpu.memory_space<vmem>>, vector<128x4xf32>
    %c752 = arith.constant 752 : index
    %c0_1 = arith.constant 0 : index
    %2 = vector.load %arg1[%c752, %c0_1] : memref<784x128xf32, #tpu.memory_space<vmem>>, vector<32x2xf32>
    %3 = vector.extract_strided_slice %2 {offsets = [0, 0], sizes = [32, 1], strides = [1, 1]} : vector<32x2xf32> to vector<32x1xf32>
    %4 = vector.extract_strided_slice %2 {offsets = [0, 1], sizes = [32, 1], strides = [1, 1]} : vector<32x2xf32> to vector<32x1xf32>
    %cst = arith.constant 0.000000e+00 : f32
    %5 = vector.broadcast %cst : f32 to vector<48x8xf32>
    %c0_2 = arith.constant 0 : index
    %c0_3 = arith.constant 0 : index
    %6 = vector.load %arg3[%c0_2, %c0_3] : memref<48x8xf32, #tpu.memory_space<vmem>>, vector<48x8xf32>
    tpu.vector_store %arg3[%c0_2, %c0_3], %5 {strides = array<i32>} : memref<48x8xf32, #tpu.memory_space<vmem>>, vector<48x8xf32>,
    %c0_4 = arith.constant 0 : index
    %c0_5 = arith.constant 0 : index
    %7 = vector.load %arg0[%c0_4, %c0_5] : memref<32x4xf32, #tpu.memory_space<vmem>>, vector<32x4xf32>
    %c0_6 = arith.constant 0 : index
    %c0_7 = arith.constant 0 : index
    %8 = vector.load %arg1[%c0_6, %c0_7] : memref<784x128xf32, #tpu.memory_space<vmem>>, vector<12x8xf32>
    %c16 = arith.constant 16 : index
    %c0_8 = arith.constant 0 : index
    %9 = vector.load %arg1[%c16, %c0_8] : memref<784x128xf32, #tpu.memory_space<vmem>>, vector<1x8xf32>
    %c8 = arith.constant 8 : index
    %c0_9 = arith.constant 0 : index
    %10 = vector.load %arg3[%c8, %c0_9] : memref<48x8xf32, #tpu.memory_space<vmem>>, vector<32x4xf32>
    tpu.vector_store %arg3[%c8, %c0_9], %7 {strides = array<i32>} : memref<48x8xf32, #tpu.memory_space<vmem>>, vector<32x4xf32>,
    %c7 = arith.constant 7 : index
    %c0_10 = arith.constant 0 : index
    %11 = vector.load %arg3[%c7, %c0_10] : memref<48x8xf32, #tpu.memory_space<vmem>>, vector<32x4xf32>
    %12 = vector.broadcast %3 : vector<32x1xf32> to vector<32x4xf32>
    %13 = arith.mulf %11, %12 : vector<32x4xf32>
    %c9 = arith.constant 9 : index
    %c0_11 = arith.constant 0 : index
    %14 = vector.load %arg3[%c9, %c0_11] : memref<48x8xf32, #tpu.memory_space<vmem>>, vector<32x4xf32>
    %15 = vector.broadcast %4 : vector<32x1xf32> to vector<32x4xf32>
    %16 = arith.mulf %14, %15 : vector<32x4xf32>
    %17 = tpu.concatenate %13, %7, %16 in 1 : vector<32x4xf32>, vector<32x4xf32>, vector<32x4xf32> -> vector<32x12xf32>
    %cst_12 = arith.constant dense<0.000000e+00> : vector<32x8xf32>
    %18 = tpu.matmul %17, %8, %cst_12 {dimension_numbers = #tpu.dot_dimension_numbers<[1], [0], [0], [1], [0, 0, 1, 1], [], []>} : vector<32x12xf32>, vector<12x8xf32>, vector<32x8xf32> -> vector<32x8xf32>
    %19 = vector.broadcast %9 : vector<1x8xf32> to vector<32x8xf32>
    %20 = arith.addf %18, %19 : vector<32x8xf32>
    %cst_13 = arith.constant 0.000000e+00 : f32
    %21 = vector.broadcast %cst_13 : f32 to vector<32x8xf32>
    %22 = arith.maximumf %20, %21 : vector<32x8xf32>
    %c24 = arith.constant 24 : index
    %c0_14 = arith.constant 0 : index
    %23 = vector.load %arg1[%c24, %c0_14] : memref<784x128xf32, #tpu.memory_space<vmem>>, vector<24x8xf32>
    %c48 = arith.constant 48 : index
    %c0_15 = arith.constant 0 : index
    %24 = vector.load %arg1[%c48, %c0_15] : memref<784x128xf32, #tpu.memory_space<vmem>>, vector<1x8xf32>
    %c8_16 = arith.constant 8 : index
    %c0_17 = arith.constant 0 : index
    %25 = vector.load %arg3[%c8_16, %c0_17] : memref<48x8xf32, #tpu.memory_space<vmem>>, vector<32x8xf32>
    tpu.vector_store %arg3[%c8_16, %c0_17], %22 {strides = array<i32>} : memref<48x8xf32, #tpu.memory_space<vmem>>, vector<32x8xf32>,
    %c7_18 = arith.constant 7 : index
    %c0_19 = arith.constant 0 : index
    %26 = vector.load %arg3[%c7_18, %c0_19] : memref<48x8xf32, #tpu.memory_space<vmem>>, vector<32x8xf32>
    %27 = vector.broadcast %3 : vector<32x1xf32> to vector<32x8xf32>
    %28 = arith.mulf %26, %27 : vector<32x8xf32>
    %c9_20 = arith.constant 9 : index
    %c0_21 = arith.constant 0 : index
    %29 = vector.load %arg3[%c9_20, %c0_21] : memref<48x8xf32, #tpu.memory_space<vmem>>, vector<32x8xf32>
    %30 = vector.broadcast %4 : vector<32x1xf32> to vector<32x8xf32>
    %31 = arith.mulf %29, %30 : vector<32x8xf32>
    %32 = tpu.concatenate %28, %22, %31 in 1 : vector<32x8xf32>, vector<32x8xf32>, vector<32x8xf32> -> vector<32x24xf32>
    %cst_22 = arith.constant dense<0.000000e+00> : vector<32x8xf32>
    %33 = tpu.matmul %32, %23, %cst_22 {dimension_numbers = #tpu.dot_dimension_numbers<[1], [0], [0], [1], [0, 0, 1, 1], [], []>} : vector<32x24xf32>, vector<24x8xf32>, vector<32x8xf32> -> vector<32x8xf32>
    %34 = vector.broadcast %24 : vector<1x8xf32> to vector<32x8xf32>
    %35 = arith.addf %33, %34 : vector<32x8xf32>
    %cst_23 = arith.constant 0.000000e+00 : f32
    %36 = vector.broadcast %cst_23 : f32 to vector<32x8xf32>
    %37 = arith.maximumf %35, %36 : vector<32x8xf32>
    %c56 = arith.constant 56 : index
    %c0_24 = arith.constant 0 : index
    %38 = vector.load %arg1[%c56, %c0_24] : memref<784x128xf32, #tpu.memory_space<vmem>>, vector<8x32xf32>
    %cst_25 = arith.constant dense<0.000000e+00> : vector<32x32xf32>
    %39 = tpu.matmul %37, %38, %cst_25 {dimension_numbers = #tpu.dot_dimension_numbers<[1], [0], [0], [1], [0, 0, 1, 1], [], []>} : vector<32x8xf32>, vector<8x32xf32>, vector<32x32xf32> -> vector<32x32xf32>
    %c64 = arith.constant 64 : index
    %c0_26 = arith.constant 0 : index
    %40 = vector.load %arg1[%c64, %c0_26] : memref<784x128xf32, #tpu.memory_space<vmem>>, vector<1x32xf32>
    %41 = vector.broadcast %40 : vector<1x32xf32> to vector<32x32xf32>
    %42 = arith.addf %39, %41 : vector<32x32xf32>
    %c72 = arith.constant 72 : index
    %c0_27 = arith.constant 0 : index
    %43 = vector.load %arg1[%c72, %c0_27] : memref<784x128xf32, #tpu.memory_space<vmem>>, vector<32x32xf32>
    %44 = arith.addf %42, %43 : vector<32x32xf32>
    %c104 = arith.constant 104 : index
    %c0_28 = arith.constant 0 : index
    %45 = vector.load %arg1[%c104, %c0_28] : memref<784x128xf32, #tpu.memory_space<vmem>>, vector<32x96xf32>
    %cst_29 = arith.constant dense<0.000000e+00> : vector<32x96xf32>
    %46 = tpu.matmul %44, %45, %cst_29 {dimension_numbers = #tpu.dot_dimension_numbers<[1], [0], [0], [1], [0, 0, 1, 1], [], []>} : vector<32x32xf32>, vector<32x96xf32>, vector<32x96xf32> -> vector<32x96xf32>
    %c136 = arith.constant 136 : index
    %c0_30 = arith.constant 0 : index
    %47 = vector.load %arg1[%c136, %c0_30] : memref<784x128xf32, #tpu.memory_space<vmem>>, vector<1x96xf32>
    %48 = vector.broadcast %47 : vector<1x96xf32> to vector<32x96xf32>
    %49 = arith.addf %46, %48 : vector<32x96xf32>
    %50 = vector.extract_strided_slice %49 {offsets = [0, 0], sizes = [32, 32], strides = [1, 1]} : vector<32x96xf32> to vector<32x32xf32>
    %cst_31 = arith.constant 0.353553385 : f32
    %51 = vector.broadcast %cst_31 : f32 to vector<32x32xf32>
    %52 = arith.mulf %50, %51 : vector<32x32xf32>
    %53 = vector.extract_strided_slice %52 {offsets = [0, 0], sizes = [32, 8], strides = [1, 1]} : vector<32x32xf32> to vector<32x8xf32>
    %54 = vector.extract_strided_slice %49 {offsets = [0, 32], sizes = [32, 8], strides = [1, 1]} : vector<32x96xf32> to vector<32x8xf32>
    %cst_32 = arith.constant dense<0.000000e+00> : vector<32x32xf32>
    %55 = tpu.matmul %53, %54, %cst_32 {dimension_numbers = #tpu.dot_dimension_numbers<[1], [1], [0], [0], [0, 0, 1, 0], [], []>} : vector<32x8xf32>, vector<32x8xf32>, vector<32x32xf32> -> vector<32x32xf32>
    %56 = arith.addf %55, %0 : vector<32x32xf32>
    %cst_33 = arith.constant dense<0xFF800000> : vector<32xf32>
    %57 = vector.multi_reduction <maximumf>, %56, %cst_33 [1] : vector<32x32xf32> to vector<32xf32>
    %58 = vector.shape_cast %57 : vector<32xf32> to vector<32x1xf32>
    %59 = vector.broadcast %58 : vector<32x1xf32> to vector<32x32xf32>
    %60 = arith.subf %56, %59 : vector<32x32xf32>
    %61 = vector.extract_strided_slice %52 {offsets = [0, 8], sizes = [32, 8], strides = [1, 1]} : vector<32x32xf32> to vector<32x8xf32>
    %62 = vector.extract_strided_slice %49 {offsets = [0, 40], sizes = [32, 8], strides = [1, 1]} : vector<32x96xf32> to vector<32x8xf32>
    %cst_34 = arith.constant dense<0.000000e+00> : vector<32x32xf32>
    %63 = tpu.matmul %61, %62, %cst_34 {dimension_numbers = #tpu.dot_dimension_numbers<[1], [1], [0], [0], [0, 0, 1, 0], [], []>} : vector<32x8xf32>, vector<32x8xf32>, vector<32x32xf32> -> vector<32x32xf32>
    %64 = arith.addf %63, %0 : vector<32x32xf32>
    %cst_35 = arith.constant dense<0xFF800000> : vector<32xf32>
    %65 = vector.multi_reduction <maximumf>, %64, %cst_35 [1] : vector<32x32xf32> to vector<32xf32>
    %66 = vector.shape_cast %65 : vector<32xf32> to vector<32x1xf32>
    %67 = vector.broadcast %66 : vector<32x1xf32> to vector<32x32xf32>
    %68 = arith.subf %64, %67 : vector<32x32xf32>
    %69 = vector.extract_strided_slice %52 {offsets = [0, 16], sizes = [32, 8], strides = [1, 1]} : vector<32x32xf32> to vector<32x8xf32>
    %70 = vector.extract_strided_slice %49 {offsets = [0, 48], sizes = [32, 8], strides = [1, 1]} : vector<32x96xf32> to vector<32x8xf32>
    %cst_36 = arith.constant dense<0.000000e+00> : vector<32x32xf32>
    %71 = tpu.matmul %69, %70, %cst_36 {dimension_numbers = #tpu.dot_dimension_numbers<[1], [1], [0], [0], [0, 0, 1, 0], [], []>} : vector<32x8xf32>, vector<32x8xf32>, vector<32x32xf32> -> vector<32x32xf32>
    %72 = arith.addf %71, %0 : vector<32x32xf32>
    %cst_37 = arith.constant dense<0xFF800000> : vector<32xf32>
    %73 = vector.multi_reduction <maximumf>, %72, %cst_37 [1] : vector<32x32xf32> to vector<32xf32>
    %74 = vector.shape_cast %73 : vector<32xf32> to vector<32x1xf32>
    %75 = vector.broadcast %74 : vector<32x1xf32> to vector<32x32xf32>
    %76 = arith.subf %72, %75 : vector<32x32xf32>
    %77 = vector.extract_strided_slice %52 {offsets = [0, 24], sizes = [32, 8], strides = [1, 1]} : vector<32x32xf32> to vector<32x8xf32>
    %78 = vector.extract_strided_slice %49 {offsets = [0, 56], sizes = [32, 8], strides = [1, 1]} : vector<32x96xf32> to vector<32x8xf32>
    %cst_38 = arith.constant dense<0.000000e+00> : vector<32x32xf32>
    %79 = tpu.matmul %77, %78, %cst_38 {dimension_numbers = #tpu.dot_dimension_numbers<[1], [1], [0], [0], [0, 0, 1, 0], [], []>} : vector<32x8xf32>, vector<32x8xf32>, vector<32x32xf32> -> vector<32x32xf32>
    %80 = arith.addf %79, %0 : vector<32x32xf32>
    %cst_39 = arith.constant dense<0xFF800000> : vector<32xf32>
    %81 = vector.multi_reduction <maximumf>, %80, %cst_39 [1] : vector<32x32xf32> to vector<32xf32>
    %82 = vector.shape_cast %81 : vector<32xf32> to vector<32x1xf32>
    %83 = vector.broadcast %82 : vector<32x1xf32> to vector<32x32xf32>
    %84 = arith.subf %80, %83 : vector<32x32xf32>
    %85 = tpu.concatenate %60, %68, %76, %84 in 1 : vector<32x32xf32>, vector<32x32xf32>, vector<32x32xf32>, vector<32x32xf32> -> vector<32x128xf32>
    %86 = math.exp %85 : vector<32x128xf32>
    %cst_40 = arith.constant dense<0.000000e+00> : vector<32x4xf32>
    %87 = tpu.matmul %86, %1, %cst_40 {dimension_numbers = #tpu.dot_dimension_numbers<[1], [0], [0], [1], [0, 0, 1, 1], [], []>} : vector<32x128xf32>, vector<128x4xf32>, vector<32x4xf32> -> vector<32x4xf32>
    %88 = tpu.reciprocal %87 : vector<32x4xf32> -> vector<32x4xf32>
    %89 = vector.extract_strided_slice %86 {offsets = [0, 0], sizes = [32, 32], strides = [1, 1]} : vector<32x128xf32> to vector<32x32xf32>
    %90 = vector.extract_strided_slice %88 {offsets = [0, 0], sizes = [32, 1], strides = [1, 1]} : vector<32x4xf32> to vector<32x1xf32>
    %91 = vector.broadcast %90 : vector<32x1xf32> to vector<32x32xf32>
    %92 = arith.mulf %89, %91 : vector<32x32xf32>
    %93 = vector.extract_strided_slice %49 {offsets = [0, 64], sizes = [32, 8], strides = [1, 1]} : vector<32x96xf32> to vector<32x8xf32>
    %cst_41 = arith.constant dense<0.000000e+00> : vector<32x8xf32>
    %94 = tpu.matmul %92, %93, %cst_41 {dimension_numbers = #tpu.dot_dimension_numbers<[1], [0], [0], [1], [0, 0, 1, 1], [], []>} : vector<32x32xf32>, vector<32x8xf32>, vector<32x8xf32> -> vector<32x8xf32>
    %95 = vector.extract_strided_slice %86 {offsets = [0, 32], sizes = [32, 32], strides = [1, 1]} : vector<32x128xf32> to vector<32x32xf32>
    %96 = vector.extract_strided_slice %88 {offsets = [0, 1], sizes = [32, 1], strides = [1, 1]} : vector<32x4xf32> to vector<32x1xf32>
    %97 = vector.broadcast %96 : vector<32x1xf32> to vector<32x32xf32>
    %98 = arith.mulf %95, %97 : vector<32x32xf32>
    %99 = vector.extract_strided_slice %49 {offsets = [0, 72], sizes = [32, 8], strides = [1, 1]} : vector<32x96xf32> to vector<32x8xf32>
    %cst_42 = arith.constant dense<0.000000e+00> : vector<32x8xf32>
    %100 = tpu.matmul %98, %99, %cst_42 {dimension_numbers = #tpu.dot_dimension_numbers<[1], [0], [0], [1], [0, 0, 1, 1], [], []>} : vector<32x32xf32>, vector<32x8xf32>, vector<32x8xf32> -> vector<32x8xf32>
    %101 = vector.extract_strided_slice %86 {offsets = [0, 64], sizes = [32, 32], strides = [1, 1]} : vector<32x128xf32> to vector<32x32xf32>
    %102 = vector.extract_strided_slice %88 {offsets = [0, 2], sizes = [32, 1], strides = [1, 1]} : vector<32x4xf32> to vector<32x1xf32>
    %103 = vector.broadcast %102 : vector<32x1xf32> to vector<32x32xf32>
    %104 = arith.mulf %101, %103 : vector<32x32xf32>
    %105 = vector.extract_strided_slice %49 {offsets = [0, 80], sizes = [32, 8], strides = [1, 1]} : vector<32x96xf32> to vector<32x8xf32>
    %cst_43 = arith.constant dense<0.000000e+00> : vector<32x8xf32>
    %106 = tpu.matmul %104, %105, %cst_43 {dimension_numbers = #tpu.dot_dimension_numbers<[1], [0], [0], [1], [0, 0, 1, 1], [], []>} : vector<32x32xf32>, vector<32x8xf32>, vector<32x8xf32> -> vector<32x8xf32>
    %107 = vector.extract_strided_slice %86 {offsets = [0, 96], sizes = [32, 32], strides = [1, 1]} : vector<32x128xf32> to vector<32x32xf32>
    %108 = vector.extract_strided_slice %88 {offsets = [0, 3], sizes = [32, 1], strides = [1, 1]} : vector<32x4xf32> to vector<32x1xf32>
    %109 = vector.broadcast %108 : vector<32x1xf32> to vector<32x32xf32>
    %110 = arith.mulf %107, %109 : vector<32x32xf32>
    %111 = vector.extract_strided_slice %49 {offsets = [0, 88], sizes = [32, 8], strides = [1, 1]} : vector<32x96xf32> to vector<32x8xf32>
    %cst_44 = arith.constant dense<0.000000e+00> : vector<32x8xf32>
    %112 = tpu.matmul %110, %111, %cst_44 {dimension_numbers = #tpu.dot_dimension_numbers<[1], [0], [0], [1], [0, 0, 1, 1], [], []>} : vector<32x32xf32>, vector<32x8xf32>, vector<32x8xf32> -> vector<32x8xf32>
    %113 = tpu.concatenate %94, %100, %106, %112 in 1 : vector<32x8xf32>, vector<32x8xf32>, vector<32x8xf32>, vector<32x8xf32> -> vector<32x32xf32>
    %c144 = arith.constant 144 : index
    %c0_45 = arith.constant 0 : index
    %114 = vector.load %arg1[%c144, %c0_45] : memref<784x128xf32, #tpu.memory_space<vmem>>, vector<32x32xf32>
    %cst_46 = arith.constant dense<0.000000e+00> : vector<32x32xf32>
    %115 = tpu.matmul %113, %114, %cst_46 {dimension_numbers = #tpu.dot_dimension_numbers<[1], [0], [0], [1], [0, 0, 1, 1], [], []>} : vector<32x32xf32>, vector<32x32xf32>, vector<32x32xf32> -> vector<32x32xf32>
    %c176 = arith.constant 176 : index
    %c0_47 = arith.constant 0 : index
    %116 = vector.load %arg1[%c176, %c0_47] : memref<784x128xf32, #tpu.memory_space<vmem>>, vector<1x32xf32>
    %117 = vector.broadcast %116 : vector<1x32xf32> to vector<32x32xf32>
    %118 = arith.addf %115, %117 : vector<32x32xf32>
    %119 = arith.addf %44, %118 : vector<32x32xf32>
    %c184 = arith.constant 184 : index
    %c0_48 = arith.constant 0 : index
    %120 = vector.load %arg1[%c184, %c0_48] : memref<784x128xf32, #tpu.memory_space<vmem>>, vector<1x32xf32>
    %c192 = arith.constant 192 : index
    %c0_49 = arith.constant 0 : index
    %121 = vector.load %arg1[%c192, %c0_49] : memref<784x128xf32, #tpu.memory_space<vmem>>, vector<1x32xf32>
    %cst_50 = arith.constant dense<0.000000e+00> : vector<32xf32>
    %122 = vector.multi_reduction <add>, %119, %cst_50 [1] : vector<32x32xf32> to vector<32xf32>
    %123 = vector.shape_cast %122 : vector<32xf32> to vector<32x1xf32>
    %cst_51 = arith.constant 3.200000e+01 : f32
    %124 = vector.broadcast %cst_51 : f32 to vector<32x1xf32>
    %125 = arith.divf %123, %124 : vector<32x1xf32>
    %126 = vector.broadcast %125 : vector<32x1xf32> to vector<32x32xf32>
    %127 = arith.subf %119, %126 : vector<32x32xf32>
    %128 = vector.broadcast %125 : vector<32x1xf32> to vector<32x32xf32>
    %129 = arith.subf %119, %128 : vector<32x32xf32>
    %130 = arith.mulf %127, %129 : vector<32x32xf32>
    %cst_52 = arith.constant dense<0.000000e+00> : vector<32xf32>
    %131 = vector.multi_reduction <add>, %130, %cst_52 [1] : vector<32x32xf32> to vector<32xf32>
    %132 = vector.shape_cast %131 : vector<32xf32> to vector<32x1xf32>
    %cst_53 = arith.constant 3.200000e+01 : f32
    %133 = vector.broadcast %cst_53 : f32 to vector<32x1xf32>
    %134 = arith.divf %132, %133 : vector<32x1xf32>
    %135 = vector.broadcast %125 : vector<32x1xf32> to vector<32x32xf32>
    %136 = arith.subf %119, %135 : vector<32x32xf32>
    %cst_54 = arith.constant 9.99999974E-6 : f32
    %137 = vector.broadcast %cst_54 : f32 to vector<32x1xf32>
    %138 = arith.addf %134, %137 : vector<32x1xf32>
    %139 = math.rsqrt %138 : vector<32x1xf32>
    %140 = vector.broadcast %139 : vector<32x1xf32> to vector<32x32xf32>
    %141 = arith.mulf %136, %140 : vector<32x32xf32>
    %142 = vector.broadcast %120 : vector<1x32xf32> to vector<32x32xf32>
    %143 = arith.mulf %141, %142 : vector<32x32xf32>
    %144 = vector.broadcast %121 : vector<1x32xf32> to vector<32x32xf32>
    %145 = arith.addf %143, %144 : vector<32x32xf32>
    %c200 = arith.constant 200 : index
    %c0_55 = arith.constant 0 : index
    %146 = vector.load %arg1[%c200, %c0_55] : memref<784x128xf32, #tpu.memory_space<vmem>>, vector<32x64xf32>
    %cst_56 = arith.constant dense<0.000000e+00> : vector<32x64xf32>
    %147 = tpu.matmul %145, %146, %cst_56 {dimension_numbers = #tpu.dot_dimension_numbers<[1], [0], [0], [1], [0, 0, 1, 1], [], []>} : vector<32x32xf32>, vector<32x64xf32>, vector<32x64xf32> -> vector<32x64xf32>
    %c232 = arith.constant 232 : index
    %c0_57 = arith.constant 0 : index
    %148 = vector.load %arg1[%c232, %c0_57] : memref<784x128xf32, #tpu.memory_space<vmem>>, vector<1x64xf32>
    %149 = vector.broadcast %148 : vector<1x64xf32> to vector<32x64xf32>
    %150 = arith.addf %147, %149 : vector<32x64xf32>
    %cst_58 = arith.constant 0.000000e+00 : f32
    %151 = vector.broadcast %cst_58 : f32 to vector<32x64xf32>
    %152 = arith.maximumf %150, %151 : vector<32x64xf32>
    %c240 = arith.constant 240 : index
    %c0_59 = arith.constant 0 : index
    %153 = vector.load %arg1[%c240, %c0_59] : memref<784x128xf32, #tpu.memory_space<vmem>>, vector<64x32xf32>
    %cst_60 = arith.constant dense<0.000000e+00> : vector<32x32xf32>
    %154 = tpu.matmul %152, %153, %cst_60 {dimension_numbers = #tpu.dot_dimension_numbers<[1], [0], [0], [1], [0, 0, 1, 1], [], []>} : vector<32x64xf32>, vector<64x32xf32>, vector<32x32xf32> -> vector<32x32xf32>
    %c304 = arith.constant 304 : index
    %c0_61 = arith.constant 0 : index
    %155 = vector.load %arg1[%c304, %c0_61] : memref<784x128xf32, #tpu.memory_space<vmem>>, vector<1x32xf32>
    %156 = vector.broadcast %155 : vector<1x32xf32> to vector<32x32xf32>
    %157 = arith.addf %154, %156 : vector<32x32xf32>
    %158 = arith.addf %145, %157 : vector<32x32xf32>
    %c312 = arith.constant 312 : index
    %c0_62 = arith.constant 0 : index
    %159 = vector.load %arg1[%c312, %c0_62] : memref<784x128xf32, #tpu.memory_space<vmem>>, vector<1x32xf32>
    %c320 = arith.constant 320 : index
    %c0_63 = arith.constant 0 : index
    %160 = vector.load %arg1[%c320, %c0_63] : memref<784x128xf32, #tpu.memory_space<vmem>>, vector<1x32xf32>
    %cst_64 = arith.constant dense<0.000000e+00> : vector<32xf32>
    %161 = vector.multi_reduction <add>, %158, %cst_64 [1] : vector<32x32xf32> to vector<32xf32>
    %162 = vector.shape_cast %161 : vector<32xf32> to vector<32x1xf32>
    %cst_65 = arith.constant 3.200000e+01 : f32
    %163 = vector.broadcast %cst_65 : f32 to vector<32x1xf32>
    %164 = arith.divf %162, %163 : vector<32x1xf32>
    %165 = vector.broadcast %164 : vector<32x1xf32> to vector<32x32xf32>
    %166 = arith.subf %158, %165 : vector<32x32xf32>
    %167 = vector.broadcast %164 : vector<32x1xf32> to vector<32x32xf32>
    %168 = arith.subf %158, %167 : vector<32x32xf32>
    %169 = arith.mulf %166, %168 : vector<32x32xf32>
    %cst_66 = arith.constant dense<0.000000e+00> : vector<32xf32>
    %170 = vector.multi_reduction <add>, %169, %cst_66 [1] : vector<32x32xf32> to vector<32xf32>
    %171 = vector.shape_cast %170 : vector<32xf32> to vector<32x1xf32>
    %cst_67 = arith.constant 3.200000e+01 : f32
    %172 = vector.broadcast %cst_67 : f32 to vector<32x1xf32>
    %173 = arith.divf %171, %172 : vector<32x1xf32>
    %174 = vector.broadcast %164 : vector<32x1xf32> to vector<32x32xf32>
    %175 = arith.subf %158, %174 : vector<32x32xf32>
    %cst_68 = arith.constant 9.99999974E-6 : f32
    %176 = vector.broadcast %cst_68 : f32 to vector<32x1xf32>
    %177 = arith.addf %173, %176 : vector<32x1xf32>
    %178 = math.rsqrt %177 : vector<32x1xf32>
    %179 = vector.broadcast %178 : vector<32x1xf32> to vector<32x32xf32>
    %180 = arith.mulf %175, %179 : vector<32x32xf32>
    %181 = vector.broadcast %159 : vector<1x32xf32> to vector<32x32xf32>
    %182 = arith.mulf %180, %181 : vector<32x32xf32>
    %183 = vector.broadcast %160 : vector<1x32xf32> to vector<32x32xf32>
    %184 = arith.addf %182, %183 : vector<32x32xf32>
    %c328 = arith.constant 328 : index
    %c0_69 = arith.constant 0 : index
    %185 = vector.load %arg1[%c328, %c0_69] : memref<784x128xf32, #tpu.memory_space<vmem>>, vector<32x96xf32>
    %cst_70 = arith.constant dense<0.000000e+00> : vector<32x96xf32>
    %186 = tpu.matmul %184, %185, %cst_70 {dimension_numbers = #tpu.dot_dimension_numbers<[1], [0], [0], [1], [0, 0, 1, 1], [], []>} : vector<32x32xf32>, vector<32x96xf32>, vector<32x96xf32> -> vector<32x96xf32>
    %c360 = arith.constant 360 : index
    %c0_71 = arith.constant 0 : index
    %187 = vector.load %arg1[%c360, %c0_71] : memref<784x128xf32, #tpu.memory_space<vmem>>, vector<1x96xf32>
    %188 = vector.broadcast %187 : vector<1x96xf32> to vector<32x96xf32>
    %189 = arith.addf %186, %188 : vector<32x96xf32>
    %190 = vector.extract_strided_slice %189 {offsets = [0, 0], sizes = [32, 32], strides = [1, 1]} : vector<32x96xf32> to vector<32x32xf32>
    %cst_72 = arith.constant 0.353553385 : f32
    %191 = vector.broadcast %cst_72 : f32 to vector<32x32xf32>
    %192 = arith.mulf %190, %191 : vector<32x32xf32>
    %193 = vector.extract_strided_slice %192 {offsets = [0, 0], sizes = [32, 8], strides = [1, 1]} : vector<32x32xf32> to vector<32x8xf32>
    %194 = vector.extract_strided_slice %189 {offsets = [0, 32], sizes = [32, 8], strides = [1, 1]} : vector<32x96xf32> to vector<32x8xf32>
    %cst_73 = arith.constant dense<0.000000e+00> : vector<32x32xf32>
    %195 = tpu.matmul %193, %194, %cst_73 {dimension_numbers = #tpu.dot_dimension_numbers<[1], [1], [0], [0], [0, 0, 1, 0], [], []>} : vector<32x8xf32>, vector<32x8xf32>, vector<32x32xf32> -> vector<32x32xf32>
    %196 = arith.addf %195, %0 : vector<32x32xf32>
    %cst_74 = arith.constant dense<0xFF800000> : vector<32xf32>
    %197 = vector.multi_reduction <maximumf>, %196, %cst_74 [1] : vector<32x32xf32> to vector<32xf32>
    %198 = vector.shape_cast %197 : vector<32xf32> to vector<32x1xf32>
    %199 = vector.broadcast %198 : vector<32x1xf32> to vector<32x32xf32>
    %200 = arith.subf %196, %199 : vector<32x32xf32>
    %201 = vector.extract_strided_slice %192 {offsets = [0, 8], sizes = [32, 8], strides = [1, 1]} : vector<32x32xf32> to vector<32x8xf32>
    %202 = vector.extract_strided_slice %189 {offsets = [0, 40], sizes = [32, 8], strides = [1, 1]} : vector<32x96xf32> to vector<32x8xf32>
    %cst_75 = arith.constant dense<0.000000e+00> : vector<32x32xf32>
    %203 = tpu.matmul %201, %202, %cst_75 {dimension_numbers = #tpu.dot_dimension_numbers<[1], [1], [0], [0], [0, 0, 1, 0], [], []>} : vector<32x8xf32>, vector<32x8xf32>, vector<32x32xf32> -> vector<32x32xf32>
    %204 = arith.addf %203, %0 : vector<32x32xf32>
    %cst_76 = arith.constant dense<0xFF800000> : vector<32xf32>
    %205 = vector.multi_reduction <maximumf>, %204, %cst_76 [1] : vector<32x32xf32> to vector<32xf32>
    %206 = vector.shape_cast %205 : vector<32xf32> to vector<32x1xf32>
    %207 = vector.broadcast %206 : vector<32x1xf32> to vector<32x32xf32>
    %208 = arith.subf %204, %207 : vector<32x32xf32>
    %209 = vector.extract_strided_slice %192 {offsets = [0, 16], sizes = [32, 8], strides = [1, 1]} : vector<32x32xf32> to vector<32x8xf32>
    %210 = vector.extract_strided_slice %189 {offsets = [0, 48], sizes = [32, 8], strides = [1, 1]} : vector<32x96xf32> to vector<32x8xf32>
    %cst_77 = arith.constant dense<0.000000e+00> : vector<32x32xf32>
    %211 = tpu.matmul %209, %210, %cst_77 {dimension_numbers = #tpu.dot_dimension_numbers<[1], [1], [0], [0], [0, 0, 1, 0], [], []>} : vector<32x8xf32>, vector<32x8xf32>, vector<32x32xf32> -> vector<32x32xf32>
    %212 = arith.addf %211, %0 : vector<32x32xf32>
    %cst_78 = arith.constant dense<0xFF800000> : vector<32xf32>
    %213 = vector.multi_reduction <maximumf>, %212, %cst_78 [1] : vector<32x32xf32> to vector<32xf32>
    %214 = vector.shape_cast %213 : vector<32xf32> to vector<32x1xf32>
    %215 = vector.broadcast %214 : vector<32x1xf32> to vector<32x32xf32>
    %216 = arith.subf %212, %215 : vector<32x32xf32>
    %217 = vector.extract_strided_slice %192 {offsets = [0, 24], sizes = [32, 8], strides = [1, 1]} : vector<32x32xf32> to vector<32x8xf32>
    %218 = vector.extract_strided_slice %189 {offsets = [0, 56], sizes = [32, 8], strides = [1, 1]} : vector<32x96xf32> to vector<32x8xf32>
    %cst_79 = arith.constant dense<0.000000e+00> : vector<32x32xf32>
    %219 = tpu.matmul %217, %218, %cst_79 {dimension_numbers = #tpu.dot_dimension_numbers<[1], [1], [0], [0], [0, 0, 1, 0], [], []>} : vector<32x8xf32>, vector<32x8xf32>, vector<32x32xf32> -> vector<32x32xf32>
    %220 = arith.addf %219, %0 : vector<32x32xf32>
    %cst_80 = arith.constant dense<0xFF800000> : vector<32xf32>
    %221 = vector.multi_reduction <maximumf>, %220, %cst_80 [1] : vector<32x32xf32> to vector<32xf32>
    %222 = vector.shape_cast %221 : vector<32xf32> to vector<32x1xf32>
    %223 = vector.broadcast %222 : vector<32x1xf32> to vector<32x32xf32>
    %224 = arith.subf %220, %223 : vector<32x32xf32>
    %225 = tpu.concatenate %200, %208, %216, %224 in 1 : vector<32x32xf32>, vector<32x32xf32>, vector<32x32xf32>, vector<32x32xf32> -> vector<32x128xf32>
    %226 = math.exp %225 : vector<32x128xf32>
    %cst_81 = arith.constant dense<0.000000e+00> : vector<32x4xf32>
    %227 = tpu.matmul %226, %1, %cst_81 {dimension_numbers = #tpu.dot_dimension_numbers<[1], [0], [0], [1], [0, 0, 1, 1], [], []>} : vector<32x128xf32>, vector<128x4xf32>, vector<32x4xf32> -> vector<32x4xf32>
    %228 = tpu.reciprocal %227 : vector<32x4xf32> -> vector<32x4xf32>
    %229 = vector.extract_strided_slice %226 {offsets = [0, 0], sizes = [32, 32], strides = [1, 1]} : vector<32x128xf32> to vector<32x32xf32>
    %230 = vector.extract_strided_slice %228 {offsets = [0, 0], sizes = [32, 1], strides = [1, 1]} : vector<32x4xf32> to vector<32x1xf32>
    %231 = vector.broadcast %230 : vector<32x1xf32> to vector<32x32xf32>
    %232 = arith.mulf %229, %231 : vector<32x32xf32>
    %233 = vector.extract_strided_slice %189 {offsets = [0, 64], sizes = [32, 8], strides = [1, 1]} : vector<32x96xf32> to vector<32x8xf32>
    %cst_82 = arith.constant dense<0.000000e+00> : vector<32x8xf32>
    %234 = tpu.matmul %232, %233, %cst_82 {dimension_numbers = #tpu.dot_dimension_numbers<[1], [0], [0], [1], [0, 0, 1, 1], [], []>} : vector<32x32xf32>, vector<32x8xf32>, vector<32x8xf32> -> vector<32x8xf32>
    %235 = vector.extract_strided_slice %226 {offsets = [0, 32], sizes = [32, 32], strides = [1, 1]} : vector<32x128xf32> to vector<32x32xf32>
    %236 = vector.extract_strided_slice %228 {offsets = [0, 1], sizes = [32, 1], strides = [1, 1]} : vector<32x4xf32> to vector<32x1xf32>
    %237 = vector.broadcast %236 : vector<32x1xf32> to vector<32x32xf32>
    %238 = arith.mulf %235, %237 : vector<32x32xf32>
    %239 = vector.extract_strided_slice %189 {offsets = [0, 72], sizes = [32, 8], strides = [1, 1]} : vector<32x96xf32> to vector<32x8xf32>
    %cst_83 = arith.constant dense<0.000000e+00> : vector<32x8xf32>
    %240 = tpu.matmul %238, %239, %cst_83 {dimension_numbers = #tpu.dot_dimension_numbers<[1], [0], [0], [1], [0, 0, 1, 1], [], []>} : vector<32x32xf32>, vector<32x8xf32>, vector<32x8xf32> -> vector<32x8xf32>
    %241 = vector.extract_strided_slice %226 {offsets = [0, 64], sizes = [32, 32], strides = [1, 1]} : vector<32x128xf32> to vector<32x32xf32>
    %242 = vector.extract_strided_slice %228 {offsets = [0, 2], sizes = [32, 1], strides = [1, 1]} : vector<32x4xf32> to vector<32x1xf32>
    %243 = vector.broadcast %242 : vector<32x1xf32> to vector<32x32xf32>
    %244 = arith.mulf %241, %243 : vector<32x32xf32>
    %245 = vector.extract_strided_slice %189 {offsets = [0, 80], sizes = [32, 8], strides = [1, 1]} : vector<32x96xf32> to vector<32x8xf32>
    %cst_84 = arith.constant dense<0.000000e+00> : vector<32x8xf32>
    %246 = tpu.matmul %244, %245, %cst_84 {dimension_numbers = #tpu.dot_dimension_numbers<[1], [0], [0], [1], [0, 0, 1, 1], [], []>} : vector<32x32xf32>, vector<32x8xf32>, vector<32x8xf32> -> vector<32x8xf32>
    %247 = vector.extract_strided_slice %226 {offsets = [0, 96], sizes = [32, 32], strides = [1, 1]} : vector<32x128xf32> to vector<32x32xf32>
    %248 = vector.extract_strided_slice %228 {offsets = [0, 3], sizes = [32, 1], strides = [1, 1]} : vector<32x4xf32> to vector<32x1xf32>
    %249 = vector.broadcast %248 : vector<32x1xf32> to vector<32x32xf32>
    %250 = arith.mulf %247, %249 : vector<32x32xf32>
    %251 = vector.extract_strided_slice %189 {offsets = [0, 88], sizes = [32, 8], strides = [1, 1]} : vector<32x96xf32> to vector<32x8xf32>
    %cst_85 = arith.constant dense<0.000000e+00> : vector<32x8xf32>
    %252 = tpu.matmul %250, %251, %cst_85 {dimension_numbers = #tpu.dot_dimension_numbers<[1], [0], [0], [1], [0, 0, 1, 1], [], []>} : vector<32x32xf32>, vector<32x8xf32>, vector<32x8xf32> -> vector<32x8xf32>
    %253 = tpu.concatenate %234, %240, %246, %252 in 1 : vector<32x8xf32>, vector<32x8xf32>, vector<32x8xf32>, vector<32x8xf32> -> vector<32x32xf32>
    %c368 = arith.constant 368 : index
    %c0_86 = arith.constant 0 : index
    %254 = vector.load %arg1[%c368, %c0_86] : memref<784x128xf32, #tpu.memory_space<vmem>>, vector<32x32xf32>
    %cst_87 = arith.constant dense<0.000000e+00> : vector<32x32xf32>
    %255 = tpu.matmul %253, %254, %cst_87 {dimension_numbers = #tpu.dot_dimension_numbers<[1], [0], [0], [1], [0, 0, 1, 1], [], []>} : vector<32x32xf32>, vector<32x32xf32>, vector<32x32xf32> -> vector<32x32xf32>
    %c400 = arith.constant 400 : index
    %c0_88 = arith.constant 0 : index
    %256 = vector.load %arg1[%c400, %c0_88] : memref<784x128xf32, #tpu.memory_space<vmem>>, vector<1x32xf32>
    %257 = vector.broadcast %256 : vector<1x32xf32> to vector<32x32xf32>
    %258 = arith.addf %255, %257 : vector<32x32xf32>
    %259 = arith.addf %184, %258 : vector<32x32xf32>
    %c408 = arith.constant 408 : index
    %c0_89 = arith.constant 0 : index
    %260 = vector.load %arg1[%c408, %c0_89] : memref<784x128xf32, #tpu.memory_space<vmem>>, vector<1x32xf32>
    %c416 = arith.constant 416 : index
    %c0_90 = arith.constant 0 : index
    %261 = vector.load %arg1[%c416, %c0_90] : memref<784x128xf32, #tpu.memory_space<vmem>>, vector<1x32xf32>
    %cst_91 = arith.constant dense<0.000000e+00> : vector<32xf32>
    %262 = vector.multi_reduction <add>, %259, %cst_91 [1] : vector<32x32xf32> to vector<32xf32>
    %263 = vector.shape_cast %262 : vector<32xf32> to vector<32x1xf32>
    %cst_92 = arith.constant 3.200000e+01 : f32
    %264 = vector.broadcast %cst_92 : f32 to vector<32x1xf32>
    %265 = arith.divf %263, %264 : vector<32x1xf32>
    %266 = vector.broadcast %265 : vector<32x1xf32> to vector<32x32xf32>
    %267 = arith.subf %259, %266 : vector<32x32xf32>
    %268 = vector.broadcast %265 : vector<32x1xf32> to vector<32x32xf32>
    %269 = arith.subf %259, %268 : vector<32x32xf32>
    %270 = arith.mulf %267, %269 : vector<32x32xf32>
    %cst_93 = arith.constant dense<0.000000e+00> : vector<32xf32>
    %271 = vector.multi_reduction <add>, %270, %cst_93 [1] : vector<32x32xf32> to vector<32xf32>
    %272 = vector.shape_cast %271 : vector<32xf32> to vector<32x1xf32>
    %cst_94 = arith.constant 3.200000e+01 : f32
    %273 = vector.broadcast %cst_94 : f32 to vector<32x1xf32>
    %274 = arith.divf %272, %273 : vector<32x1xf32>
    %275 = vector.broadcast %265 : vector<32x1xf32> to vector<32x32xf32>
    %276 = arith.subf %259, %275 : vector<32x32xf32>
    %cst_95 = arith.constant 9.99999974E-6 : f32
    %277 = vector.broadcast %cst_95 : f32 to vector<32x1xf32>
    %278 = arith.addf %274, %277 : vector<32x1xf32>
    %279 = math.rsqrt %278 : vector<32x1xf32>
    %280 = vector.broadcast %279 : vector<32x1xf32> to vector<32x32xf32>
    %281 = arith.mulf %276, %280 : vector<32x32xf32>
    %282 = vector.broadcast %260 : vector<1x32xf32> to vector<32x32xf32>
    %283 = arith.mulf %281, %282 : vector<32x32xf32>
    %284 = vector.broadcast %261 : vector<1x32xf32> to vector<32x32xf32>
    %285 = arith.addf %283, %284 : vector<32x32xf32>
    %c424 = arith.constant 424 : index
    %c0_96 = arith.constant 0 : index
    %286 = vector.load %arg1[%c424, %c0_96] : memref<784x128xf32, #tpu.memory_space<vmem>>, vector<32x64xf32>
    %cst_97 = arith.constant dense<0.000000e+00> : vector<32x64xf32>
    %287 = tpu.matmul %285, %286, %cst_97 {dimension_numbers = #tpu.dot_dimension_numbers<[1], [0], [0], [1], [0, 0, 1, 1], [], []>} : vector<32x32xf32>, vector<32x64xf32>, vector<32x64xf32> -> vector<32x64xf32>
    %c456 = arith.constant 456 : index
    %c0_98 = arith.constant 0 : index
    %288 = vector.load %arg1[%c456, %c0_98] : memref<784x128xf32, #tpu.memory_space<vmem>>, vector<1x64xf32>
    %289 = vector.broadcast %288 : vector<1x64xf32> to vector<32x64xf32>
    %290 = arith.addf %287, %289 : vector<32x64xf32>
    %cst_99 = arith.constant 0.000000e+00 : f32
    %291 = vector.broadcast %cst_99 : f32 to vector<32x64xf32>
    %292 = arith.maximumf %290, %291 : vector<32x64xf32>
    %c464 = arith.constant 464 : index
    %c0_100 = arith.constant 0 : index
    %293 = vector.load %arg1[%c464, %c0_100] : memref<784x128xf32, #tpu.memory_space<vmem>>, vector<64x32xf32>
    %cst_101 = arith.constant dense<0.000000e+00> : vector<32x32xf32>
    %294 = tpu.matmul %292, %293, %cst_101 {dimension_numbers = #tpu.dot_dimension_numbers<[1], [0], [0], [1], [0, 0, 1, 1], [], []>} : vector<32x64xf32>, vector<64x32xf32>, vector<32x32xf32> -> vector<32x32xf32>
    %c528 = arith.constant 528 : index
    %c0_102 = arith.constant 0 : index
    %295 = vector.load %arg1[%c528, %c0_102] : memref<784x128xf32, #tpu.memory_space<vmem>>, vector<1x32xf32>
    %296 = vector.broadcast %295 : vector<1x32xf32> to vector<32x32xf32>
    %297 = arith.addf %294, %296 : vector<32x32xf32>
    %298 = arith.addf %285, %297 : vector<32x32xf32>
    %c536 = arith.constant 536 : index
    %c0_103 = arith.constant 0 : index
    %299 = vector.load %arg1[%c536, %c0_103] : memref<784x128xf32, #tpu.memory_space<vmem>>, vector<1x32xf32>
    %c544 = arith.constant 544 : index
    %c0_104 = arith.constant 0 : index
    %300 = vector.load %arg1[%c544, %c0_104] : memref<784x128xf32, #tpu.memory_space<vmem>>, vector<1x32xf32>
    %cst_105 = arith.constant dense<0.000000e+00> : vector<32xf32>
    %301 = vector.multi_reduction <add>, %298, %cst_105 [1] : vector<32x32xf32> to vector<32xf32>
    %302 = vector.shape_cast %301 : vector<32xf32> to vector<32x1xf32>
    %cst_106 = arith.constant 3.200000e+01 : f32
    %303 = vector.broadcast %cst_106 : f32 to vector<32x1xf32>
    %304 = arith.divf %302, %303 : vector<32x1xf32>
    %305 = vector.broadcast %304 : vector<32x1xf32> to vector<32x32xf32>
    %306 = arith.subf %298, %305 : vector<32x32xf32>
    %307 = vector.broadcast %304 : vector<32x1xf32> to vector<32x32xf32>
    %308 = arith.subf %298, %307 : vector<32x32xf32>
    %309 = arith.mulf %306, %308 : vector<32x32xf32>
    %cst_107 = arith.constant dense<0.000000e+00> : vector<32xf32>
    %310 = vector.multi_reduction <add>, %309, %cst_107 [1] : vector<32x32xf32> to vector<32xf32>
    %311 = vector.shape_cast %310 : vector<32xf32> to vector<32x1xf32>
    %cst_108 = arith.constant 3.200000e+01 : f32
    %312 = vector.broadcast %cst_108 : f32 to vector<32x1xf32>
    %313 = arith.divf %311, %312 : vector<32x1xf32>
    %314 = vector.broadcast %304 : vector<32x1xf32> to vector<32x32xf32>
    %315 = arith.subf %298, %314 : vector<32x32xf32>
    %cst_109 = arith.constant 9.99999974E-6 : f32
    %316 = vector.broadcast %cst_109 : f32 to vector<32x1xf32>
    %317 = arith.addf %313, %316 : vector<32x1xf32>
    %318 = math.rsqrt %317 : vector<32x1xf32>
    %319 = vector.broadcast %318 : vector<32x1xf32> to vector<32x32xf32>
    %320 = arith.mulf %315, %319 : vector<32x32xf32>
    %321 = vector.broadcast %299 : vector<1x32xf32> to vector<32x32xf32>
    %322 = arith.mulf %320, %321 : vector<32x32xf32>
    %323 = vector.broadcast %300 : vector<1x32xf32> to vector<32x32xf32>
    %324 = arith.addf %322, %323 : vector<32x32xf32>
    %c552 = arith.constant 552 : index
    %c0_110 = arith.constant 0 : index
    %325 = vector.load %arg1[%c552, %c0_110] : memref<784x128xf32, #tpu.memory_space<vmem>>, vector<32x128xf32>
    %cst_111 = arith.constant dense<0.000000e+00> : vector<32x128xf32>
    %326 = tpu.matmul %324, %325, %cst_111 {dimension_numbers = #tpu.dot_dimension_numbers<[1], [0], [0], [1], [0, 0, 1, 1], [], []>} : vector<32x32xf32>, vector<32x128xf32>, vector<32x128xf32> -> vector<32x128xf32>
    %c584 = arith.constant 584 : index
    %c0_112 = arith.constant 0 : index
    %327 = vector.load %arg1[%c584, %c0_112] : memref<784x128xf32, #tpu.memory_space<vmem>>, vector<1x128xf32>
    %328 = vector.broadcast %327 : vector<1x128xf32> to vector<32x128xf32>
    %329 = arith.addf %326, %328 : vector<32x128xf32>
    %c0_113 = arith.constant 0 : index
    %c0_114 = arith.constant 0 : index
    %330 = vector.load %arg2[%c0_113, %c0_114] : memref<32x128xf32, #tpu.memory_space<vmem>>, vector<32x128xf32>
    tpu.vector_store %arg2[%c0_113, %c0_114], %329 {strides = array<i32>} : memref<32x128xf32, #tpu.memory_space<vmem>>, vector<32x128xf32>,
    return
  }
}

</mosaic_0001>

<llo_original>
// kernel: forward.1
$region0: #{forward.1}
  #allocation0 [shape = 'u32[]', space=smem, size = 0x4, offset = 0x4, fixed_abs, tag = 'smem constant byte address 0x4 - core index']
  #allocation1 [shape = 'u32[144,128]{1,0:T(1,128)}', space=vmem, size = 0x12000, scoped, tag = 'internal scratch']
  #allocation2 [shape = 'f32[48,8]{1,0:T(8,128)}', space=vmem, size = 0x6000, scoped, tag = 'scratch operand']
  %s0 = inlined_call_operand.vmem [shape: f32[32,4], index: 0, kind: input, shape index: {}]
  %s1 = inlined_call_operand.hbm [shape: f32[784,128], index: 1, kind: input, shape index: {}]
  %s2 = inlined_call_operand.vmem [shape: f32[32,128], index: 2, kind: output, shape index: {}]
  %s3 = sld [smem:[#allocation0]]
  $region22: #{forward.1} parent=0
    _
  %s5 = ssub.s32 1, %s3
  %s6 = scalar_select 0, %s5, %s3
  $region1: #{forward.1} parent=0
    #allocation3 [shape = 'u8[401408]{0}', space=vmem, size = 0x62000, scoped, tag = 'input window, operand 1, single buffered']
    #allocation4 [shape = 's32[1]{0}', space=sflag, size = 0x4, scoped, tag = 'scoped memory for forward.1']
    %7 = vsyncpa [#allocation4], 0
    // Predicated region
    $region2: #{forward.1} parent=1 // pred_check
      _
    $region3: #{forward.1} parent=1 // pred_check_branch
      %9 = sbr.rel (0) target = $region5
    $region4: #{forward.1} parent=1 // pred_region
      _
    $region5: #{forward.1} parent=1 // pred_fallthru
      _
    // Predicated region
    $region6: #{forward.1} parent=1 // pred_check
      _
    $region7: #{forward.1} parent=1 // pred_check_branch
      %11 = sbr.rel (0) target = $region9
    $region8: #{forward.1} parent=1 // pred_region
      %s13 = ssub.s32 12544, 12544
      %14 = vsyncadd [#allocation4], %s13
      %s15 = sshll.u32 [#allocation3], 4
      %s16 = int_to_ptr.vmem [resolvable:$true] %s15
      %21 = dma.hbm_to_vmem [thread:$0]  %s1, 12544, %s16, [#allocation4], 128, 128, 8
    $region9: #{forward.1} parent=1 // pred_fallthru
      _
    // Predicated region
    $region10: #{forward.1} parent=1 // pred_check
      _
    $region11: #{forward.1} parent=1 // pred_check_branch
      %23 = sbr.rel (0) target = $region13
    $region12: #{forward.1} parent=1 // pred_region
      %24 = dma.done [#allocation4], 12544
    $region13: #{forward.1} parent=1 // pred_fallthru
      _
    %v25 = vld [vmem:[#allocation3 + $0x250] sm:$0xff]
    %v26 = vld [vmem:[#allocation3 + $0x258] sm:$0xff]
    %v27 = vld [vmem:[#allocation3 + $0x260] sm:$0xff]
    %v28 = vld [vmem:[#allocation3 + $0x268] sm:$0xff]
    %v29 = vld [vmem:[#allocation3 + $0x270] sm:$0xff]
    %v30 = vld [vmem:[#allocation3 + $0x278] sm:$0xff]
    %v31 = vld [vmem:[#allocation3 + $0x280] sm:$0xff]
    %v32 = vld [vmem:[#allocation3 + $0x288] sm:$0xff]
    %v33 = vld [vmem:[#allocation3 + $0x290] sm:$0xff]
    %v34 = vld [vmem:[#allocation3 + $0x298] sm:$0xff]
    %v35 = vld [vmem:[#allocation3 + $0x2a0] sm:$0xff]
    %v36 = vld [vmem:[#allocation3 + $0x2a8] sm:$0xff]
    %v37 = vld [vmem:[#allocation3 + $0x2b0] sm:$0xff]
    %v38 = vld [vmem:[#allocation3 + $0x2b8] sm:$0xff]
    %v39 = vld [vmem:[#allocation3 + $0x2c0] sm:$0xff]
    %v40 = vld [vmem:[#allocation3 + $0x2c8] sm:$0xff]
    %v41 = vld [vmem:[#allocation3 + $0x2d0] sm:$0xff]
    %v42 = vld [vmem:[#allocation3 + $0x2d8] sm:$0xff]
    %v43 = vld [vmem:[#allocation3 + $0x2e0] sm:$0xff]
    %v44 = vld [vmem:[#allocation3 + $0x2e8] sm:$0xff]
    %v45 = vld [vmem:[#allocation3 + $0x2f0] sm:$0xff]
    %v46 = vld [vmem:[#allocation3 + $0x2f8] sm:$0xff]
    %v47 = vld [vmem:[#allocation3 + $0x300] sm:$0xff]
    %v48 = vld [vmem:[#allocation3 + $0x308] sm:$0xff]
    %vm49 = vcmask 64512
    %50 = vst.msk [vmem:[#allocation2] sm:$0xff] %vm49, 0.0
    %51 = vst.msk [vmem:[#allocation2 + $0x8] sm:$0xff] %vm49, 0.0
    %52 = vst.msk [vmem:[#allocation2 + $0x10] sm:$0xff] %vm49, 0.0
    %53 = vst.msk [vmem:[#allocation2 + $0x18] sm:$0xff] %vm49, 0.0
    %54 = vst.msk [vmem:[#allocation2 + $0x20] sm:$0xff] %vm49, 0.0
    %55 = vst.msk [vmem:[#allocation2 + $0x28] sm:$0xff] %vm49, 0.0
    %v56 = vld [vmem:[%s0] sm:$0xff]
    %v57 = vld [vmem:[%s0 + $0x8] sm:$0xff]
    %v58 = vld [vmem:[%s0 + $0x10] sm:$0xff]
    %v59 = vld [vmem:[%s0 + $0x18] sm:$0xff]
    %v60 = vld [vmem:[#allocation3] sm:$0xff]
    %v61 = vld [vmem:[#allocation3 + $0x8] sm:$0xf]
    %v62 = vld [vmem:[#allocation3 + $0x10] sm:$0x1]
    %vm63 = vcmask 31744
    %64 = vst.msk [vmem:[#allocation2 + $0x8] sm:$0xff] %vm63, %v56
    %65 = vst.msk [vmem:[#allocation2 + $0x10] sm:$0xff] %vm63, %v57
    %66 = vst.msk [vmem:[#allocation2 + $0x18] sm:$0xff] %vm63, %v58
    %67 = vst.msk [vmem:[#allocation2 + $0x20] sm:$0xff] %vm63, %v59
    %v68 = vld [vmem:[#allocation2 + $0x7] sm:$0xff]
    %v69 = vld [vmem:[#allocation2 + $0xf] sm:$0xff]
    %v70 = vld [vmem:[#allocation2 + $0x17] sm:$0xff]
    %v71 = vld [vmem:[#allocation2 + $0x1f] sm:$0xff]
    %73 = vset.pattern.permute.xlu0 0
    %74 = vperm.xlu0 %73, %v45
    %v75 = vpop.permute.xlu0 %74
    %78 = vset.pattern.permute.xlu0 0
    %79 = vperm.xlu0 %78, %v46
    %v80 = vpop.permute.xlu0 %79
    %83 = vset.pattern.permute.xlu0 0
    %84 = vperm.xlu0 %83, %v47
    %v85 = vpop.permute.xlu0 %84
    %88 = vset.pattern.permute.xlu0 0
    %89 = vperm.xlu0 %88, %v48
    %v90 = vpop.permute.xlu0 %89
    %v92 = vmul.f32 %v68, %v75
    %v93 = vmul.f32 %v69, %v80
    %v94 = vmul.f32 %v70, %v85
    %v95 = vmul.f32 %v71, %v90
    %v96 = vld [vmem:[#allocation2 + $0x9] sm:$0xff]
    %v97 = vld [vmem:[#allocation2 + $0x11] sm:$0xff]
    %v98 = vld [vmem:[#allocation2 + $0x19] sm:$0xff]
    %v99 = vld [vmem:[#allocation2 + $0x21] sm:$0xff]
    %100 = vset.pattern.permute.xlu0 1
    %101 = vperm.xlu0 %100, %v45
    %v102 = vpop.permute.xlu0 %101
    %104 = vset.pattern.permute.xlu0 1
    %105 = vperm.xlu0 %104, %v46
    %v106 = vpop.permute.xlu0 %105
    %108 = vset.pattern.permute.xlu0 1
    %109 = vperm.xlu0 %108, %v47
    %v110 = vpop.permute.xlu0 %109
    %112 = vset.pattern.permute.xlu0 1
    %113 = vperm.xlu0 %112, %v48
    %v114 = vpop.permute.xlu0 %113
    %v116 = vmul.f32 %v96, %v102
    %v117 = vmul.f32 %v97, %v106
    %v118 = vmul.f32 %v98, %v110
    %v119 = vmul.f32 %v99, %v114
    %124 = vrot.lane.b32.xlu0 %v56, 4
    %v125 = vpop.permute.xlu0 %124
    %126 = vrot.lane.b32.xlu0 %v57, 4
    %v127 = vpop.permute.xlu0 %126
    %128 = vrot.lane.b32.xlu0 %v58, 4
    %v129 = vpop.permute.xlu0 %128
    %130 = vrot.lane.b32.xlu0 %v59, 4
    %v131 = vpop.permute.xlu0 %130
    %140 = vrot.lane.b32.xlu0 %v116, 8
    %v141 = vpop.permute.xlu0 %140
    %142 = vrot.lane.b32.xlu0 %v117, 8
    %v143 = vpop.permute.xlu0 %142
    %144 = vrot.lane.b32.xlu0 %v118, 8
    %v145 = vpop.permute.xlu0 %144
    %146 = vrot.lane.b32.xlu0 %v119, 8
    %v147 = vpop.permute.xlu0 %146
    %v152 = vsel %vm63, %v92, %v125
    %v153 = vsel %vm63, %v93, %v127
    %v154 = vsel %vm63, %v94, %v129
    %v155 = vsel %vm63, %v95, %v131
    %v156 = vsel %vm49, %v152, %v141
    %v157 = vsel %vm49, %v153, %v143
    %v158 = vsel %vm49, %v154, %v145
    %v159 = vsel %vm49, %v155, %v147
    %v160 = vlaneseq
    %v161 = vshrl.u32 %v160, 7
    %v162 = vsub.s32 0, %v161
    %v163 = vrot.slane %v62, %v162
    %vm164 = vcmask 97280
    %v166 = vsel %vm164, %v156, 0
    %v169 = vsel %vm164, %v157, 0
    %v172 = vsel %vm164, %v158, 0
    %v175 = vsel %vm164, %v159, 0
    %vm177 = vcmask 1043456
    %v179 = vsel %vm177, %v61, 0
    %181 = vmatprep.subr.mxu0 0.0
    %182 = vmatpush1.msra.mxu0 %v60
    %183 = vmatprep.subr.mxu0 0.0
    %184 = vmatpush1.msra.mxu0 %v179
    %185 = vmatprep.subr.mxu0 0.0
    %186 = vmatpush1.msra.mxu0 0.0
    %187 = vmatprep.subr.mxu0 0.0
    %188 = vmatpush1.msra.mxu0 0.0
    %189 = vmatprep.subr.mxu0 0.0
    %190 = vmatpush1.msra.mxu0 0.0
    %191 = vmatprep.subr.mxu0 0.0
    %192 = vmatpush1.msra.mxu0 0.0
    %193 = vmatprep.subr.mxu0 0.0
    %194 = vmatpush1.msra.mxu0 0.0
    %195 = vmatprep.subr.mxu0 0.0
    %196 = vmatpush1.msra.mxu0 0.0
    %197 = vmatprep.subr.mxu0 0.0
    %198 = vmatpush1.msra.mxu0 0.0
    %199 = vmatprep.subr.mxu0 0.0
    %200 = vmatpush1.msra.mxu0 0.0
    %201 = vmatprep.subr.mxu0 0.0
    %202 = vmatpush1.msra.mxu0 0.0
    %203 = vmatprep.subr.mxu0 0.0
    %204 = vmatpush1.msra.mxu0 0.0
    %205 = vmatprep.subr.mxu0 0.0
    %206 = vmatpush1.msra.mxu0 0.0
    %207 = vmatprep.subr.mxu0 0.0
    %208 = vmatpush1.msra.mxu0 0.0
    %209 = vmatprep.subr.mxu0 0.0
    %210 = vmatpush1.msra.mxu0 0.0
    %211 = vmatprep.subr.mxu0 0.0
    %212 = vmatpush1.msra.mxu0 0.0
    %213 = vmatprep.subr.mxu0 0.0
    %214 = vmatpush1.msra.mxu0 0.0
    %215 = vmatprep.subr.mxu0 0.0
    %216 = vmatpush1.msra.mxu0 0.0
    %217 = vmatprep.subr.mxu0 0.0
    %218 = vmatpush1.msra.mxu0 0.0
    %219 = vmatprep.subr.mxu0 0.0
    %220 = vmatpush1.msra.mxu0 0.0
    %221 = vmatprep.subr.mxu0 0.0
    %222 = vmatpush1.msra.mxu0 0.0
    %223 = vmatprep.subr.mxu0 0.0
    %224 = vmatpush1.msra.mxu0 0.0
    %225 = vmatprep.subr.mxu0 0.0
    %226 = vmatpush1.msra.mxu0 0.0
    %227 = vmatprep.subr.mxu0 0.0
    %228 = vmatpush1.msra.mxu0 0.0
    %229 = vmatprep.subr.mxu0 0.0
    %230 = vmatpush1.msra.mxu0 0.0
    %231 = vmatprep.subr.mxu0 0.0
    %232 = vmatpush1.msra.mxu0 0.0
    %233 = vmatprep.subr.mxu0 0.0
    %234 = vmatpush1.msra.mxu0 0.0
    %235 = vmatprep.subr.mxu0 0.0
    %236 = vmatpush1.msra.mxu0 0.0
    %237 = vmatprep.subr.mxu0 0.0
    %238 = vmatpush1.msra.mxu0 0.0
    %239 = vmatprep.subr.mxu0 0.0
    %240 = vmatpush1.msra.mxu0 0.0
    %241 = vmatprep.subr.mxu0 0.0
    %242 = vmatpush1.msra.mxu0 0.0
    %243 = vmatprep.subr.mxu0 0.0
    %244 = vmatpush1.msra.mxu0 0.0
    %245 = vmatprep.mubr.f32.mxu0 0.0
    %246 = vmatmul.mubr.f32.gmra.mrb[0].mxu0 %v166
    %v247 = vpop.f32.mrb[0].mxu0
    %v248 = vadd.f32 %v163, %v247
    %v249 = vpop.f32.mrb[0].mxu0
    %250 = vmatprep.mubr.f32.mxu0 0.0
    %251 = vmatmul.mubr.f32.gmra.mrb[0].mxu0 %v169
    %v252 = vpop.f32.mrb[0].mxu0
    %v253 = vadd.f32 %v163, %v252
    %v254 = vpop.f32.mrb[0].mxu0
    %255 = vmatprep.mubr.f32.mxu0 0.0
    %256 = vmatmul.mubr.f32.gmra.mrb[0].mxu0 %v172
    %v257 = vpop.f32.mrb[0].mxu0
    %v258 = vadd.f32 %v163, %v257
    %v259 = vpop.f32.mrb[0].mxu0
    %260 = vmatprep.mubr.f32.mxu0 0.0
    %261 = vmatmul.mubr.f32.gmra.mrb[0].mxu0 %v175
    %v262 = vpop.f32.mrb[0].mxu0
    %v263 = vadd.f32 %v163, %v262
    %v264 = vpop.f32.mrb[0].mxu0
    %265 = vdwg.mxu0
    %v266 = vmax.f32 %v248, 0.0
    %v267 = vmax.f32 %v253, 0.0
    %v268 = vmax.f32 %v258, 0.0
    %v269 = vmax.f32 %v263, 0.0
    %v270 = vld [vmem:[#allocation3 + $0x18] sm:$0xff]
    %v271 = vld [vmem:[#allocation3 + $0x20] sm:$0xff]
    %v272 = vld [vmem:[#allocation3 + $0x28] sm:$0xff]
    %v273 = vld [vmem:[#allocation3 + $0x30] sm:$0x1]
    %274 = vst.msk [vmem:[#allocation2 + $0x8] sm:$0xff] %vm49, %v266
    %275 = vst.msk [vmem:[#allocation2 + $0x10] sm:$0xff] %vm49, %v267
    %276 = vst.msk [vmem:[#allocation2 + $0x18] sm:$0xff] %vm49, %v268
    %277 = vst.msk [vmem:[#allocation2 + $0x20] sm:$0xff] %vm49, %v269
    %v278 = vld [vmem:[#allocation2 + $0x7] sm:$0xff]
    %v279 = vld [vmem:[#allocation2 + $0xf] sm:$0xff]
    %v280 = vld [vmem:[#allocation2 + $0x17] sm:$0xff]
    %v281 = vld [vmem:[#allocation2 + $0x1f] sm:$0xff]
    %v282 = vmul.f32 %v278, %v75
    %v283 = vmul.f32 %v279, %v80
    %v284 = vmul.f32 %v280, %v85
    %v285 = vmul.f32 %v281, %v90
    %v286 = vld [vmem:[#allocation2 + $0x9] sm:$0xff]
    %v287 = vld [vmem:[#allocation2 + $0x11] sm:$0xff]
    %v288 = vld [vmem:[#allocation2 + $0x19] sm:$0xff]
    %v289 = vld [vmem:[#allocation2 + $0x21] sm:$0xff]
    %v290 = vmul.f32 %v286, %v102
    %v291 = vmul.f32 %v287, %v106
    %v292 = vmul.f32 %v288, %v110
    %v293 = vmul.f32 %v289, %v114
    %298 = vrot.lane.b32.xlu0 %v266, 8
    %v299 = vpop.permute.xlu0 %298
    %300 = vrot.lane.b32.xlu0 %v267, 8
    %v301 = vpop.permute.xlu0 %300
    %302 = vrot.lane.b32.xlu0 %v268, 8
    %v303 = vpop.permute.xlu0 %302
    %304 = vrot.lane.b32.xlu0 %v269, 8
    %v305 = vpop.permute.xlu0 %304
    %314 = vrot.lane.b32.xlu0 %v290, 16
    %v315 = vpop.permute.xlu0 %314
    %316 = vrot.lane.b32.xlu0 %v291, 16
    %v317 = vpop.permute.xlu0 %316
    %318 = vrot.lane.b32.xlu0 %v292, 16
    %v319 = vpop.permute.xlu0 %318
    %320 = vrot.lane.b32.xlu0 %v293, 16
    %v321 = vpop.permute.xlu0 %320
    %v326 = vsel %vm49, %v282, %v299
    %v327 = vsel %vm49, %v283, %v301
    %v328 = vsel %vm49, %v284, %v303
    %v329 = vsel %vm49, %v285, %v305
    %vm330 = vcmask 130048
    %v331 = vsel %vm330, %v326, %v315
    %v332 = vsel %vm330, %v327, %v317
    %v333 = vsel %vm330, %v328, %v319
    %v334 = vsel %vm330, %v329, %v321
    %v335 = vlaneseq
    %v336 = vshrl.u32 %v335, 7
    %v337 = vsub.s32 0, %v336
    %v338 = vrot.slane %v273, %v337
    %vm339 = vcmask 195584
    %v341 = vsel %vm339, %v331, 0
    %v344 = vsel %vm339, %v332, 0
    %v347 = vsel %vm339, %v333, 0
    %v350 = vsel %vm339, %v334, 0
    %352 = vmatprep.subr.mxu0 0.0
    %353 = vmatpush1.msra.mxu0 %v270
    %354 = vmatprep.subr.mxu0 0.0
    %355 = vmatpush1.msra.mxu0 %v271
    %356 = vmatprep.subr.mxu0 0.0
    %357 = vmatpush1.msra.mxu0 %v272
    %358 = vmatprep.subr.mxu0 0.0
    %359 = vmatpush1.msra.mxu0 0.0
    %360 = vmatprep.subr.mxu0 0.0
    %361 = vmatpush1.msra.mxu0 0.0
    %362 = vmatprep.subr.mxu0 0.0
    %363 = vmatpush1.msra.mxu0 0.0
    %364 = vmatprep.subr.mxu0 0.0
    %365 = vmatpush1.msra.mxu0 0.0
    %366 = vmatprep.subr.mxu0 0.0
    %367 = vmatpush1.msra.mxu0 0.0
    %368 = vmatprep.subr.mxu0 0.0
    %369 = vmatpush1.msra.mxu0 0.0
    %370 = vmatprep.subr.mxu0 0.0
    %371 = vmatpush1.msra.mxu0 0.0
    %372 = vmatprep.subr.mxu0 0.0
    %373 = vmatpush1.msra.mxu0 0.0
    %374 = vmatprep.subr.mxu0 0.0
    %375 = vmatpush1.msra.mxu0 0.0
    %376 = vmatprep.subr.mxu0 0.0
    %377 = vmatpush1.msra.mxu0 0.0
    %378 = vmatprep.subr.mxu0 0.0
    %379 = vmatpush1.msra.mxu0 0.0
    %380 = vmatprep.subr.mxu0 0.0
    %381 = vmatpush1.msra.mxu0 0.0
    %382 = vmatprep.subr.mxu0 0.0
    %383 = vmatpush1.msra.mxu0 0.0
    %384 = vmatprep.subr.mxu0 0.0
    %385 = vmatpush1.msra.mxu0 0.0
    %386 = vmatprep.subr.mxu0 0.0
    %387 = vmatpush1.msra.mxu0 0.0
    %388 = vmatprep.subr.mxu0 0.0
    %389 = vmatpush1.msra.mxu0 0.0
    %390 = vmatprep.subr.mxu0 0.0
    %391 = vmatpush1.msra.mxu0 0.0
    %392 = vmatprep.subr.mxu0 0.0
    %393 = vmatpush1.msra.mxu0 0.0
    %394 = vmatprep.subr.mxu0 0.0
    %395 = vmatpush1.msra.mxu0 0.0
    %396 = vmatprep.subr.mxu0 0.0
    %397 = vmatpush1.msra.mxu0 0.0
    %398 = vmatprep.subr.mxu0 0.0
    %399 = vmatpush1.msra.mxu0 0.0
    %400 = vmatprep.subr.mxu0 0.0
    %401 = vmatpush1.msra.mxu0 0.0
    %402 = vmatprep.subr.mxu0 0.0
    %403 = vmatpush1.msra.mxu0 0.0
    %404 = vmatprep.subr.mxu0 0.0
    %405 = vmatpush1.msra.mxu0 0.0
    %406 = vmatprep.subr.mxu0 0.0
    %407 = vmatpush1.msra.mxu0 0.0
    %408 = vmatprep.subr.mxu0 0.0
    %409 = vmatpush1.msra.mxu0 0.0
    %410 = vmatprep.subr.mxu0 0.0
    %411 = vmatpush1.msra.mxu0 0.0
    %412 = vmatprep.subr.mxu0 0.0
    %413 = vmatpush1.msra.mxu0 0.0
    %414 = vmatprep.subr.mxu0 0.0
    %415 = vmatpush1.msra.mxu0 0.0
    %416 = vmatprep.mubr.f32.mxu0 0.0
    %417 = vmatmul.mubr.f32.gmra.mrb[0].mxu0 %v341
    %v418 = vpop.f32.mrb[0].mxu0
    %v419 = vadd.f32 %v338, %v418
    %v420 = vpop.f32.mrb[0].mxu0
    %421 = vmatprep.mubr.f32.mxu0 0.0
    %422 = vmatmul.mubr.f32.gmra.mrb[0].mxu0 %v344
    %v423 = vpop.f32.mrb[0].mxu0
    %v424 = vadd.f32 %v338, %v423
    %v425 = vpop.f32.mrb[0].mxu0
    %426 = vmatprep.mubr.f32.mxu0 0.0
    %427 = vmatmul.mubr.f32.gmra.mrb[0].mxu0 %v347
    %v428 = vpop.f32.mrb[0].mxu0
    %v429 = vadd.f32 %v338, %v428
    %v430 = vpop.f32.mrb[0].mxu0
    %431 = vmatprep.mubr.f32.mxu0 0.0
    %432 = vmatmul.mubr.f32.gmra.mrb[0].mxu0 %v350
    %v433 = vpop.f32.mrb[0].mxu0
    %v434 = vadd.f32 %v338, %v433
    %v435 = vpop.f32.mrb[0].mxu0
    %436 = vdwg.mxu0
    %v437 = vmax.f32 %v419, 0.0
    %v438 = vmax.f32 %v424, 0.0
    %v439 = vmax.f32 %v429, 0.0
    %v440 = vmax.f32 %v434, 0.0
    %v441 = vld [vmem:[#allocation3 + $0x38] sm:$0xff]
    %v442 = vld [vmem:[#allocation3 + $0x40] sm:$0x1]
    %v443 = vlaneseq
    %v444 = vshrl.u32 %v443, 7
    %v445 = vsub.s32 0, %v444
    %v446 = vrot.slane %v442, %v445
    %v448 = vsel %vm49, %v437, 0
    %v451 = vsel %vm49, %v438, 0
    %v454 = vsel %vm49, %v439, 0
    %v457 = vsel %vm49, %v440, 0
    %459 = vmatprep.subr.mxu0 0.0
    %460 = vmatpush1.msra.mxu0 %v441
    %461 = vmatprep.subr.mxu0 0.0
    %462 = vmatpush1.msra.mxu0 0.0
    %463 = vmatprep.subr.mxu0 0.0
    %464 = vmatpush1.msra.mxu0 0.0
    %465 = vmatprep.subr.mxu0 0.0
    %466 = vmatpush1.msra.mxu0 0.0
    %467 = vmatprep.subr.mxu0 0.0
    %468 = vmatpush1.msra.mxu0 0.0
    %469 = vmatprep.subr.mxu0 0.0
    %470 = vmatpush1.msra.mxu0 0.0
    %471 = vmatprep.subr.mxu0 0.0
    %472 = vmatpush1.msra.mxu0 0.0
    %473 = vmatprep.subr.mxu0 0.0
    %474 = vmatpush1.msra.mxu0 0.0
    %475 = vmatprep.subr.mxu0 0.0
    %476 = vmatpush1.msra.mxu0 0.0
    %477 = vmatprep.subr.mxu0 0.0
    %478 = vmatpush1.msra.mxu0 0.0
    %479 = vmatprep.subr.mxu0 0.0
    %480 = vmatpush1.msra.mxu0 0.0
    %481 = vmatprep.subr.mxu0 0.0
    %482 = vmatpush1.msra.mxu0 0.0
    %483 = vmatprep.subr.mxu0 0.0
    %484 = vmatpush1.msra.mxu0 0.0
    %485 = vmatprep.subr.mxu0 0.0
    %486 = vmatpush1.msra.mxu0 0.0
    %487 = vmatprep.subr.mxu0 0.0
    %488 = vmatpush1.msra.mxu0 0.0
    %489 = vmatprep.subr.mxu0 0.0
    %490 = vmatpush1.msra.mxu0 0.0
    %491 = vmatprep.subr.mxu0 0.0
    %492 = vmatpush1.msra.mxu0 0.0
    %493 = vmatprep.subr.mxu0 0.0
    %494 = vmatpush1.msra.mxu0 0.0
    %495 = vmatprep.subr.mxu0 0.0
    %496 = vmatpush1.msra.mxu0 0.0
    %497 = vmatprep.subr.mxu0 0.0
    %498 = vmatpush1.msra.mxu0 0.0
    %499 = vmatprep.subr.mxu0 0.0
    %500 = vmatpush1.msra.mxu0 0.0
    %501 = vmatprep.subr.mxu0 0.0
    %502 = vmatpush1.msra.mxu0 0.0
    %503 = vmatprep.subr.mxu0 0.0
    %504 = vmatpush1.msra.mxu0 0.0
    %505 = vmatprep.subr.mxu0 0.0
    %506 = vmatpush1.msra.mxu0 0.0
    %507 = vmatprep.subr.mxu0 0.0
    %508 = vmatpush1.msra.mxu0 0.0
    %509 = vmatprep.subr.mxu0 0.0
    %510 = vmatpush1.msra.mxu0 0.0
    %511 = vmatprep.subr.mxu0 0.0
    %512 = vmatpush1.msra.mxu0 0.0
    %513 = vmatprep.subr.mxu0 0.0
    %514 = vmatpush1.msra.mxu0 0.0
    %515 = vmatprep.subr.mxu0 0.0
    %516 = vmatpush1.msra.mxu0 0.0
    %517 = vmatprep.subr.mxu0 0.0
    %518 = vmatpush1.msra.mxu0 0.0
    %519 = vmatprep.subr.mxu0 0.0
    %520 = vmatpush1.msra.mxu0 0.0
    %521 = vmatprep.subr.mxu0 0.0
    %522 = vmatpush1.msra.mxu0 0.0
    %523 = vmatprep.mubr.f32.mxu0 0.0
    %524 = vmatmul.mubr.f32.gmra.mrb[0].mxu0 %v448
    %v525 = vpop.f32.mrb[0].mxu0
    %v526 = vadd.f32 %v446, %v525
    %v527 = vpop.f32.mrb[0].mxu0
    %528 = vmatprep.mubr.f32.mxu0 0.0
    %529 = vmatmul.mubr.f32.gmra.mrb[0].mxu0 %v451
    %v530 = vpop.f32.mrb[0].mxu0
    %v531 = vadd.f32 %v446, %v530
    %v532 = vpop.f32.mrb[0].mxu0
    %533 = vmatprep.mubr.f32.mxu0 0.0
    %534 = vmatmul.mubr.f32.gmra.mrb[0].mxu0 %v454
    %v535 = vpop.f32.mrb[0].mxu0
    %v536 = vadd.f32 %v446, %v535
    %v537 = vpop.f32.mrb[0].mxu0
    %538 = vmatprep.mubr.f32.mxu0 0.0
    %539 = vmatmul.mubr.f32.gmra.mrb[0].mxu0 %v457
    %v540 = vpop.f32.mrb[0].mxu0
    %v541 = vadd.f32 %v446, %v540
    %v542 = vpop.f32.mrb[0].mxu0
    %543 = vdwg.mxu0
    %v544 = vld [vmem:[#allocation3 + $0x48] sm:$0xff]
    %v545 = vld [vmem:[#allocation3 + $0x50] sm:$0xff]
    %v546 = vld [vmem:[#allocation3 + $0x58] sm:$0xff]
    %v547 = vld [vmem:[#allocation3 + $0x60] sm:$0xff]
    %v548 = vadd.f32 %v526, %v544
    %v549 = vadd.f32 %v531, %v545
    %v550 = vadd.f32 %v536, %v546
    %v551 = vadd.f32 %v541, %v547
    %v552 = vld [vmem:[#allocation3 + $0x68] sm:$0xff]
    %v553 = vld [vmem:[#allocation3 + $0x70] sm:$0xff]
    %v554 = vld [vmem:[#allocation3 + $0x78] sm:$0xff]
    %v555 = vld [vmem:[#allocation3 + $0x80] sm:$0xff]
    %v556 = vld [vmem:[#allocation3 + $0x88] sm:$0x1]
    %v557 = vlaneseq
    %v558 = vshrl.u32 %v557, 7
    %v559 = vsub.s32 0, %v558
    %v560 = vrot.slane %v556, %v559
    %vm561 = vcmask 261120
    %v563 = vsel %vm561, %v548, 0
    %v566 = vsel %vm561, %v549, 0
    %v569 = vsel %vm561, %v550, 0
    %v572 = vsel %vm561, %v551, 0
    %574 = vmatprep.subr.mxu0 0.0
    %575 = vmatpush1.msra.mxu0 %v552
    %576 = vmatprep.subr.mxu0 0.0
    %577 = vmatpush1.msra.mxu0 %v553
    %578 = vmatprep.subr.mxu0 0.0
    %579 = vmatpush1.msra.mxu0 %v554
    %580 = vmatprep.subr.mxu0 0.0
    %581 = vmatpush1.msra.mxu0 %v555
    %582 = vmatprep.subr.mxu0 0.0
    %583 = vmatpush1.msra.mxu0 0.0
    %584 = vmatprep.subr.mxu0 0.0
    %585 = vmatpush1.msra.mxu0 0.0
    %586 = vmatprep.subr.mxu0 0.0
    %587 = vmatpush1.msra.mxu0 0.0
    %588 = vmatprep.subr.mxu0 0.0
    %589 = vmatpush1.msra.mxu0 0.0
    %590 = vmatprep.subr.mxu0 0.0
    %591 = vmatpush1.msra.mxu0 0.0
    %592 = vmatprep.subr.mxu0 0.0
    %593 = vmatpush1.msra.mxu0 0.0
    %594 = vmatprep.subr.mxu0 0.0
    %595 = vmatpush1.msra.mxu0 0.0
    %596 = vmatprep.subr.mxu0 0.0
    %597 = vmatpush1.msra.mxu0 0.0
    %598 = vmatprep.subr.mxu0 0.0
    %599 = vmatpush1.msra.mxu0 0.0
    %600 = vmatprep.subr.mxu0 0.0
    %601 = vmatpush1.msra.mxu0 0.0
    %602 = vmatprep.subr.mxu0 0.0
    %603 = vmatpush1.msra.mxu0 0.0
    %604 = vmatprep.subr.mxu0 0.0
    %605 = vmatpush1.msra.mxu0 0.0
    %606 = vmatprep.subr.mxu0 0.0
    %607 = vmatpush1.msra.mxu0 0.0
    %608 = vmatprep.subr.mxu0 0.0
    %609 = vmatpush1.msra.mxu0 0.0
    %610 = vmatprep.subr.mxu0 0.0
    %611 = vmatpush1.msra.mxu0 0.0
    %612 = vmatprep.subr.mxu0 0.0
    %613 = vmatpush1.msra.mxu0 0.0
    %614 = vmatprep.subr.mxu0 0.0
    %615 = vmatpush1.msra.mxu0 0.0
    %616 = vmatprep.subr.mxu0 0.0
    %617 = vmatpush1.msra.mxu0 0.0
    %618 = vmatprep.subr.mxu0 0.0
    %619 = vmatpush1.msra.mxu0 0.0
    %620 = vmatprep.subr.mxu0 0.0
    %621 = vmatpush1.msra.mxu0 0.0
    %622 = vmatprep.subr.mxu0 0.0
    %623 = vmatpush1.msra.mxu0 0.0
    %624 = vmatprep.subr.mxu0 0.0
    %625 = vmatpush1.msra.mxu0 0.0
    %626 = vmatprep.subr.mxu0 0.0
    %627 = vmatpush1.msra.mxu0 0.0
    %628 = vmatprep.subr.mxu0 0.0
    %629 = vmatpush1.msra.mxu0 0.0
    %630 = vmatprep.subr.mxu0 0.0
    %631 = vmatpush1.msra.mxu0 0.0
    %632 = vmatprep.subr.mxu0 0.0
    %633 = vmatpush1.msra.mxu0 0.0
    %634 = vmatprep.subr.mxu0 0.0
    %635 = vmatpush1.msra.mxu0 0.0
    %636 = vmatprep.subr.mxu0 0.0
    %637 = vmatpush1.msra.mxu0 0.0
    %638 = vmatprep.mubr.f32.mxu0 0.0
    %639 = vmatmul.mubr.f32.gmra.mrb[0].mxu0 %v563
    %v640 = vpop.f32.mrb[0].mxu0
    %v641 = vadd.f32 %v560, %v640
    %v642 = vpop.f32.mrb[0].mxu0
    %643 = vmatprep.mubr.f32.mxu0 0.0
    %644 = vmatmul.mubr.f32.gmra.mrb[0].mxu0 %v566
    %v645 = vpop.f32.mrb[0].mxu0
    %v646 = vadd.f32 %v560, %v645
    %v647 = vpop.f32.mrb[0].mxu0
    %648 = vmatprep.mubr.f32.mxu0 0.0
    %649 = vmatmul.mubr.f32.gmra.mrb[0].mxu0 %v569
    %v650 = vpop.f32.mrb[0].mxu0
    %v651 = vadd.f32 %v560, %v650
    %v652 = vpop.f32.mrb[0].mxu0
    %653 = vmatprep.mubr.f32.mxu0 0.0
    %654 = vmatmul.mubr.f32.gmra.mrb[0].mxu0 %v572
    %v655 = vpop.f32.mrb[0].mxu0
    %v656 = vadd.f32 %v560, %v655
    %v657 = vpop.f32.mrb[0].mxu0
    %658 = vdwg.mxu0
    %v659 = vmul.f32 %v641, 0.35355338
    %v660 = vmul.f32 %v646, 0.35355338
    %v661 = vmul.f32 %v651, 0.35355338
    %v662 = vmul.f32 %v656, 0.35355338
    %667 = vrot.lane.b32.xlu0 %v641, 96
    %v668 = vpop.permute.xlu0 %667
    %669 = vrot.lane.b32.xlu0 %v646, 96
    %v670 = vpop.permute.xlu0 %669
    %671 = vrot.lane.b32.xlu0 %v651, 96
    %v672 = vpop.permute.xlu0 %671
    %673 = vrot.lane.b32.xlu0 %v656, 96
    %v674 = vpop.permute.xlu0 %673
    %v676 = vsel %vm49, %v659, 0
    %v679 = vsel %vm49, %v660, 0
    %v682 = vsel %vm49, %v661, 0
    %v685 = vsel %vm49, %v662, 0
    %v687 = vsel %vm49, %v668, 0
    %v689 = vsel %vm49, %v670, 0
    %v691 = vsel %vm49, %v672, 0
    %v693 = vsel %vm49, %v674, 0
    %695 = vmatprep.subr.mxu0 0.0
    %696 = vmatpush1.xpose.msra.mxu0 %v687
    %697 = vmatprep.subr.mxu0 0.0
    %698 = vmatpush1.xpose.msra.mxu0 %v689
    %699 = vmatprep.subr.mxu0 0.0
    %700 = vmatpush1.xpose.msra.mxu0 %v691
    %701 = vmatprep.subr.mxu0 0.0
    %702 = vmatpush1.xpose.msra.mxu0 %v693
    %703 = vmatprep.subr.mxu0 0.0
    %704 = vmatpush1.xpose.msra.mxu0 0.0
    %705 = vmatprep.subr.mxu0 0.0
    %706 = vmatpush1.xpose.msra.mxu0 0.0
    %707 = vmatprep.subr.mxu0 0.0
    %708 = vmatpush1.xpose.msra.mxu0 0.0
    %709 = vmatprep.subr.mxu0 0.0
    %710 = vmatpush1.xpose.msra.mxu0 0.0
    %711 = vmatprep.subr.mxu0 0.0
    %712 = vmatpush1.xpose.msra.mxu0 0.0
    %713 = vmatprep.subr.mxu0 0.0
    %714 = vmatpush1.xpose.msra.mxu0 0.0
    %715 = vmatprep.subr.mxu0 0.0
    %716 = vmatpush1.xpose.msra.mxu0 0.0
    %717 = vmatprep.subr.mxu0 0.0
    %718 = vmatpush1.xpose.msra.mxu0 0.0
    %719 = vmatprep.subr.mxu0 0.0
    %720 = vmatpush1.xpose.msra.mxu0 0.0
    %721 = vmatprep.subr.mxu0 0.0
    %722 = vmatpush1.xpose.msra.mxu0 0.0
    %723 = vmatprep.subr.mxu0 0.0
    %724 = vmatpush1.xpose.msra.mxu0 0.0
    %725 = vmatprep.subr.mxu0 0.0
    %726 = vmatpush1.xpose.msra.mxu0 0.0
    %727 = vmatprep.subr.mxu0 0.0
    %728 = vmatpush1.xpose.msra.mxu0 0.0
    %729 = vmatprep.subr.mxu0 0.0
    %730 = vmatpush1.xpose.msra.mxu0 0.0
    %731 = vmatprep.subr.mxu0 0.0
    %732 = vmatpush1.xpose.msra.mxu0 0.0
    %733 = vmatprep.subr.mxu0 0.0
    %734 = vmatpush1.xpose.msra.mxu0 0.0
    %735 = vmatprep.subr.mxu0 0.0
    %736 = vmatpush1.xpose.msra.mxu0 0.0
    %737 = vmatprep.subr.mxu0 0.0
    %738 = vmatpush1.xpose.msra.mxu0 0.0
    %739 = vmatprep.subr.mxu0 0.0
    %740 = vmatpush1.xpose.msra.mxu0 0.0
    %741 = vmatprep.subr.mxu0 0.0
    %742 = vmatpush1.xpose.msra.mxu0 0.0
    %743 = vmatprep.subr.mxu0 0.0
    %744 = vmatpush1.xpose.msra.mxu0 0.0
    %745 = vmatprep.subr.mxu0 0.0
    %746 = vmatpush1.xpose.msra.mxu0 0.0
    %747 = vmatprep.subr.mxu0 0.0
    %748 = vmatpush1.xpose.msra.mxu0 0.0
    %749 = vmatprep.subr.mxu0 0.0
    %750 = vmatpush1.xpose.msra.mxu0 0.0
    %751 = vmatprep.subr.mxu0 0.0
    %752 = vmatpush1.xpose.msra.mxu0 0.0
    %753 = vmatprep.subr.mxu0 0.0
    %754 = vmatpush1.xpose.msra.mxu0 0.0
    %755 = vmatprep.subr.mxu0 0.0
    %756 = vmatpush1.xpose.msra.mxu0 0.0
    %757 = vmatprep.subr.mxu0 0.0
    %758 = vmatpush1.xpose.msra.mxu0 0.0
    %759 = vmatprep.mubr.f32.mxu0 0.0
    %760 = vmatmul.mubr.f32.gmra.mrb[0].mxu0 %v676
    %v761 = vpop.f32.mrb[0].mxu0
    %v762 = vadd.f32 %v25, %v761
    %v763 = vpop.f32.mrb[0].mxu0
    %764 = vmatprep.mubr.f32.mxu0 0.0
    %765 = vmatmul.mubr.f32.gmra.mrb[0].mxu0 %v679
    %v766 = vpop.f32.mrb[0].mxu0
    %v767 = vadd.f32 %v26, %v766
    %v768 = vpop.f32.mrb[0].mxu0
    %769 = vmatprep.mubr.f32.mxu0 0.0
    %770 = vmatmul.mubr.f32.gmra.mrb[0].mxu0 %v682
    %v771 = vpop.f32.mrb[0].mxu0
    %v772 = vadd.f32 %v27, %v771
    %v773 = vpop.f32.mrb[0].mxu0
    %774 = vmatprep.mubr.f32.mxu0 0.0
    %775 = vmatmul.mubr.f32.gmra.mrb[0].mxu0 %v685
    %v776 = vpop.f32.mrb[0].mxu0
    %v777 = vadd.f32 %v28, %v776
    %v778 = vpop.f32.mrb[0].mxu0
    %779 = vdwg.mxu0
    %v780 = vsel %vm561, %v762, -inf
    %781 = vmax.xlane.f32.xlu0 %v780
    %v782 = vpop.xlane.xlu0 %781
    %v783 = vsel %vm561, %v767, -inf
    %784 = vmax.xlane.f32.xlu0 %v783
    %v785 = vpop.xlane.xlu0 %784
    %v786 = vsel %vm561, %v772, -inf
    %787 = vmax.xlane.f32.xlu0 %v786
    %v788 = vpop.xlane.xlu0 %787
    %v789 = vsel %vm561, %v777, -inf
    %790 = vmax.xlane.f32.xlu0 %v789
    %v791 = vpop.xlane.xlu0 %790
    %v792 = vsub.f32 %v762, %v782
    %v793 = vsub.f32 %v767, %v785
    %v794 = vsub.f32 %v772, %v788
    %v795 = vsub.f32 %v777, %v791
    %796 = vrot.lane.b32.xlu0 %v659, 120
    %v797 = vpop.permute.xlu0 %796
    %798 = vrot.lane.b32.xlu0 %v660, 120
    %v799 = vpop.permute.xlu0 %798
    %800 = vrot.lane.b32.xlu0 %v661, 120
    %v801 = vpop.permute.xlu0 %800
    %802 = vrot.lane.b32.xlu0 %v662, 120
    %v803 = vpop.permute.xlu0 %802
    %804 = vrot.lane.b32.xlu0 %v641, 88
    %v805 = vpop.permute.xlu0 %804
    %806 = vrot.lane.b32.xlu0 %v646, 88
    %v807 = vpop.permute.xlu0 %806
    %808 = vrot.lane.b32.xlu0 %v651, 88
    %v809 = vpop.permute.xlu0 %808
    %810 = vrot.lane.b32.xlu0 %v656, 88
    %v811 = vpop.permute.xlu0 %810
    %v812 = vsel %vm49, %v797, 0
    %v814 = vsel %vm49, %v799, 0
    %v816 = vsel %vm49, %v801, 0
    %v818 = vsel %vm49, %v803, 0
    %v820 = vsel %vm49, %v805, 0
    %v822 = vsel %vm49, %v807, 0
    %v824 = vsel %vm49, %v809, 0
    %v826 = vsel %vm49, %v811, 0
    %828 = vmatprep.subr.mxu0 0.0
    %829 = vmatpush1.xpose.msra.mxu0 %v820
    %830 = vmatprep.subr.mxu0 0.0
    %831 = vmatpush1.xpose.msra.mxu0 %v822
    %832 = vmatprep.subr.mxu0 0.0
    %833 = vmatpush1.xpose.msra.mxu0 %v824
    %834 = vmatprep.subr.mxu0 0.0
    %835 = vmatpush1.xpose.msra.mxu0 %v826
    %836 = vmatprep.subr.mxu0 0.0
    %837 = vmatpush1.xpose.msra.mxu0 0.0
    %838 = vmatprep.subr.mxu0 0.0
    %839 = vmatpush1.xpose.msra.mxu0 0.0
    %840 = vmatprep.subr.mxu0 0.0
    %841 = vmatpush1.xpose.msra.mxu0 0.0
    %842 = vmatprep.subr.mxu0 0.0
    %843 = vmatpush1.xpose.msra.mxu0 0.0
    %844 = vmatprep.subr.mxu0 0.0
    %845 = vmatpush1.xpose.msra.mxu0 0.0
    %846 = vmatprep.subr.mxu0 0.0
    %847 = vmatpush1.xpose.msra.mxu0 0.0
    %848 = vmatprep.subr.mxu0 0.0
    %849 = vmatpush1.xpose.msra.mxu0 0.0
    %850 = vmatprep.subr.mxu0 0.0
    %851 = vmatpush1.xpose.msra.mxu0 0.0
    %852 = vmatprep.subr.mxu0 0.0
    %853 = vmatpush1.xpose.msra.mxu0 0.0
    %854 = vmatprep.subr.mxu0 0.0
    %855 = vmatpush1.xpose.msra.mxu0 0.0
    %856 = vmatprep.subr.mxu0 0.0
    %857 = vmatpush1.xpose.msra.mxu0 0.0
    %858 = vmatprep.subr.mxu0 0.0
    %859 = vmatpush1.xpose.msra.mxu0 0.0
    %860 = vmatprep.subr.mxu0 0.0
    %861 = vmatpush1.xpose.msra.mxu0 0.0
    %862 = vmatprep.subr.mxu0 0.0
    %863 = vmatpush1.xpose.msra.mxu0 0.0
    %864 = vmatprep.subr.mxu0 0.0
    %865 = vmatpush1.xpose.msra.mxu0 0.0
    %866 = vmatprep.subr.mxu0 0.0
    %867 = vmatpush1.xpose.msra.mxu0 0.0
    %868 = vmatprep.subr.mxu0 0.0
    %869 = vmatpush1.xpose.msra.mxu0 0.0
    %870 = vmatprep.subr.mxu0 0.0
    %871 = vmatpush1.xpose.msra.mxu0 0.0
    %872 = vmatprep.subr.mxu0 0.0
    %873 = vmatpush1.xpose.msra.mxu0 0.0
    %874 = vmatprep.subr.mxu0 0.0
    %875 = vmatpush1.xpose.msra.mxu0 0.0
    %876 = vmatprep.subr.mxu0 0.0
    %877 = vmatpush1.xpose.msra.mxu0 0.0
    %878 = vmatprep.subr.mxu0 0.0
    %879 = vmatpush1.xpose.msra.mxu0 0.0
    %880 = vmatprep.subr.mxu0 0.0
    %881 = vmatpush1.xpose.msra.mxu0 0.0
    %882 = vmatprep.subr.mxu0 0.0
    %883 = vmatpush1.xpose.msra.mxu0 0.0
    %884 = vmatprep.subr.mxu0 0.0
    %885 = vmatpush1.xpose.msra.mxu0 0.0
    %886 = vmatprep.subr.mxu0 0.0
    %887 = vmatpush1.xpose.msra.mxu0 0.0
    %888 = vmatprep.subr.mxu0 0.0
    %889 = vmatpush1.xpose.msra.mxu0 0.0
    %890 = vmatprep.subr.mxu0 0.0
    %891 = vmatpush1.xpose.msra.mxu0 0.0
    %892 = vmatprep.mubr.f32.mxu0 0.0
    %893 = vmatmul.mubr.f32.gmra.mrb[0].mxu0 %v812
    %v894 = vpop.f32.mrb[0].mxu0
    %v895 = vadd.f32 %v25, %v894
    %v896 = vpop.f32.mrb[0].mxu0
    %897 = vmatprep.mubr.f32.mxu0 0.0
    %898 = vmatmul.mubr.f32.gmra.mrb[0].mxu0 %v814
    %v899 = vpop.f32.mrb[0].mxu0
    %v900 = vadd.f32 %v26, %v899
    %v901 = vpop.f32.mrb[0].mxu0
    %902 = vmatprep.mubr.f32.mxu0 0.0
    %903 = vmatmul.mubr.f32.gmra.mrb[0].mxu0 %v816
    %v904 = vpop.f32.mrb[0].mxu0
    %v905 = vadd.f32 %v27, %v904
    %v906 = vpop.f32.mrb[0].mxu0
    %907 = vmatprep.mubr.f32.mxu0 0.0
    %908 = vmatmul.mubr.f32.gmra.mrb[0].mxu0 %v818
    %v909 = vpop.f32.mrb[0].mxu0
    %v910 = vadd.f32 %v28, %v909
    %v911 = vpop.f32.mrb[0].mxu0
    %912 = vdwg.mxu0
    %v913 = vsel %vm561, %v895, -inf
    %914 = vmax.xlane.f32.xlu0 %v913
    %v915 = vpop.xlane.xlu0 %914
    %v916 = vsel %vm561, %v900, -inf
    %917 = vmax.xlane.f32.xlu0 %v916
    %v918 = vpop.xlane.xlu0 %917
    %v919 = vsel %vm561, %v905, -inf
    %920 = vmax.xlane.f32.xlu0 %v919
    %v921 = vpop.xlane.xlu0 %920
    %v922 = vsel %vm561, %v910, -inf
    %923 = vmax.xlane.f32.xlu0 %v922
    %v924 = vpop.xlane.xlu0 %923
    %v925 = vsub.f32 %v895, %v915
    %v926 = vsub.f32 %v900, %v918
    %v927 = vsub.f32 %v905, %v921
    %v928 = vsub.f32 %v910, %v924
    %929 = vrot.lane.b32.xlu0 %v659, 112
    %v930 = vpop.permute.xlu0 %929
    %931 = vrot.lane.b32.xlu0 %v660, 112
    %v932 = vpop.permute.xlu0 %931
    %933 = vrot.lane.b32.xlu0 %v661, 112
    %v934 = vpop.permute.xlu0 %933
    %935 = vrot.lane.b32.xlu0 %v662, 112
    %v936 = vpop.permute.xlu0 %935
    %937 = vrot.lane.b32.xlu0 %v641, 80
    %v938 = vpop.permute.xlu0 %937
    %939 = vrot.lane.b32.xlu0 %v646, 80
    %v940 = vpop.permute.xlu0 %939
    %941 = vrot.lane.b32.xlu0 %v651, 80
    %v942 = vpop.permute.xlu0 %941
    %943 = vrot.lane.b32.xlu0 %v656, 80
    %v944 = vpop.permute.xlu0 %943
    %v945 = vsel %vm49, %v930, 0
    %v947 = vsel %vm49, %v932, 0
    %v949 = vsel %vm49, %v934, 0
    %v951 = vsel %vm49, %v936, 0
    %v953 = vsel %vm49, %v938, 0
    %v955 = vsel %vm49, %v940, 0
    %v957 = vsel %vm49, %v942, 0
    %v959 = vsel %vm49, %v944, 0
    %961 = vmatprep.subr.mxu0 0.0
    %962 = vmatpush1.xpose.msra.mxu0 %v953
    %963 = vmatprep.subr.mxu0 0.0
    %964 = vmatpush1.xpose.msra.mxu0 %v955
    %965 = vmatprep.subr.mxu0 0.0
    %966 = vmatpush1.xpose.msra.mxu0 %v957
    %967 = vmatprep.subr.mxu0 0.0
    %968 = vmatpush1.xpose.msra.mxu0 %v959
    %969 = vmatprep.subr.mxu0 0.0
    %970 = vmatpush1.xpose.msra.mxu0 0.0
    %971 = vmatprep.subr.mxu0 0.0
    %972 = vmatpush1.xpose.msra.mxu0 0.0
    %973 = vmatprep.subr.mxu0 0.0
    %974 = vmatpush1.xpose.msra.mxu0 0.0
    %975 = vmatprep.subr.mxu0 0.0
    %976 = vmatpush1.xpose.msra.mxu0 0.0
    %977 = vmatprep.subr.mxu0 0.0
    %978 = vmatpush1.xpose.msra.mxu0 0.0
    %979 = vmatprep.subr.mxu0 0.0
    %980 = vmatpush1.xpose.msra.mxu0 0.0
    %981 = vmatprep.subr.mxu0 0.0
    %982 = vmatpush1.xpose.msra.mxu0 0.0
    %983 = vmatprep.subr.mxu0 0.0
    %984 = vmatpush1.xpose.msra.mxu0 0.0
    %985 = vmatprep.subr.mxu0 0.0
    %986 = vmatpush1.xpose.msra.mxu0 0.0
    %987 = vmatprep.subr.mxu0 0.0
    %988 = vmatpush1.xpose.msra.mxu0 0.0
    %989 = vmatprep.subr.mxu0 0.0
    %990 = vmatpush1.xpose.msra.mxu0 0.0
    %991 = vmatprep.subr.mxu0 0.0
    %992 = vmatpush1.xpose.msra.mxu0 0.0
    %993 = vmatprep.subr.mxu0 0.0
    %994 = vmatpush1.xpose.msra.mxu0 0.0
    %995 = vmatprep.subr.mxu0 0.0
    %996 = vmatpush1.xpose.msra.mxu0 0.0
    %997 = vmatprep.subr.mxu0 0.0
    %998 = vmatpush1.xpose.msra.mxu0 0.0
    %999 = vmatprep.subr.mxu0 0.0
    %1000 = vmatpush1.xpose.msra.mxu0 0.0
    %1001 = vmatprep.subr.mxu0 0.0
    %1002 = vmatpush1.xpose.msra.mxu0 0.0
    %1003 = vmatprep.subr.mxu0 0.0
    %1004 = vmatpush1.xpose.msra.mxu0 0.0
    %1005 = vmatprep.subr.mxu0 0.0
    %1006 = vmatpush1.xpose.msra.mxu0 0.0
    %1007 = vmatprep.subr.mxu0 0.0
    %1008 = vmatpush1.xpose.msra.mxu0 0.0
    %1009 = vmatprep.subr.mxu0 0.0
    %1010 = vmatpush1.xpose.msra.mxu0 0.0
    %1011 = vmatprep.subr.mxu0 0.0
    %1012 = vmatpush1.xpose.msra.mxu0 0.0
    %1013 = vmatprep.subr.mxu0 0.0
    %1014 = vmatpush1.xpose.msra.mxu0 0.0
    %1015 = vmatprep.subr.mxu0 0.0
    %1016 = vmatpush1.xpose.msra.mxu0 0.0
    %1017 = vmatprep.subr.mxu0 0.0
    %1018 = vmatpush1.xpose.msra.mxu0 0.0
    %1019 = vmatprep.subr.mxu0 0.0
    %1020 = vmatpush1.xpose.msra.mxu0 0.0
    %1021 = vmatprep.subr.mxu0 0.0
    %1022 = vmatpush1.xpose.msra.mxu0 0.0
    %1023 = vmatprep.subr.mxu0 0.0
    %1024 = vmatpush1.xpose.msra.mxu0 0.0
    %1025 = vmatprep.mubr.f32.mxu0 0.0
    %1026 = vmatmul.mubr.f32.gmra.mrb[0].mxu0 %v945
    %v1027 = vpop.f32.mrb[0].mxu0
    %v1028 = vadd.f32 %v25, %v1027
    %v1029 = vpop.f32.mrb[0].mxu0
    %1030 = vmatprep.mubr.f32.mxu0 0.0
    %1031 = vmatmul.mubr.f32.gmra.mrb[0].mxu0 %v947
    %v1032 = vpop.f32.mrb[0].mxu0
    %v1033 = vadd.f32 %v26, %v1032
    %v1034 = vpop.f32.mrb[0].mxu0
    %1035 = vmatprep.mubr.f32.mxu0 0.0
    %1036 = vmatmul.mubr.f32.gmra.mrb[0].mxu0 %v949
    %v1037 = vpop.f32.mrb[0].mxu0
    %v1038 = vadd.f32 %v27, %v1037
    %v1039 = vpop.f32.mrb[0].mxu0
    %1040 = vmatprep.mubr.f32.mxu0 0.0
    %1041 = vmatmul.mubr.f32.gmra.mrb[0].mxu0 %v951
    %v1042 = vpop.f32.mrb[0].mxu0
    %v1043 = vadd.f32 %v28, %v1042
    %v1044 = vpop.f32.mrb[0].mxu0
    %1045 = vdwg.mxu0
    %v1046 = vsel %vm561, %v1028, -inf
    %1047 = vmax.xlane.f32.xlu0 %v1046
    %v1048 = vpop.xlane.xlu0 %1047
    %v1049 = vsel %vm561, %v1033, -inf
    %1050 = vmax.xlane.f32.xlu0 %v1049
    %v1051 = vpop.xlane.xlu0 %1050
    %v1052 = vsel %vm561, %v1038, -inf
    %1053 = vmax.xlane.f32.xlu0 %v1052
    %v1054 = vpop.xlane.xlu0 %1053
    %v1055 = vsel %vm561, %v1043, -inf
    %1056 = vmax.xlane.f32.xlu0 %v1055
    %v1057 = vpop.xlane.xlu0 %1056
    %v1058 = vsub.f32 %v1028, %v1048
    %v1059 = vsub.f32 %v1033, %v1051
    %v1060 = vsub.f32 %v1038, %v1054
    %v1061 = vsub.f32 %v1043, %v1057
    %1062 = vrot.lane.b32.xlu0 %v659, 104
    %v1063 = vpop.permute.xlu0 %1062
    %1064 = vrot.lane.b32.xlu0 %v660, 104
    %v1065 = vpop.permute.xlu0 %1064
    %1066 = vrot.lane.b32.xlu0 %v661, 104
    %v1067 = vpop.permute.xlu0 %1066
    %1068 = vrot.lane.b32.xlu0 %v662, 104
    %v1069 = vpop.permute.xlu0 %1068
    %1070 = vrot.lane.b32.xlu0 %v641, 72
    %v1071 = vpop.permute.xlu0 %1070
    %1072 = vrot.lane.b32.xlu0 %v646, 72
    %v1073 = vpop.permute.xlu0 %1072
    %1074 = vrot.lane.b32.xlu0 %v651, 72
    %v1075 = vpop.permute.xlu0 %1074
    %1076 = vrot.lane.b32.xlu0 %v656, 72
    %v1077 = vpop.permute.xlu0 %1076
    %v1078 = vsel %vm49, %v1063, 0
    %v1080 = vsel %vm49, %v1065, 0
    %v1082 = vsel %vm49, %v1067, 0
    %v1084 = vsel %vm49, %v1069, 0
    %v1086 = vsel %vm49, %v1071, 0
    %v1088 = vsel %vm49, %v1073, 0
    %v1090 = vsel %vm49, %v1075, 0
    %v1092 = vsel %vm49, %v1077, 0
    %1094 = vmatprep.subr.mxu0 0.0
    %1095 = vmatpush1.xpose.msra.mxu0 %v1086
    %1096 = vmatprep.subr.mxu0 0.0
    %1097 = vmatpush1.xpose.msra.mxu0 %v1088
    %1098 = vmatprep.subr.mxu0 0.0
    %1099 = vmatpush1.xpose.msra.mxu0 %v1090
    %1100 = vmatprep.subr.mxu0 0.0
    %1101 = vmatpush1.xpose.msra.mxu0 %v1092
    %1102 = vmatprep.subr.mxu0 0.0
    %1103 = vmatpush1.xpose.msra.mxu0 0.0
    %1104 = vmatprep.subr.mxu0 0.0
    %1105 = vmatpush1.xpose.msra.mxu0 0.0
    %1106 = vmatprep.subr.mxu0 0.0
    %1107 = vmatpush1.xpose.msra.mxu0 0.0
    %1108 = vmatprep.subr.mxu0 0.0
    %1109 = vmatpush1.xpose.msra.mxu0 0.0
    %1110 = vmatprep.subr.mxu0 0.0
    %1111 = vmatpush1.xpose.msra.mxu0 0.0
    %1112 = vmatprep.subr.mxu0 0.0
    %1113 = vmatpush1.xpose.msra.mxu0 0.0
    %1114 = vmatprep.subr.mxu0 0.0
    %1115 = vmatpush1.xpose.msra.mxu0 0.0
    %1116 = vmatprep.subr.mxu0 0.0
    %1117 = vmatpush1.xpose.msra.mxu0 0.0
    %1118 = vmatprep.subr.mxu0 0.0
    %1119 = vmatpush1.xpose.msra.mxu0 0.0
    %1120 = vmatprep.subr.mxu0 0.0
    %1121 = vmatpush1.xpose.msra.mxu0 0.0
    %1122 = vmatprep.subr.mxu0 0.0
    %1123 = vmatpush1.xpose.msra.mxu0 0.0
    %1124 = vmatprep.subr.mxu0 0.0
    %1125 = vmatpush1.xpose.msra.mxu0 0.0
    %1126 = vmatprep.subr.mxu0 0.0
    %1127 = vmatpush1.xpose.msra.mxu0 0.0
    %1128 = vmatprep.subr.mxu0 0.0
    %1129 = vmatpush1.xpose.msra.mxu0 0.0
    %1130 = vmatprep.subr.mxu0 0.0
    %1131 = vmatpush1.xpose.msra.mxu0 0.0
    %1132 = vmatprep.subr.mxu0 0.0
    %1133 = vmatpush1.xpose.msra.mxu0 0.0
    %1134 = vmatprep.subr.mxu0 0.0
    %1135 = vmatpush1.xpose.msra.mxu0 0.0
    %1136 = vmatprep.subr.mxu0 0.0
    %1137 = vmatpush1.xpose.msra.mxu0 0.0
    %1138 = vmatprep.subr.mxu0 0.0
    %1139 = vmatpush1.xpose.msra.mxu0 0.0
    %1140 = vmatprep.subr.mxu0 0.0
    %1141 = vmatpush1.xpose.msra.mxu0 0.0
    %1142 = vmatprep.subr.mxu0 0.0
    %1143 = vmatpush1.xpose.msra.mxu0 0.0
    %1144 = vmatprep.subr.mxu0 0.0
    %1145 = vmatpush1.xpose.msra.mxu0 0.0
    %1146 = vmatprep.subr.mxu0 0.0
    %1147 = vmatpush1.xpose.msra.mxu0 0.0
    %1148 = vmatprep.subr.mxu0 0.0
    %1149 = vmatpush1.xpose.msra.mxu0 0.0
    %1150 = vmatprep.subr.mxu0 0.0
    %1151 = vmatpush1.xpose.msra.mxu0 0.0
    %1152 = vmatprep.subr.mxu0 0.0
    %1153 = vmatpush1.xpose.msra.mxu0 0.0
    %1154 = vmatprep.subr.mxu0 0.0
    %1155 = vmatpush1.xpose.msra.mxu0 0.0
    %1156 = vmatprep.subr.mxu0 0.0
    %1157 = vmatpush1.xpose.msra.mxu0 0.0
    %1158 = vmatprep.mubr.f32.mxu0 0.0
    %1159 = vmatmul.mubr.f32.gmra.mrb[0].mxu0 %v1078
    %v1160 = vpop.f32.mrb[0].mxu0
    %v1161 = vadd.f32 %v25, %v1160
    %v1162 = vpop.f32.mrb[0].mxu0
    %1163 = vmatprep.mubr.f32.mxu0 0.0
    %1164 = vmatmul.mubr.f32.gmra.mrb[0].mxu0 %v1080
    %v1165 = vpop.f32.mrb[0].mxu0
    %v1166 = vadd.f32 %v26, %v1165
    %v1167 = vpop.f32.mrb[0].mxu0
    %1168 = vmatprep.mubr.f32.mxu0 0.0
    %1169 = vmatmul.mubr.f32.gmra.mrb[0].mxu0 %v1082
    %v1170 = vpop.f32.mrb[0].mxu0
    %v1171 = vadd.f32 %v27, %v1170
    %v1172 = vpop.f32.mrb[0].mxu0
    %1173 = vmatprep.mubr.f32.mxu0 0.0
    %1174 = vmatmul.mubr.f32.gmra.mrb[0].mxu0 %v1084
    %v1175 = vpop.f32.mrb[0].mxu0
    %v1176 = vadd.f32 %v28, %v1175
    %v1177 = vpop.f32.mrb[0].mxu0
    %1178 = vdwg.mxu0
    %v1179 = vsel %vm561, %v1161, -inf
    %1180 = vmax.xlane.f32.xlu0 %v1179
    %v1181 = vpop.xlane.xlu0 %1180
    %v1182 = vsel %vm561, %v1166, -inf
    %1183 = vmax.xlane.f32.xlu0 %v1182
    %v1184 = vpop.xlane.xlu0 %1183
    %v1185 = vsel %vm561, %v1171, -inf
    %1186 = vmax.xlane.f32.xlu0 %v1185
    %v1187 = vpop.xlane.xlu0 %1186
    %v1188 = vsel %vm561, %v1176, -inf
    %1189 = vmax.xlane.f32.xlu0 %v1188
    %v1190 = vpop.xlane.xlu0 %1189
    %v1191 = vsub.f32 %v1161, %v1181
    %v1192 = vsub.f32 %v1166, %v1184
    %v1193 = vsub.f32 %v1171, %v1187
    %v1194 = vsub.f32 %v1176, %v1190
    %1199 = vrot.lane.b32.xlu0 %v925, 32
    %v1200 = vpop.permute.xlu0 %1199
    %1201 = vrot.lane.b32.xlu0 %v926, 32
    %v1202 = vpop.permute.xlu0 %1201
    %1203 = vrot.lane.b32.xlu0 %v927, 32
    %v1204 = vpop.permute.xlu0 %1203
    %1205 = vrot.lane.b32.xlu0 %v928, 32
    %v1206 = vpop.permute.xlu0 %1205
    %1215 = vrot.lane.b32.xlu0 %v1058, 64
    %v1216 = vpop.permute.xlu0 %1215
    %1217 = vrot.lane.b32.xlu0 %v1059, 64
    %v1218 = vpop.permute.xlu0 %1217
    %1219 = vrot.lane.b32.xlu0 %v1060, 64
    %v1220 = vpop.permute.xlu0 %1219
    %1221 = vrot.lane.b32.xlu0 %v1061, 64
    %v1222 = vpop.permute.xlu0 %1221
    %1231 = vrot.lane.b32.xlu0 %v1191, 96
    %v1232 = vpop.permute.xlu0 %1231
    %1233 = vrot.lane.b32.xlu0 %v1192, 96
    %v1234 = vpop.permute.xlu0 %1233
    %1235 = vrot.lane.b32.xlu0 %v1193, 96
    %v1236 = vpop.permute.xlu0 %1235
    %1237 = vrot.lane.b32.xlu0 %v1194, 96
    %v1238 = vpop.permute.xlu0 %1237
    %v1243 = vsel %vm561, %v792, %v1200
    %v1244 = vsel %vm561, %v793, %v1202
    %v1245 = vsel %vm561, %v794, %v1204
    %v1246 = vsel %vm561, %v795, %v1206
    %vm1247 = vcmask 523264
    %v1248 = vsel %vm1247, %v1243, %v1216
    %v1249 = vsel %vm1247, %v1244, %v1218
    %v1250 = vsel %vm1247, %v1245, %v1220
    %v1251 = vsel %vm1247, %v1246, %v1222
    %vm1252 = vcmask 785408
    %v1253 = vsel %vm1252, %v1248, %v1232
    %v1254 = vsel %vm1252, %v1249, %v1234
    %v1255 = vsel %vm1252, %v1250, %v1236
    %v1256 = vsel %vm1252, %v1251, %v1238
    %v1257 = vmul.f32 %v1253, 1.442695
    %v1258 = vpow.pop %v1257
    %v1259 = vmul.f32 %v1254, 1.442695
    %v1260 = vpow.pop %v1259
    %v1261 = vmul.f32 %v1255, 1.442695
    %v1262 = vpow.pop %v1261
    %v1263 = vmul.f32 %v1256, 1.442695
    %v1264 = vpow.pop %v1263
    %1265 = vmatprep.subr.mxu0 0.0
    %1266 = vmatpush1.msra.mxu0 %v29
    %1267 = vmatprep.subr.mxu0 0.0
    %1268 = vmatpush1.msra.mxu0 %v30
    %1269 = vmatprep.subr.mxu0 0.0
    %1270 = vmatpush1.msra.mxu0 %v31
    %1271 = vmatprep.subr.mxu0 0.0
    %1272 = vmatpush1.msra.mxu0 %v32
    %1273 = vmatprep.subr.mxu0 0.0
    %1274 = vmatpush1.msra.mxu0 %v33
    %1275 = vmatprep.subr.mxu0 0.0
    %1276 = vmatpush1.msra.mxu0 %v34
    %1277 = vmatprep.subr.mxu0 0.0
    %1278 = vmatpush1.msra.mxu0 %v35
    %1279 = vmatprep.subr.mxu0 0.0
    %1280 = vmatpush1.msra.mxu0 %v36
    %1281 = vmatprep.subr.mxu0 0.0
    %1282 = vmatpush1.msra.mxu0 %v37
    %1283 = vmatprep.subr.mxu0 0.0
    %1284 = vmatpush1.msra.mxu0 %v38
    %1285 = vmatprep.subr.mxu0 0.0
    %1286 = vmatpush1.msra.mxu0 %v39
    %1287 = vmatprep.subr.mxu0 0.0
    %1288 = vmatpush1.msra.mxu0 %v40
    %1289 = vmatprep.subr.mxu0 0.0
    %1290 = vmatpush1.msra.mxu0 %v41
    %1291 = vmatprep.subr.mxu0 0.0
    %1292 = vmatpush1.msra.mxu0 %v42
    %1293 = vmatprep.subr.mxu0 0.0
    %1294 = vmatpush1.msra.mxu0 %v43
    %1295 = vmatprep.subr.mxu0 0.0
    %1296 = vmatpush1.msra.mxu0 %v44
    %1297 = vmatprep.subr.mxu0 0.0
    %1298 = vmatpush1.msra.mxu0 0.0
    %1299 = vmatprep.subr.mxu0 0.0
    %1300 = vmatpush1.msra.mxu0 0.0
    %1301 = vmatprep.subr.mxu0 0.0
    %1302 = vmatpush1.msra.mxu0 0.0
    %1303 = vmatprep.subr.mxu0 0.0
    %1304 = vmatpush1.msra.mxu0 0.0
    %1305 = vmatprep.subr.mxu0 0.0
    %1306 = vmatpush1.msra.mxu0 0.0
    %1307 = vmatprep.subr.mxu0 0.0
    %1308 = vmatpush1.msra.mxu0 0.0
    %1309 = vmatprep.subr.mxu0 0.0
    %1310 = vmatpush1.msra.mxu0 0.0
    %1311 = vmatprep.subr.mxu0 0.0
    %1312 = vmatpush1.msra.mxu0 0.0
    %1313 = vmatprep.subr.mxu0 0.0
    %1314 = vmatpush1.msra.mxu0 0.0
    %1315 = vmatprep.subr.mxu0 0.0
    %1316 = vmatpush1.msra.mxu0 0.0
    %1317 = vmatprep.subr.mxu0 0.0
    %1318 = vmatpush1.msra.mxu0 0.0
    %1319 = vmatprep.subr.mxu0 0.0
    %1320 = vmatpush1.msra.mxu0 0.0
    %1321 = vmatprep.subr.mxu0 0.0
    %1322 = vmatpush1.msra.mxu0 0.0
    %1323 = vmatprep.subr.mxu0 0.0
    %1324 = vmatpush1.msra.mxu0 0.0
    %1325 = vmatprep.subr.mxu0 0.0
    %1326 = vmatpush1.msra.mxu0 0.0
    %1327 = vmatprep.subr.mxu0 0.0
    %1328 = vmatpush1.msra.mxu0 0.0
    %1329 = vmatprep.mubr.f32.mxu0 0.0
    %1330 = vmatmul.mubr.f32.gmra.mrb[0].mxu0 %v1258
    %v1331 = vpop.f32.mrb[0].mxu0
    %v1332 = vadd.f32 0.0, %v1331
    %v1333 = vpop.f32.mrb[0].mxu0
    %1334 = vmatprep.mubr.f32.mxu0 0.0
    %1335 = vmatmul.mubr.f32.gmra.mrb[0].mxu0 %v1260
    %v1336 = vpop.f32.mrb[0].mxu0
    %v1337 = vadd.f32 0.0, %v1336
    %v1338 = vpop.f32.mrb[0].mxu0
    %1339 = vmatprep.mubr.f32.mxu0 0.0
    %1340 = vmatmul.mubr.f32.gmra.mrb[0].mxu0 %v1262
    %v1341 = vpop.f32.mrb[0].mxu0
    %v1342 = vadd.f32 0.0, %v1341
    %v1343 = vpop.f32.mrb[0].mxu0
    %1344 = vmatprep.mubr.f32.mxu0 0.0
    %1345 = vmatmul.mubr.f32.gmra.mrb[0].mxu0 %v1264
    %v1346 = vpop.f32.mrb[0].mxu0
    %v1347 = vadd.f32 0.0, %v1346
    %v1348 = vpop.f32.mrb[0].mxu0
    %1349 = vdwg.mxu0
    %v1350 = vrcp.pop %v1332
    %v1351 = vrcp.pop %v1337
    %v1352 = vrcp.pop %v1342
    %v1353 = vrcp.pop %v1347
    %1355 = vset.pattern.permute.xlu0 0
    %1356 = vperm.xlu0 %1355, %v1350
    %v1357 = vpop.permute.xlu0 %1356
    %1360 = vset.pattern.permute.xlu0 0
    %1361 = vperm.xlu0 %1360, %v1351
    %v1362 = vpop.permute.xlu0 %1361
    %1365 = vset.pattern.permute.xlu0 0
    %1366 = vperm.xlu0 %1365, %v1352
    %v1367 = vpop.permute.xlu0 %1366
    %1370 = vset.pattern.permute.xlu0 0
    %1371 = vperm.xlu0 %1370, %v1353
    %v1372 = vpop.permute.xlu0 %1371
    %v1374 = vmul.f32 %v1258, %v1357
    %v1375 = vmul.f32 %v1260, %v1362
    %v1376 = vmul.f32 %v1262, %v1367
    %v1377 = vmul.f32 %v1264, %v1372
    %1378 = vrot.lane.b32.xlu0 %v641, 64
    %v1379 = vpop.permute.xlu0 %1378
    %1380 = vrot.lane.b32.xlu0 %v646, 64
    %v1381 = vpop.permute.xlu0 %1380
    %1382 = vrot.lane.b32.xlu0 %v651, 64
    %v1383 = vpop.permute.xlu0 %1382
    %1384 = vrot.lane.b32.xlu0 %v656, 64
    %v1385 = vpop.permute.xlu0 %1384
    %v1391 = vsel %vm561, %v1374, 0
    %v1394 = vsel %vm561, %v1375, 0
    %v1397 = vsel %vm561, %v1376, 0
    %v1400 = vsel %vm561, %v1377, 0
    %1402 = vmatprep.subr.mxu0 0.0
    %1403 = vmatpush1.msra.mxu0 %v1379
    %1404 = vmatprep.subr.mxu0 0.0
    %1405 = vmatpush1.msra.mxu0 %v1381
    %1406 = vmatprep.subr.mxu0 0.0
    %1407 = vmatpush1.msra.mxu0 %v1383
    %1408 = vmatprep.subr.mxu0 0.0
    %1409 = vmatpush1.msra.mxu0 %v1385
    %1410 = vmatprep.subr.mxu0 0.0
    %1411 = vmatpush1.msra.mxu0 0.0
    %1412 = vmatprep.subr.mxu0 0.0
    %1413 = vmatpush1.msra.mxu0 0.0
    %1414 = vmatprep.subr.mxu0 0.0
    %1415 = vmatpush1.msra.mxu0 0.0
    %1416 = vmatprep.subr.mxu0 0.0
    %1417 = vmatpush1.msra.mxu0 0.0
    %1418 = vmatprep.subr.mxu0 0.0
    %1419 = vmatpush1.msra.mxu0 0.0
    %1420 = vmatprep.subr.mxu0 0.0
    %1421 = vmatpush1.msra.mxu0 0.0
    %1422 = vmatprep.subr.mxu0 0.0
    %1423 = vmatpush1.msra.mxu0 0.0
    %1424 = vmatprep.subr.mxu0 0.0
    %1425 = vmatpush1.msra.mxu0 0.0
    %1426 = vmatprep.subr.mxu0 0.0
    %1427 = vmatpush1.msra.mxu0 0.0
    %1428 = vmatprep.subr.mxu0 0.0
    %1429 = vmatpush1.msra.mxu0 0.0
    %1430 = vmatprep.subr.mxu0 0.0
    %1431 = vmatpush1.msra.mxu0 0.0
    %1432 = vmatprep.subr.mxu0 0.0
    %1433 = vmatpush1.msra.mxu0 0.0
    %1434 = vmatprep.subr.mxu0 0.0
    %1435 = vmatpush1.msra.mxu0 0.0
    %1436 = vmatprep.subr.mxu0 0.0
    %1437 = vmatpush1.msra.mxu0 0.0
    %1438 = vmatprep.subr.mxu0 0.0
    %1439 = vmatpush1.msra.mxu0 0.0
    %1440 = vmatprep.subr.mxu0 0.0
    %1441 = vmatpush1.msra.mxu0 0.0
    %1442 = vmatprep.subr.mxu0 0.0
    %1443 = vmatpush1.msra.mxu0 0.0
    %1444 = vmatprep.subr.mxu0 0.0
    %1445 = vmatpush1.msra.mxu0 0.0
    %1446 = vmatprep.subr.mxu0 0.0
    %1447 = vmatpush1.msra.mxu0 0.0
    %1448 = vmatprep.subr.mxu0 0.0
    %1449 = vmatpush1.msra.mxu0 0.0
    %1450 = vmatprep.subr.mxu0 0.0
    %1451 = vmatpush1.msra.mxu0 0.0
    %1452 = vmatprep.subr.mxu0 0.0
    %1453 = vmatpush1.msra.mxu0 0.0
    %1454 = vmatprep.subr.mxu0 0.0
    %1455 = vmatpush1.msra.mxu0 0.0
    %1456 = vmatprep.subr.mxu0 0.0
    %1457 = vmatpush1.msra.mxu0 0.0
    %1458 = vmatprep.subr.mxu0 0.0
    %1459 = vmatpush1.msra.mxu0 0.0
    %1460 = vmatprep.subr.mxu0 0.0
    %1461 = vmatpush1.msra.mxu0 0.0
    %1462 = vmatprep.subr.mxu0 0.0
    %1463 = vmatpush1.msra.mxu0 0.0
    %1464 = vmatprep.subr.mxu0 0.0
    %1465 = vmatpush1.msra.mxu0 0.0
    %1466 = vmatprep.mubr.f32.mxu0 0.0
    %1467 = vmatmul.mubr.f32.gmra.mrb[0].mxu0 %v1391
    %v1468 = vpop.f32.mrb[0].mxu0
    %v1469 = vadd.f32 0.0, %v1468
    %v1470 = vpop.f32.mrb[0].mxu0
    %1471 = vmatprep.mubr.f32.mxu0 0.0
    %1472 = vmatmul.mubr.f32.gmra.mrb[0].mxu0 %v1394
    %v1473 = vpop.f32.mrb[0].mxu0
    %v1474 = vadd.f32 0.0, %v1473
    %v1475 = vpop.f32.mrb[0].mxu0
    %1476 = vmatprep.mubr.f32.mxu0 0.0
    %1477 = vmatmul.mubr.f32.gmra.mrb[0].mxu0 %v1397
    %v1478 = vpop.f32.mrb[0].mxu0
    %v1479 = vadd.f32 0.0, %v1478
    %v1480 = vpop.f32.mrb[0].mxu0
    %1481 = vmatprep.mubr.f32.mxu0 0.0
    %1482 = vmatmul.mubr.f32.gmra.mrb[0].mxu0 %v1400
    %v1483 = vpop.f32.mrb[0].mxu0
    %v1484 = vadd.f32 0.0, %v1483
    %v1485 = vpop.f32.mrb[0].mxu0
    %1486 = vdwg.mxu0
    %1487 = vset.pattern.permute.xlu0 1
    %1488 = vperm.xlu0 %1487, %v1350
    %v1489 = vpop.permute.xlu0 %1488
    %1491 = vset.pattern.permute.xlu0 1
    %1492 = vperm.xlu0 %1491, %v1351
    %v1493 = vpop.permute.xlu0 %1492
    %1495 = vset.pattern.permute.xlu0 1
    %1496 = vperm.xlu0 %1495, %v1352
    %v1497 = vpop.permute.xlu0 %1496
    %1499 = vset.pattern.permute.xlu0 1
    %1500 = vperm.xlu0 %1499, %v1353
    %v1501 = vpop.permute.xlu0 %1500
    %v1503 = vmul.f32 %v1258, %v1489
    %v1504 = vmul.f32 %v1260, %v1493
    %v1505 = vmul.f32 %v1262, %v1497
    %v1506 = vmul.f32 %v1264, %v1501
    %1511 = vrot.lane.b32.xlu0 %v1503, 96
    %v1512 = vpop.permute.xlu0 %1511
    %1513 = vrot.lane.b32.xlu0 %v1504, 96
    %v1514 = vpop.permute.xlu0 %1513
    %1515 = vrot.lane.b32.xlu0 %v1505, 96
    %v1516 = vpop.permute.xlu0 %1515
    %1517 = vrot.lane.b32.xlu0 %v1506, 96
    %v1518 = vpop.permute.xlu0 %1517
    %1519 = vrot.lane.b32.xlu0 %v641, 56
    %v1520 = vpop.permute.xlu0 %1519
    %1521 = vrot.lane.b32.xlu0 %v646, 56
    %v1522 = vpop.permute.xlu0 %1521
    %1523 = vrot.lane.b32.xlu0 %v651, 56
    %v1524 = vpop.permute.xlu0 %1523
    %1525 = vrot.lane.b32.xlu0 %v656, 56
    %v1526 = vpop.permute.xlu0 %1525
    %v1531 = vsel %vm561, %v1512, 0
    %v1533 = vsel %vm561, %v1514, 0
    %v1535 = vsel %vm561, %v1516, 0
    %v1537 = vsel %vm561, %v1518, 0
    %1539 = vmatprep.subr.mxu0 0.0
    %1540 = vmatpush1.msra.mxu0 %v1520
    %1541 = vmatprep.subr.mxu0 0.0
    %1542 = vmatpush1.msra.mxu0 %v1522
    %1543 = vmatprep.subr.mxu0 0.0
    %1544 = vmatpush1.msra.mxu0 %v1524
    %1545 = vmatprep.subr.mxu0 0.0
    %1546 = vmatpush1.msra.mxu0 %v1526
    %1547 = vmatprep.subr.mxu0 0.0
    %1548 = vmatpush1.msra.mxu0 0.0
    %1549 = vmatprep.subr.mxu0 0.0
    %1550 = vmatpush1.msra.mxu0 0.0
    %1551 = vmatprep.subr.mxu0 0.0
    %1552 = vmatpush1.msra.mxu0 0.0
    %1553 = vmatprep.subr.mxu0 0.0
    %1554 = vmatpush1.msra.mxu0 0.0
    %1555 = vmatprep.subr.mxu0 0.0
    %1556 = vmatpush1.msra.mxu0 0.0
    %1557 = vmatprep.subr.mxu0 0.0
    %1558 = vmatpush1.msra.mxu0 0.0
    %1559 = vmatprep.subr.mxu0 0.0
    %1560 = vmatpush1.msra.mxu0 0.0
    %1561 = vmatprep.subr.mxu0 0.0
    %1562 = vmatpush1.msra.mxu0 0.0
    %1563 = vmatprep.subr.mxu0 0.0
    %1564 = vmatpush1.msra.mxu0 0.0
    %1565 = vmatprep.subr.mxu0 0.0
    %1566 = vmatpush1.msra.mxu0 0.0
    %1567 = vmatprep.subr.mxu0 0.0
    %1568 = vmatpush1.msra.mxu0 0.0
    %1569 = vmatprep.subr.mxu0 0.0
    %1570 = vmatpush1.msra.mxu0 0.0
    %1571 = vmatprep.subr.mxu0 0.0
    %1572 = vmatpush1.msra.mxu0 0.0
    %1573 = vmatprep.subr.mxu0 0.0
    %1574 = vmatpush1.msra.mxu0 0.0
    %1575 = vmatprep.subr.mxu0 0.0
    %1576 = vmatpush1.msra.mxu0 0.0
    %1577 = vmatprep.subr.mxu0 0.0
    %1578 = vmatpush1.msra.mxu0 0.0
    %1579 = vmatprep.subr.mxu0 0.0
    %1580 = vmatpush1.msra.mxu0 0.0
    %1581 = vmatprep.subr.mxu0 0.0
    %1582 = vmatpush1.msra.mxu0 0.0
    %1583 = vmatprep.subr.mxu0 0.0
    %1584 = vmatpush1.msra.mxu0 0.0
    %1585 = vmatprep.subr.mxu0 0.0
    %1586 = vmatpush1.msra.mxu0 0.0
    %1587 = vmatprep.subr.mxu0 0.0
    %1588 = vmatpush1.msra.mxu0 0.0
    %1589 = vmatprep.subr.mxu0 0.0
    %1590 = vmatpush1.msra.mxu0 0.0
    %1591 = vmatprep.subr.mxu0 0.0
    %1592 = vmatpush1.msra.mxu0 0.0
    %1593 = vmatprep.subr.mxu0 0.0
    %1594 = vmatpush1.msra.mxu0 0.0
    %1595 = vmatprep.subr.mxu0 0.0
    %1596 = vmatpush1.msra.mxu0 0.0
    %1597 = vmatprep.subr.mxu0 0.0
    %1598 = vmatpush1.msra.mxu0 0.0
    %1599 = vmatprep.subr.mxu0 0.0
    %1600 = vmatpush1.msra.mxu0 0.0
    %1601 = vmatprep.subr.mxu0 0.0
    %1602 = vmatpush1.msra.mxu0 0.0
    %1603 = vmatprep.mubr.f32.mxu0 0.0
    %1604 = vmatmul.mubr.f32.gmra.mrb[0].mxu0 %v1531
    %v1605 = vpop.f32.mrb[0].mxu0
    %v1606 = vadd.f32 0.0, %v1605
    %v1607 = vpop.f32.mrb[0].mxu0
    %1608 = vmatprep.mubr.f32.mxu0 0.0
    %1609 = vmatmul.mubr.f32.gmra.mrb[0].mxu0 %v1533
    %v1610 = vpop.f32.mrb[0].mxu0
    %v1611 = vadd.f32 0.0, %v1610
    %v1612 = vpop.f32.mrb[0].mxu0
    %1613 = vmatprep.mubr.f32.mxu0 0.0
    %1614 = vmatmul.mubr.f32.gmra.mrb[0].mxu0 %v1535
    %v1615 = vpop.f32.mrb[0].mxu0
    %v1616 = vadd.f32 0.0, %v1615
    %v1617 = vpop.f32.mrb[0].mxu0
    %1618 = vmatprep.mubr.f32.mxu0 0.0
    %1619 = vmatmul.mubr.f32.gmra.mrb[0].mxu0 %v1537
    %v1620 = vpop.f32.mrb[0].mxu0
    %v1621 = vadd.f32 0.0, %v1620
    %v1622 = vpop.f32.mrb[0].mxu0
    %1623 = vdwg.mxu0
    %1624 = vset.pattern.permute.xlu0 2
    %1625 = vperm.xlu0 %1624, %v1350
    %v1626 = vpop.permute.xlu0 %1625
    %1628 = vset.pattern.permute.xlu0 2
    %1629 = vperm.xlu0 %1628, %v1351
    %v1630 = vpop.permute.xlu0 %1629
    %1632 = vset.pattern.permute.xlu0 2
    %1633 = vperm.xlu0 %1632, %v1352
    %v1634 = vpop.permute.xlu0 %1633
    %1636 = vset.pattern.permute.xlu0 2
    %1637 = vperm.xlu0 %1636, %v1353
    %v1638 = vpop.permute.xlu0 %1637
    %v1640 = vmul.f32 %v1258, %v1626
    %v1641 = vmul.f32 %v1260, %v1630
    %v1642 = vmul.f32 %v1262, %v1634
    %v1643 = vmul.f32 %v1264, %v1638
    %1648 = vrot.lane.b32.xlu0 %v1640, 64
    %v1649 = vpop.permute.xlu0 %1648
    %1650 = vrot.lane.b32.xlu0 %v1641, 64
    %v1651 = vpop.permute.xlu0 %1650
    %1652 = vrot.lane.b32.xlu0 %v1642, 64
    %v1653 = vpop.permute.xlu0 %1652
    %1654 = vrot.lane.b32.xlu0 %v1643, 64
    %v1655 = vpop.permute.xlu0 %1654
    %1656 = vrot.lane.b32.xlu0 %v641, 48
    %v1657 = vpop.permute.xlu0 %1656
    %1658 = vrot.lane.b32.xlu0 %v646, 48
    %v1659 = vpop.permute.xlu0 %1658
    %1660 = vrot.lane.b32.xlu0 %v651, 48
    %v1661 = vpop.permute.xlu0 %1660
    %1662 = vrot.lane.b32.xlu0 %v656, 48
    %v1663 = vpop.permute.xlu0 %1662
    %v1668 = vsel %vm561, %v1649, 0
    %v1670 = vsel %vm561, %v1651, 0
    %v1672 = vsel %vm561, %v1653, 0
    %v1674 = vsel %vm561, %v1655, 0
    %1676 = vmatprep.subr.mxu0 0.0
    %1677 = vmatpush1.msra.mxu0 %v1657
    %1678 = vmatprep.subr.mxu0 0.0
    %1679 = vmatpush1.msra.mxu0 %v1659
    %1680 = vmatprep.subr.mxu0 0.0
    %1681 = vmatpush1.msra.mxu0 %v1661
    %1682 = vmatprep.subr.mxu0 0.0
    %1683 = vmatpush1.msra.mxu0 %v1663
    %1684 = vmatprep.subr.mxu0 0.0
    %1685 = vmatpush1.msra.mxu0 0.0
    %1686 = vmatprep.subr.mxu0 0.0
    %1687 = vmatpush1.msra.mxu0 0.0
    %1688 = vmatprep.subr.mxu0 0.0
    %1689 = vmatpush1.msra.mxu0 0.0
    %1690 = vmatprep.subr.mxu0 0.0
    %1691 = vmatpush1.msra.mxu0 0.0
    %1692 = vmatprep.subr.mxu0 0.0
    %1693 = vmatpush1.msra.mxu0 0.0
    %1694 = vmatprep.subr.mxu0 0.0
    %1695 = vmatpush1.msra.mxu0 0.0
    %1696 = vmatprep.subr.mxu0 0.0
    %1697 = vmatpush1.msra.mxu0 0.0
    %1698 = vmatprep.subr.mxu0 0.0
    %1699 = vmatpush1.msra.mxu0 0.0
    %1700 = vmatprep.subr.mxu0 0.0
    %1701 = vmatpush1.msra.mxu0 0.0
    %1702 = vmatprep.subr.mxu0 0.0
    %1703 = vmatpush1.msra.mxu0 0.0
    %1704 = vmatprep.subr.mxu0 0.0
    %1705 = vmatpush1.msra.mxu0 0.0
    %1706 = vmatprep.subr.mxu0 0.0
    %1707 = vmatpush1.msra.mxu0 0.0
    %1708 = vmatprep.subr.mxu0 0.0
    %1709 = vmatpush1.msra.mxu0 0.0
    %1710 = vmatprep.subr.mxu0 0.0
    %1711 = vmatpush1.msra.mxu0 0.0
    %1712 = vmatprep.subr.mxu0 0.0
    %1713 = vmatpush1.msra.mxu0 0.0
    %1714 = vmatprep.subr.mxu0 0.0
    %1715 = vmatpush1.msra.mxu0 0.0
    %1716 = vmatprep.subr.mxu0 0.0
    %1717 = vmatpush1.msra.mxu0 0.0
    %1718 = vmatprep.subr.mxu0 0.0
    %1719 = vmatpush1.msra.mxu0 0.0
    %1720 = vmatprep.subr.mxu0 0.0
    %1721 = vmatpush1.msra.mxu0 0.0
    %1722 = vmatprep.subr.mxu0 0.0
    %1723 = vmatpush1.msra.mxu0 0.0
    %1724 = vmatprep.subr.mxu0 0.0
    %1725 = vmatpush1.msra.mxu0 0.0
    %1726 = vmatprep.subr.mxu0 0.0
    %1727 = vmatpush1.msra.mxu0 0.0
    %1728 = vmatprep.subr.mxu0 0.0
    %1729 = vmatpush1.msra.mxu0 0.0
    %1730 = vmatprep.subr.mxu0 0.0
    %1731 = vmatpush1.msra.mxu0 0.0
    %1732 = vmatprep.subr.mxu0 0.0
    %1733 = vmatpush1.msra.mxu0 0.0
    %1734 = vmatprep.subr.mxu0 0.0
    %1735 = vmatpush1.msra.mxu0 0.0
    %1736 = vmatprep.subr.mxu0 0.0
    %1737 = vmatpush1.msra.mxu0 0.0
    %1738 = vmatprep.subr.mxu0 0.0
    %1739 = vmatpush1.msra.mxu0 0.0
    %1740 = vmatprep.mubr.f32.mxu0 0.0
    %1741 = vmatmul.mubr.f32.gmra.mrb[0].mxu0 %v1668
    %v1742 = vpop.f32.mrb[0].mxu0
    %v1743 = vadd.f32 0.0, %v1742
    %v1744 = vpop.f32.mrb[0].mxu0
    %1745 = vmatprep.mubr.f32.mxu0 0.0
    %1746 = vmatmul.mubr.f32.gmra.mrb[0].mxu0 %v1670
    %v1747 = vpop.f32.mrb[0].mxu0
    %v1748 = vadd.f32 0.0, %v1747
    %v1749 = vpop.f32.mrb[0].mxu0
    %1750 = vmatprep.mubr.f32.mxu0 0.0
    %1751 = vmatmul.mubr.f32.gmra.mrb[0].mxu0 %v1672
    %v1752 = vpop.f32.mrb[0].mxu0
    %v1753 = vadd.f32 0.0, %v1752
    %v1754 = vpop.f32.mrb[0].mxu0
    %1755 = vmatprep.mubr.f32.mxu0 0.0
    %1756 = vmatmul.mubr.f32.gmra.mrb[0].mxu0 %v1674
    %v1757 = vpop.f32.mrb[0].mxu0
    %v1758 = vadd.f32 0.0, %v1757
    %v1759 = vpop.f32.mrb[0].mxu0
    %1760 = vdwg.mxu0
    %1761 = vset.pattern.permute.xlu0 3
    %1762 = vperm.xlu0 %1761, %v1350
    %v1763 = vpop.permute.xlu0 %1762
    %1765 = vset.pattern.permute.xlu0 3
    %1766 = vperm.xlu0 %1765, %v1351
    %v1767 = vpop.permute.xlu0 %1766
    %1769 = vset.pattern.permute.xlu0 3
    %1770 = vperm.xlu0 %1769, %v1352
    %v1771 = vpop.permute.xlu0 %1770
    %1773 = vset.pattern.permute.xlu0 3
    %1774 = vperm.xlu0 %1773, %v1353
    %v1775 = vpop.permute.xlu0 %1774
    %v1777 = vmul.f32 %v1258, %v1763
    %v1778 = vmul.f32 %v1260, %v1767
    %v1779 = vmul.f32 %v1262, %v1771
    %v1780 = vmul.f32 %v1264, %v1775
    %1785 = vrot.lane.b32.xlu0 %v1777, 32
    %v1786 = vpop.permute.xlu0 %1785
    %1787 = vrot.lane.b32.xlu0 %v1778, 32
    %v1788 = vpop.permute.xlu0 %1787
    %1789 = vrot.lane.b32.xlu0 %v1779, 32
    %v1790 = vpop.permute.xlu0 %1789
    %1791 = vrot.lane.b32.xlu0 %v1780, 32
    %v1792 = vpop.permute.xlu0 %1791
    %1793 = vrot.lane.b32.xlu0 %v641, 40
    %v1794 = vpop.permute.xlu0 %1793
    %1795 = vrot.lane.b32.xlu0 %v646, 40
    %v1796 = vpop.permute.xlu0 %1795
    %1797 = vrot.lane.b32.xlu0 %v651, 40
    %v1798 = vpop.permute.xlu0 %1797
    %1799 = vrot.lane.b32.xlu0 %v656, 40
    %v1800 = vpop.permute.xlu0 %1799
    %v1805 = vsel %vm561, %v1786, 0
    %v1807 = vsel %vm561, %v1788, 0
    %v1809 = vsel %vm561, %v1790, 0
    %v1811 = vsel %vm561, %v1792, 0
    %1813 = vmatprep.subr.mxu0 0.0
    %1814 = vmatpush1.msra.mxu0 %v1794
    %1815 = vmatprep.subr.mxu0 0.0
    %1816 = vmatpush1.msra.mxu0 %v1796
    %1817 = vmatprep.subr.mxu0 0.0
    %1818 = vmatpush1.msra.mxu0 %v1798
    %1819 = vmatprep.subr.mxu0 0.0
    %1820 = vmatpush1.msra.mxu0 %v1800
    %1821 = vmatprep.subr.mxu0 0.0
    %1822 = vmatpush1.msra.mxu0 0.0
    %1823 = vmatprep.subr.mxu0 0.0
    %1824 = vmatpush1.msra.mxu0 0.0
    %1825 = vmatprep.subr.mxu0 0.0
    %1826 = vmatpush1.msra.mxu0 0.0
    %1827 = vmatprep.subr.mxu0 0.0
    %1828 = vmatpush1.msra.mxu0 0.0
    %1829 = vmatprep.subr.mxu0 0.0
    %1830 = vmatpush1.msra.mxu0 0.0
    %1831 = vmatprep.subr.mxu0 0.0
    %1832 = vmatpush1.msra.mxu0 0.0
    %1833 = vmatprep.subr.mxu0 0.0
    %1834 = vmatpush1.msra.mxu0 0.0
    %1835 = vmatprep.subr.mxu0 0.0
    %1836 = vmatpush1.msra.mxu0 0.0
    %1837 = vmatprep.subr.mxu0 0.0
    %1838 = vmatpush1.msra.mxu0 0.0
    %1839 = vmatprep.subr.mxu0 0.0
    %1840 = vmatpush1.msra.mxu0 0.0
    %1841 = vmatprep.subr.mxu0 0.0
    %1842 = vmatpush1.msra.mxu0 0.0
    %1843 = vmatprep.subr.mxu0 0.0
    %1844 = vmatpush1.msra.mxu0 0.0
    %1845 = vmatprep.subr.mxu0 0.0
    %1846 = vmatpush1.msra.mxu0 0.0
    %1847 = vmatprep.subr.mxu0 0.0
    %1848 = vmatpush1.msra.mxu0 0.0
    %1849 = vmatprep.subr.mxu0 0.0
    %1850 = vmatpush1.msra.mxu0 0.0
    %1851 = vmatprep.subr.mxu0 0.0
    %1852 = vmatpush1.msra.mxu0 0.0
    %1853 = vmatprep.subr.mxu0 0.0
    %1854 = vmatpush1.msra.mxu0 0.0
    %1855 = vmatprep.subr.mxu0 0.0
    %1856 = vmatpush1.msra.mxu0 0.0
    %1857 = vmatprep.subr.mxu0 0.0
    %1858 = vmatpush1.msra.mxu0 0.0
    %1859 = vmatprep.subr.mxu0 0.0
    %1860 = vmatpush1.msra.mxu0 0.0
    %1861 = vmatprep.subr.mxu0 0.0
    %1862 = vmatpush1.msra.mxu0 0.0
    %1863 = vmatprep.subr.mxu0 0.0
    %1864 = vmatpush1.msra.mxu0 0.0
    %1865 = vmatprep.subr.mxu0 0.0
    %1866 = vmatpush1.msra.mxu0 0.0
    %1867 = vmatprep.subr.mxu0 0.0
    %1868 = vmatpush1.msra.mxu0 0.0
    %1869 = vmatprep.subr.mxu0 0.0
    %1870 = vmatpush1.msra.mxu0 0.0
    %1871 = vmatprep.subr.mxu0 0.0
    %1872 = vmatpush1.msra.mxu0 0.0
    %1873 = vmatprep.subr.mxu0 0.0
    %1874 = vmatpush1.msra.mxu0 0.0
    %1875 = vmatprep.subr.mxu0 0.0
    %1876 = vmatpush1.msra.mxu0 0.0
    %1877 = vmatprep.mubr.f32.mxu0 0.0
    %1878 = vmatmul.mubr.f32.gmra.mrb[0].mxu0 %v1805
    %v1879 = vpop.f32.mrb[0].mxu0
    %v1880 = vadd.f32 0.0, %v1879
    %v1881 = vpop.f32.mrb[0].mxu0
    %1882 = vmatprep.mubr.f32.mxu0 0.0
    %1883 = vmatmul.mubr.f32.gmra.mrb[0].mxu0 %v1807
    %v1884 = vpop.f32.mrb[0].mxu0
    %v1885 = vadd.f32 0.0, %v1884
    %v1886 = vpop.f32.mrb[0].mxu0
    %1887 = vmatprep.mubr.f32.mxu0 0.0
    %1888 = vmatmul.mubr.f32.gmra.mrb[0].mxu0 %v1809
    %v1889 = vpop.f32.mrb[0].mxu0
    %v1890 = vadd.f32 0.0, %v1889
    %v1891 = vpop.f32.mrb[0].mxu0
    %1892 = vmatprep.mubr.f32.mxu0 0.0
    %1893 = vmatmul.mubr.f32.gmra.mrb[0].mxu0 %v1811
    %v1894 = vpop.f32.mrb[0].mxu0
    %v1895 = vadd.f32 0.0, %v1894
    %v1896 = vpop.f32.mrb[0].mxu0
    %1897 = vdwg.mxu0
    %1902 = vrot.lane.b32.xlu0 %v1606, 8
    %v1903 = vpop.permute.xlu0 %1902
    %1904 = vrot.lane.b32.xlu0 %v1611, 8
    %v1905 = vpop.permute.xlu0 %1904
    %1906 = vrot.lane.b32.xlu0 %v1616, 8
    %v1907 = vpop.permute.xlu0 %1906
    %1908 = vrot.lane.b32.xlu0 %v1621, 8
    %v1909 = vpop.permute.xlu0 %1908
    %1918 = vrot.lane.b32.xlu0 %v1743, 16
    %v1919 = vpop.permute.xlu0 %1918
    %1920 = vrot.lane.b32.xlu0 %v1748, 16
    %v1921 = vpop.permute.xlu0 %1920
    %1922 = vrot.lane.b32.xlu0 %v1753, 16
    %v1923 = vpop.permute.xlu0 %1922
    %1924 = vrot.lane.b32.xlu0 %v1758, 16
    %v1925 = vpop.permute.xlu0 %1924
    %1934 = vrot.lane.b32.xlu0 %v1880, 24
    %v1935 = vpop.permute.xlu0 %1934
    %1936 = vrot.lane.b32.xlu0 %v1885, 24
    %v1937 = vpop.permute.xlu0 %1936
    %1938 = vrot.lane.b32.xlu0 %v1890, 24
    %v1939 = vpop.permute.xlu0 %1938
    %1940 = vrot.lane.b32.xlu0 %v1895, 24
    %v1941 = vpop.permute.xlu0 %1940
    %v1946 = vsel %vm49, %v1469, %v1903
    %v1947 = vsel %vm49, %v1474, %v1905
    %v1948 = vsel %vm49, %v1479, %v1907
    %v1949 = vsel %vm49, %v1484, %v1909
    %v1950 = vsel %vm330, %v1946, %v1919
    %v1951 = vsel %vm330, %v1947, %v1921
    %v1952 = vsel %vm330, %v1948, %v1923
    %v1953 = vsel %vm330, %v1949, %v1925
    %v1954 = vsel %vm339, %v1950, %v1935
    %v1955 = vsel %vm339, %v1951, %v1937
    %v1956 = vsel %vm339, %v1952, %v1939
    %v1957 = vsel %vm339, %v1953, %v1941
    %v1958 = vld [vmem:[#allocation3 + $0x90] sm:$0xff]
    %v1959 = vld [vmem:[#allocation3 + $0x98] sm:$0xff]
    %v1960 = vld [vmem:[#allocation3 + $0xa0] sm:$0xff]
    %v1961 = vld [vmem:[#allocation3 + $0xa8] sm:$0xff]
    %v1962 = vld [vmem:[#allocation3 + $0xb0] sm:$0x1]
    %v1963 = vlaneseq
    %v1964 = vshrl.u32 %v1963, 7
    %v1965 = vsub.s32 0, %v1964
    %v1966 = vrot.slane %v1962, %v1965
    %v1968 = vsel %vm561, %v1954, 0
    %v1971 = vsel %vm561, %v1955, 0
    %v1974 = vsel %vm561, %v1956, 0
    %v1977 = vsel %vm561, %v1957, 0
    %1979 = vmatprep.subr.mxu0 0.0
    %1980 = vmatpush1.msra.mxu0 %v1958
    %1981 = vmatprep.subr.mxu0 0.0
    %1982 = vmatpush1.msra.mxu0 %v1959
    %1983 = vmatprep.subr.mxu0 0.0
    %1984 = vmatpush1.msra.mxu0 %v1960
    %1985 = vmatprep.subr.mxu0 0.0
    %1986 = vmatpush1.msra.mxu0 %v1961
    %1987 = vmatprep.subr.mxu0 0.0
    %1988 = vmatpush1.msra.mxu0 0.0
    %1989 = vmatprep.subr.mxu0 0.0
    %1990 = vmatpush1.msra.mxu0 0.0
    %1991 = vmatprep.subr.mxu0 0.0
    %1992 = vmatpush1.msra.mxu0 0.0
    %1993 = vmatprep.subr.mxu0 0.0
    %1994 = vmatpush1.msra.mxu0 0.0
    %1995 = vmatprep.subr.mxu0 0.0
    %1996 = vmatpush1.msra.mxu0 0.0
    %1997 = vmatprep.subr.mxu0 0.0
    %1998 = vmatpush1.msra.mxu0 0.0
    %1999 = vmatprep.subr.mxu0 0.0
    %2000 = vmatpush1.msra.mxu0 0.0
    %2001 = vmatprep.subr.mxu0 0.0
    %2002 = vmatpush1.msra.mxu0 0.0
    %2003 = vmatprep.subr.mxu0 0.0
    %2004 = vmatpush1.msra.mxu0 0.0
    %2005 = vmatprep.subr.mxu0 0.0
    %2006 = vmatpush1.msra.mxu0 0.0
    %2007 = vmatprep.subr.mxu0 0.0
    %2008 = vmatpush1.msra.mxu0 0.0
    %2009 = vmatprep.subr.mxu0 0.0
    %2010 = vmatpush1.msra.mxu0 0.0
    %2011 = vmatprep.subr.mxu0 0.0
    %2012 = vmatpush1.msra.mxu0 0.0
    %2013 = vmatprep.subr.mxu0 0.0
    %2014 = vmatpush1.msra.mxu0 0.0
    %2015 = vmatprep.subr.mxu0 0.0
    %2016 = vmatpush1.msra.mxu0 0.0
    %2017 = vmatprep.subr.mxu0 0.0
    %2018 = vmatpush1.msra.mxu0 0.0
    %2019 = vmatprep.subr.mxu0 0.0
    %2020 = vmatpush1.msra.mxu0 0.0
    %2021 = vmatprep.subr.mxu0 0.0
    %2022 = vmatpush1.msra.mxu0 0.0
    %2023 = vmatprep.subr.mxu0 0.0
    %2024 = vmatpush1.msra.mxu0 0.0
    %2025 = vmatprep.subr.mxu0 0.0
    %2026 = vmatpush1.msra.mxu0 0.0
    %2027 = vmatprep.subr.mxu0 0.0
    %2028 = vmatpush1.msra.mxu0 0.0
    %2029 = vmatprep.subr.mxu0 0.0
    %2030 = vmatpush1.msra.mxu0 0.0
    %2031 = vmatprep.subr.mxu0 0.0
    %2032 = vmatpush1.msra.mxu0 0.0
    %2033 = vmatprep.subr.mxu0 0.0
    %2034 = vmatpush1.msra.mxu0 0.0
    %2035 = vmatprep.subr.mxu0 0.0
    %2036 = vmatpush1.msra.mxu0 0.0
    %2037 = vmatprep.subr.mxu0 0.0
    %2038 = vmatpush1.msra.mxu0 0.0
    %2039 = vmatprep.subr.mxu0 0.0
    %2040 = vmatpush1.msra.mxu0 0.0
    %2041 = vmatprep.subr.mxu0 0.0
    %2042 = vmatpush1.msra.mxu0 0.0
    %2043 = vmatprep.mubr.f32.mxu0 0.0
    %2044 = vmatmul.mubr.f32.gmra.mrb[0].mxu0 %v1968
    %v2045 = vpop.f32.mrb[0].mxu0
    %v2046 = vadd.f32 %v1966, %v2045
    %v2047 = vpop.f32.mrb[0].mxu0
    %2048 = vmatprep.mubr.f32.mxu0 0.0
    %2049 = vmatmul.mubr.f32.gmra.mrb[0].mxu0 %v1971
    %v2050 = vpop.f32.mrb[0].mxu0
    %v2051 = vadd.f32 %v1966, %v2050
    %v2052 = vpop.f32.mrb[0].mxu0
    %2053 = vmatprep.mubr.f32.mxu0 0.0
    %2054 = vmatmul.mubr.f32.gmra.mrb[0].mxu0 %v1974
    %v2055 = vpop.f32.mrb[0].mxu0
    %v2056 = vadd.f32 %v1966, %v2055
    %v2057 = vpop.f32.mrb[0].mxu0
    %2058 = vmatprep.mubr.f32.mxu0 0.0
    %2059 = vmatmul.mubr.f32.gmra.mrb[0].mxu0 %v1977
    %v2060 = vpop.f32.mrb[0].mxu0
    %v2061 = vadd.f32 %v1966, %v2060
    %v2062 = vpop.f32.mrb[0].mxu0
    %2063 = vdwg.mxu0
    %v2064 = vadd.f32 %v548, %v2046
    %v2065 = vadd.f32 %v549, %v2051
    %v2066 = vadd.f32 %v550, %v2056
    %v2067 = vadd.f32 %v551, %v2061
    %v2068 = vld [vmem:[#allocation3 + $0xb8] sm:$0x1]
    %v2069 = vld [vmem:[#allocation3 + $0xc0] sm:$0x1]
    %v2070 = vsel %vm561, %v2064, 0.0
    %2071 = vadd.xlane.f32.xlu0 %v2070
    %v2072 = vpop.xlane.xlu0 %2071
    %v2073 = vsel %vm561, %v2065, 0.0
    %2074 = vadd.xlane.f32.xlu0 %v2073
    %v2075 = vpop.xlane.xlu0 %2074
    %v2076 = vsel %vm561, %v2066, 0.0
    %2077 = vadd.xlane.f32.xlu0 %v2076
    %v2078 = vpop.xlane.xlu0 %2077
    %v2079 = vsel %vm561, %v2067, 0.0
    %2080 = vadd.xlane.f32.xlu0 %v2079
    %v2081 = vpop.xlane.xlu0 %2080
    %v2082 = vrcp.pop 32.0
    %v2083 = vmul.f32 %v2072, %v2082
    %v2084 = vmul.f32 %v2075, %v2082
    %v2085 = vmul.f32 %v2078, %v2082
    %v2086 = vmul.f32 %v2081, %v2082
    %v2087 = vsub.f32 %v2064, %v2083
    %v2088 = vsub.f32 %v2065, %v2084
    %v2089 = vsub.f32 %v2066, %v2085
    %v2090 = vsub.f32 %v2067, %v2086
    %v2091 = vmul.f32 %v2087, %v2087
    %v2092 = vmul.f32 %v2088, %v2088
    %v2093 = vmul.f32 %v2089, %v2089
    %v2094 = vmul.f32 %v2090, %v2090
    %v2095 = vsel %vm561, %v2091, 0.0
    %2096 = vadd.xlane.f32.xlu0 %v2095
    %v2097 = vpop.xlane.xlu0 %2096
    %v2098 = vsel %vm561, %v2092, 0.0
    %2099 = vadd.xlane.f32.xlu0 %v2098
    %v2100 = vpop.xlane.xlu0 %2099
    %v2101 = vsel %vm561, %v2093, 0.0
    %2102 = vadd.xlane.f32.xlu0 %v2101
    %v2103 = vpop.xlane.xlu0 %2102
    %v2104 = vsel %vm561, %v2094, 0.0
    %2105 = vadd.xlane.f32.xlu0 %v2104
    %v2106 = vpop.xlane.xlu0 %2105
    %v2107 = vmul.f32 %v2097, %v2082
    %v2108 = vmul.f32 %v2100, %v2082
    %v2109 = vmul.f32 %v2103, %v2082
    %v2110 = vmul.f32 %v2106, %v2082
    %v2111 = vadd.f32 %v2107, 1e-05
    %v2112 = vadd.f32 %v2108, 1e-05
    %v2113 = vadd.f32 %v2109, 1e-05
    %v2114 = vadd.f32 %v2110, 1e-05
    %v2115 = vrsqrt.pop %v2111
    %v2116 = vrsqrt.pop %v2112
    %v2117 = vrsqrt.pop %v2113
    %v2118 = vrsqrt.pop %v2114
    %v2119 = vmul.f32 %v2087, %v2115
    %v2120 = vmul.f32 %v2088, %v2116
    %v2121 = vmul.f32 %v2089, %v2117
    %v2122 = vmul.f32 %v2090, %v2118
    %v2123 = vlaneseq
    %v2124 = vshrl.u32 %v2123, 7
    %v2125 = vsub.s32 0, %v2124
    %v2126 = vrot.slane %v2068, %v2125
    %v2127 = vmul.f32 %v2119, %v2126
    %v2128 = vmul.f32 %v2120, %v2126
    %v2129 = vmul.f32 %v2121, %v2126
    %v2130 = vmul.f32 %v2122, %v2126
    %v2131 = vlaneseq
    %v2132 = vshrl.u32 %v2131, 7
    %v2133 = vsub.s32 0, %v2132
    %v2134 = vrot.slane %v2069, %v2133
    %v2135 = vadd.f32 %v2127, %v2134
    %v2136 = vadd.f32 %v2128, %v2134
    %v2137 = vadd.f32 %v2129, %v2134
    %v2138 = vadd.f32 %v2130, %v2134
    %v2139 = vld [vmem:[#allocation3 + $0xc8] sm:$0xff]
    %v2140 = vld [vmem:[#allocation3 + $0xd0] sm:$0xff]
    %v2141 = vld [vmem:[#allocation3 + $0xd8] sm:$0xff]
    %v2142 = vld [vmem:[#allocation3 + $0xe0] sm:$0xff]
    %v2143 = vld [vmem:[#allocation3 + $0xe8] sm:$0x1]
    %v2144 = vlaneseq
    %v2145 = vshrl.u32 %v2144, 7
    %v2146 = vsub.s32 0, %v2145
    %v2147 = vrot.slane %v2143, %v2146
    %v2149 = vsel %vm561, %v2135, 0
    %v2152 = vsel %vm561, %v2136, 0
    %v2155 = vsel %vm561, %v2137, 0
    %v2158 = vsel %vm561, %v2138, 0
    %2160 = vmatprep.subr.mxu0 0.0
    %2161 = vmatpush1.msra.mxu0 %v2139
    %2162 = vmatprep.subr.mxu0 0.0
    %2163 = vmatpush1.msra.mxu0 %v2140
    %2164 = vmatprep.subr.mxu0 0.0
    %2165 = vmatpush1.msra.mxu0 %v2141
    %2166 = vmatprep.subr.mxu0 0.0
    %2167 = vmatpush1.msra.mxu0 %v2142
    %2168 = vmatprep.subr.mxu0 0.0
    %2169 = vmatpush1.msra.mxu0 0.0
    %2170 = vmatprep.subr.mxu0 0.0
    %2171 = vmatpush1.msra.mxu0 0.0
    %2172 = vmatprep.subr.mxu0 0.0
    %2173 = vmatpush1.msra.mxu0 0.0
    %2174 = vmatprep.subr.mxu0 0.0
    %2175 = vmatpush1.msra.mxu0 0.0
    %2176 = vmatprep.subr.mxu0 0.0
    %2177 = vmatpush1.msra.mxu0 0.0
    %2178 = vmatprep.subr.mxu0 0.0
    %2179 = vmatpush1.msra.mxu0 0.0
    %2180 = vmatprep.subr.mxu0 0.0
    %2181 = vmatpush1.msra.mxu0 0.0
    %2182 = vmatprep.subr.mxu0 0.0
    %2183 = vmatpush1.msra.mxu0 0.0
    %2184 = vmatprep.subr.mxu0 0.0
    %2185 = vmatpush1.msra.mxu0 0.0
    %2186 = vmatprep.subr.mxu0 0.0
    %2187 = vmatpush1.msra.mxu0 0.0
    %2188 = vmatprep.subr.mxu0 0.0
    %2189 = vmatpush1.msra.mxu0 0.0
    %2190 = vmatprep.subr.mxu0 0.0
    %2191 = vmatpush1.msra.mxu0 0.0
    %2192 = vmatprep.subr.mxu0 0.0
    %2193 = vmatpush1.msra.mxu0 0.0
    %2194 = vmatprep.subr.mxu0 0.0
    %2195 = vmatpush1.msra.mxu0 0.0
    %2196 = vmatprep.subr.mxu0 0.0
    %2197 = vmatpush1.msra.mxu0 0.0
    %2198 = vmatprep.subr.mxu0 0.0
    %2199 = vmatpush1.msra.mxu0 0.0
    %2200 = vmatprep.subr.mxu0 0.0
    %2201 = vmatpush1.msra.mxu0 0.0
    %2202 = vmatprep.subr.mxu0 0.0
    %2203 = vmatpush1.msra.mxu0 0.0
    %2204 = vmatprep.subr.mxu0 0.0
    %2205 = vmatpush1.msra.mxu0 0.0
    %2206 = vmatprep.subr.mxu0 0.0
    %2207 = vmatpush1.msra.mxu0 0.0
    %2208 = vmatprep.subr.mxu0 0.0
    %2209 = vmatpush1.msra.mxu0 0.0
    %2210 = vmatprep.subr.mxu0 0.0
    %2211 = vmatpush1.msra.mxu0 0.0
    %2212 = vmatprep.subr.mxu0 0.0
    %2213 = vmatpush1.msra.mxu0 0.0
    %2214 = vmatprep.subr.mxu0 0.0
    %2215 = vmatpush1.msra.mxu0 0.0
    %2216 = vmatprep.subr.mxu0 0.0
    %2217 = vmatpush1.msra.mxu0 0.0
    %2218 = vmatprep.subr.mxu0 0.0
    %2219 = vmatpush1.msra.mxu0 0.0
    %2220 = vmatprep.subr.mxu0 0.0
    %2221 = vmatpush1.msra.mxu0 0.0
    %2222 = vmatprep.subr.mxu0 0.0
    %2223 = vmatpush1.msra.mxu0 0.0
    %2224 = vmatprep.mubr.f32.mxu0 0.0
    %2225 = vmatmul.mubr.f32.gmra.mrb[0].mxu0 %v2149
    %v2226 = vpop.f32.mrb[0].mxu0
    %v2227 = vadd.f32 %v2147, %v2226
    %v2228 = vpop.f32.mrb[0].mxu0
    %2229 = vmatprep.mubr.f32.mxu0 0.0
    %2230 = vmatmul.mubr.f32.gmra.mrb[0].mxu0 %v2152
    %v2231 = vpop.f32.mrb[0].mxu0
    %v2232 = vadd.f32 %v2147, %v2231
    %v2233 = vpop.f32.mrb[0].mxu0
    %2234 = vmatprep.mubr.f32.mxu0 0.0
    %2235 = vmatmul.mubr.f32.gmra.mrb[0].mxu0 %v2155
    %v2236 = vpop.f32.mrb[0].mxu0
    %v2237 = vadd.f32 %v2147, %v2236
    %v2238 = vpop.f32.mrb[0].mxu0
    %2239 = vmatprep.mubr.f32.mxu0 0.0
    %2240 = vmatmul.mubr.f32.gmra.mrb[0].mxu0 %v2158
    %v2241 = vpop.f32.mrb[0].mxu0
    %v2242 = vadd.f32 %v2147, %v2241
    %v2243 = vpop.f32.mrb[0].mxu0
    %2244 = vdwg.mxu0
    %v2245 = vmax.f32 %v2227, 0.0
    %v2246 = vmax.f32 %v2232, 0.0
    %v2247 = vmax.f32 %v2237, 0.0
    %v2248 = vmax.f32 %v2242, 0.0
    %v2249 = vld [vmem:[#allocation3 + $0xf0] sm:$0xff]
    %v2250 = vld [vmem:[#allocation3 + $0xf8] sm:$0xff]
    %v2251 = vld [vmem:[#allocation3 + $0x100] sm:$0xff]
    %v2252 = vld [vmem:[#allocation3 + $0x108] sm:$0xff]
    %v2253 = vld [vmem:[#allocation3 + $0x110] sm:$0xff]
    %v2254 = vld [vmem:[#allocation3 + $0x118] sm:$0xff]
    %v2255 = vld [vmem:[#allocation3 + $0x120] sm:$0xff]
    %v2256 = vld [vmem:[#allocation3 + $0x128] sm:$0xff]
    %v2257 = vld [vmem:[#allocation3 + $0x130] sm:$0x1]
    %v2258 = vlaneseq
    %v2259 = vshrl.u32 %v2258, 7
    %v2260 = vsub.s32 0, %v2259
    %v2261 = vrot.slane %v2257, %v2260
    %v2263 = vsel %vm1247, %v2245, 0
    %v2266 = vsel %vm1247, %v2246, 0
    %v2269 = vsel %vm1247, %v2247, 0
    %v2272 = vsel %vm1247, %v2248, 0
    %2274 = vmatprep.subr.mxu0 0.0
    %2275 = vmatpush1.msra.mxu0 %v2249
    %2276 = vmatprep.subr.mxu0 0.0
    %2277 = vmatpush1.msra.mxu0 %v2250
    %2278 = vmatprep.subr.mxu0 0.0
    %2279 = vmatpush1.msra.mxu0 %v2251
    %2280 = vmatprep.subr.mxu0 0.0
    %2281 = vmatpush1.msra.mxu0 %v2252
    %2282 = vmatprep.subr.mxu0 0.0
    %2283 = vmatpush1.msra.mxu0 %v2253
    %2284 = vmatprep.subr.mxu0 0.0
    %2285 = vmatpush1.msra.mxu0 %v2254
    %2286 = vmatprep.subr.mxu0 0.0
    %2287 = vmatpush1.msra.mxu0 %v2255
    %2288 = vmatprep.subr.mxu0 0.0
    %2289 = vmatpush1.msra.mxu0 %v2256
    %2290 = vmatprep.subr.mxu0 0.0
    %2291 = vmatpush1.msra.mxu0 0.0
    %2292 = vmatprep.subr.mxu0 0.0
    %2293 = vmatpush1.msra.mxu0 0.0
    %2294 = vmatprep.subr.mxu0 0.0
    %2295 = vmatpush1.msra.mxu0 0.0
    %2296 = vmatprep.subr.mxu0 0.0
    %2297 = vmatpush1.msra.mxu0 0.0
    %2298 = vmatprep.subr.mxu0 0.0
    %2299 = vmatpush1.msra.mxu0 0.0
    %2300 = vmatprep.subr.mxu0 0.0
    %2301 = vmatpush1.msra.mxu0 0.0
    %2302 = vmatprep.subr.mxu0 0.0
    %2303 = vmatpush1.msra.mxu0 0.0
    %2304 = vmatprep.subr.mxu0 0.0
    %2305 = vmatpush1.msra.mxu0 0.0
    %2306 = vmatprep.subr.mxu0 0.0
    %2307 = vmatpush1.msra.mxu0 0.0
    %2308 = vmatprep.subr.mxu0 0.0
    %2309 = vmatpush1.msra.mxu0 0.0
    %2310 = vmatprep.subr.mxu0 0.0
    %2311 = vmatpush1.msra.mxu0 0.0
    %2312 = vmatprep.subr.mxu0 0.0
    %2313 = vmatpush1.msra.mxu0 0.0
    %2314 = vmatprep.subr.mxu0 0.0
    %2315 = vmatpush1.msra.mxu0 0.0
    %2316 = vmatprep.subr.mxu0 0.0
    %2317 = vmatpush1.msra.mxu0 0.0
    %2318 = vmatprep.subr.mxu0 0.0
    %2319 = vmatpush1.msra.mxu0 0.0
    %2320 = vmatprep.subr.mxu0 0.0
    %2321 = vmatpush1.msra.mxu0 0.0
    %2322 = vmatprep.subr.mxu0 0.0
    %2323 = vmatpush1.msra.mxu0 0.0
    %2324 = vmatprep.subr.mxu0 0.0
    %2325 = vmatpush1.msra.mxu0 0.0
    %2326 = vmatprep.subr.mxu0 0.0
    %2327 = vmatpush1.msra.mxu0 0.0
    %2328 = vmatprep.subr.mxu0 0.0
    %2329 = vmatpush1.msra.mxu0 0.0
    %2330 = vmatprep.subr.mxu0 0.0
    %2331 = vmatpush1.msra.mxu0 0.0
    %2332 = vmatprep.subr.mxu0 0.0
    %2333 = vmatpush1.msra.mxu0 0.0
    %2334 = vmatprep.subr.mxu0 0.0
    %2335 = vmatpush1.msra.mxu0 0.0
    %2336 = vmatprep.subr.mxu0 0.0
    %2337 = vmatpush1.msra.mxu0 0.0
    %2338 = vmatprep.mubr.f32.mxu0 0.0
    %2339 = vmatmul.mubr.f32.gmra.mrb[0].mxu0 %v2263
    %v2340 = vpop.f32.mrb[0].mxu0
    %v2341 = vadd.f32 %v2261, %v2340
    %v2342 = vpop.f32.mrb[0].mxu0
    %2343 = vmatprep.mubr.f32.mxu0 0.0
    %2344 = vmatmul.mubr.f32.gmra.mrb[0].mxu0 %v2266
    %v2345 = vpop.f32.mrb[0].mxu0
    %v2346 = vadd.f32 %v2261, %v2345
    %v2347 = vpop.f32.mrb[0].mxu0
    %2348 = vmatprep.mubr.f32.mxu0 0.0
    %2349 = vmatmul.mubr.f32.gmra.mrb[0].mxu0 %v2269
    %v2350 = vpop.f32.mrb[0].mxu0
    %v2351 = vadd.f32 %v2261, %v2350
    %v2352 = vpop.f32.mrb[0].mxu0
    %2353 = vmatprep.mubr.f32.mxu0 0.0
    %2354 = vmatmul.mubr.f32.gmra.mrb[0].mxu0 %v2272
    %v2355 = vpop.f32.mrb[0].mxu0
    %v2356 = vadd.f32 %v2261, %v2355
    %v2357 = vpop.f32.mrb[0].mxu0
    %2358 = vdwg.mxu0
    %v2359 = vadd.f32 %v2135, %v2341
    %v2360 = vadd.f32 %v2136, %v2346
    %v2361 = vadd.f32 %v2137, %v2351
    %v2362 = vadd.f32 %v2138, %v2356
    %v2363 = vld [vmem:[#allocation3 + $0x138] sm:$0x1]
    %v2364 = vld [vmem:[#allocation3 + $0x140] sm:$0x1]
    %v2365 = vsel %vm561, %v2359, 0.0
    %2366 = vadd.xlane.f32.xlu0 %v2365
    %v2367 = vpop.xlane.xlu0 %2366
    %v2368 = vsel %vm561, %v2360, 0.0
    %2369 = vadd.xlane.f32.xlu0 %v2368
    %v2370 = vpop.xlane.xlu0 %2369
    %v2371 = vsel %vm561, %v2361, 0.0
    %2372 = vadd.xlane.f32.xlu0 %v2371
    %v2373 = vpop.xlane.xlu0 %2372
    %v2374 = vsel %vm561, %v2362, 0.0
    %2375 = vadd.xlane.f32.xlu0 %v2374
    %v2376 = vpop.xlane.xlu0 %2375
    %v2377 = vmul.f32 %v2367, %v2082
    %v2378 = vmul.f32 %v2370, %v2082
    %v2379 = vmul.f32 %v2373, %v2082
    %v2380 = vmul.f32 %v2376, %v2082
    %v2381 = vsub.f32 %v2359, %v2377
    %v2382 = vsub.f32 %v2360, %v2378
    %v2383 = vsub.f32 %v2361, %v2379
    %v2384 = vsub.f32 %v2362, %v2380
    %v2385 = vmul.f32 %v2381, %v2381
    %v2386 = vmul.f32 %v2382, %v2382
    %v2387 = vmul.f32 %v2383, %v2383
    %v2388 = vmul.f32 %v2384, %v2384
    %v2389 = vsel %vm561, %v2385, 0.0
    %2390 = vadd.xlane.f32.xlu0 %v2389
    %v2391 = vpop.xlane.xlu0 %2390
    %v2392 = vsel %vm561, %v2386, 0.0
    %2393 = vadd.xlane.f32.xlu0 %v2392
    %v2394 = vpop.xlane.xlu0 %2393
    %v2395 = vsel %vm561, %v2387, 0.0
    %2396 = vadd.xlane.f32.xlu0 %v2395
    %v2397 = vpop.xlane.xlu0 %2396
    %v2398 = vsel %vm561, %v2388, 0.0
    %2399 = vadd.xlane.f32.xlu0 %v2398
    %v2400 = vpop.xlane.xlu0 %2399
    %v2401 = vmul.f32 %v2391, %v2082
    %v2402 = vmul.f32 %v2394, %v2082
    %v2403 = vmul.f32 %v2397, %v2082
    %v2404 = vmul.f32 %v2400, %v2082
    %v2405 = vadd.f32 %v2401, 1e-05
    %v2406 = vadd.f32 %v2402, 1e-05
    %v2407 = vadd.f32 %v2403, 1e-05
    %v2408 = vadd.f32 %v2404, 1e-05
    %v2409 = vrsqrt.pop %v2405
    %v2410 = vrsqrt.pop %v2406
    %v2411 = vrsqrt.pop %v2407
    %v2412 = vrsqrt.pop %v2408
    %v2413 = vmul.f32 %v2381, %v2409
    %v2414 = vmul.f32 %v2382, %v2410
    %v2415 = vmul.f32 %v2383, %v2411
    %v2416 = vmul.f32 %v2384, %v2412
    %v2417 = vlaneseq
    %v2418 = vshrl.u32 %v2417, 7
    %v2419 = vsub.s32 0, %v2418
    %v2420 = vrot.slane %v2363, %v2419
    %v2421 = vmul.f32 %v2413, %v2420
    %v2422 = vmul.f32 %v2414, %v2420
    %v2423 = vmul.f32 %v2415, %v2420
    %v2424 = vmul.f32 %v2416, %v2420
    %v2425 = vlaneseq
    %v2426 = vshrl.u32 %v2425, 7
    %v2427 = vsub.s32 0, %v2426
    %v2428 = vrot.slane %v2364, %v2427
    %v2429 = vadd.f32 %v2421, %v2428
    %v2430 = vadd.f32 %v2422, %v2428
    %v2431 = vadd.f32 %v2423, %v2428
    %v2432 = vadd.f32 %v2424, %v2428
    %v2433 = vld [vmem:[#allocation3 + $0x148] sm:$0xff]
    %v2434 = vld [vmem:[#allocation3 + $0x150] sm:$0xff]
    %v2435 = vld [vmem:[#allocation3 + $0x158] sm:$0xff]
    %v2436 = vld [vmem:[#allocation3 + $0x160] sm:$0xff]
    %v2437 = vld [vmem:[#allocation3 + $0x168] sm:$0x1]
    %v2438 = vlaneseq
    %v2439 = vshrl.u32 %v2438, 7
    %v2440 = vsub.s32 0, %v2439
    %v2441 = vrot.slane %v2437, %v2440
    %v2443 = vsel %vm561, %v2429, 0
    %v2446 = vsel %vm561, %v2430, 0
    %v2449 = vsel %vm561, %v2431, 0
    %v2452 = vsel %vm561, %v2432, 0
    %2454 = vmatprep.subr.mxu0 0.0
    %2455 = vmatpush1.msra.mxu0 %v2433
    %2456 = vmatprep.subr.mxu0 0.0
    %2457 = vmatpush1.msra.mxu0 %v2434
    %2458 = vmatprep.subr.mxu0 0.0
    %2459 = vmatpush1.msra.mxu0 %v2435
    %2460 = vmatprep.subr.mxu0 0.0
    %2461 = vmatpush1.msra.mxu0 %v2436
    %2462 = vmatprep.subr.mxu0 0.0
    %2463 = vmatpush1.msra.mxu0 0.0
    %2464 = vmatprep.subr.mxu0 0.0
    %2465 = vmatpush1.msra.mxu0 0.0
    %2466 = vmatprep.subr.mxu0 0.0
    %2467 = vmatpush1.msra.mxu0 0.0
    %2468 = vmatprep.subr.mxu0 0.0
    %2469 = vmatpush1.msra.mxu0 0.0
    %2470 = vmatprep.subr.mxu0 0.0
    %2471 = vmatpush1.msra.mxu0 0.0
    %2472 = vmatprep.subr.mxu0 0.0
    %2473 = vmatpush1.msra.mxu0 0.0
    %2474 = vmatprep.subr.mxu0 0.0
    %2475 = vmatpush1.msra.mxu0 0.0
    %2476 = vmatprep.subr.mxu0 0.0
    %2477 = vmatpush1.msra.mxu0 0.0
    %2478 = vmatprep.subr.mxu0 0.0
    %2479 = vmatpush1.msra.mxu0 0.0
    %2480 = vmatprep.subr.mxu0 0.0
    %2481 = vmatpush1.msra.mxu0 0.0
    %2482 = vmatprep.subr.mxu0 0.0
    %2483 = vmatpush1.msra.mxu0 0.0
    %2484 = vmatprep.subr.mxu0 0.0
    %2485 = vmatpush1.msra.mxu0 0.0
    %2486 = vmatprep.subr.mxu0 0.0
    %2487 = vmatpush1.msra.mxu0 0.0
    %2488 = vmatprep.subr.mxu0 0.0
    %2489 = vmatpush1.msra.mxu0 0.0
    %2490 = vmatprep.subr.mxu0 0.0
    %2491 = vmatpush1.msra.mxu0 0.0
    %2492 = vmatprep.subr.mxu0 0.0
    %2493 = vmatpush1.msra.mxu0 0.0
    %2494 = vmatprep.subr.mxu0 0.0
    %2495 = vmatpush1.msra.mxu0 0.0
    %2496 = vmatprep.subr.mxu0 0.0
    %2497 = vmatpush1.msra.mxu0 0.0
    %2498 = vmatprep.subr.mxu0 0.0
    %2499 = vmatpush1.msra.mxu0 0.0
    %2500 = vmatprep.subr.mxu0 0.0
    %2501 = vmatpush1.msra.mxu0 0.0
    %2502 = vmatprep.subr.mxu0 0.0
    %2503 = vmatpush1.msra.mxu0 0.0
    %2504 = vmatprep.subr.mxu0 0.0
    %2505 = vmatpush1.msra.mxu0 0.0
    %2506 = vmatprep.subr.mxu0 0.0
    %2507 = vmatpush1.msra.mxu0 0.0
    %2508 = vmatprep.subr.mxu0 0.0
    %2509 = vmatpush1.msra.mxu0 0.0
    %2510 = vmatprep.subr.mxu0 0.0
    %2511 = vmatpush1.msra.mxu0 0.0
    %2512 = vmatprep.subr.mxu0 0.0
    %2513 = vmatpush1.msra.mxu0 0.0
    %2514 = vmatprep.subr.mxu0 0.0
    %2515 = vmatpush1.msra.mxu0 0.0
    %2516 = vmatprep.subr.mxu0 0.0
    %2517 = vmatpush1.msra.mxu0 0.0
    %2518 = vmatprep.mubr.f32.mxu0 0.0
    %2519 = vmatmul.mubr.f32.gmra.mrb[0].mxu0 %v2443
    %v2520 = vpop.f32.mrb[0].mxu0
    %v2521 = vadd.f32 %v2441, %v2520
    %v2522 = vpop.f32.mrb[0].mxu0
    %2523 = vmatprep.mubr.f32.mxu0 0.0
    %2524 = vmatmul.mubr.f32.gmra.mrb[0].mxu0 %v2446
    %v2525 = vpop.f32.mrb[0].mxu0
    %v2526 = vadd.f32 %v2441, %v2525
    %v2527 = vpop.f32.mrb[0].mxu0
    %2528 = vmatprep.mubr.f32.mxu0 0.0
    %2529 = vmatmul.mubr.f32.gmra.mrb[0].mxu0 %v2449
    %v2530 = vpop.f32.mrb[0].mxu0
    %v2531 = vadd.f32 %v2441, %v2530
    %v2532 = vpop.f32.mrb[0].mxu0
    %2533 = vmatprep.mubr.f32.mxu0 0.0
    %2534 = vmatmul.mubr.f32.gmra.mrb[0].mxu0 %v2452
    %v2535 = vpop.f32.mrb[0].mxu0
    %v2536 = vadd.f32 %v2441, %v2535
    %v2537 = vpop.f32.mrb[0].mxu0
    %2538 = vdwg.mxu0
    %v2539 = vmul.f32 %v2521, 0.35355338
    %v2540 = vmul.f32 %v2526, 0.35355338
    %v2541 = vmul.f32 %v2531, 0.35355338
    %v2542 = vmul.f32 %v2536, 0.35355338
    %2547 = vrot.lane.b32.xlu0 %v2521, 96
    %v2548 = vpop.permute.xlu0 %2547
    %2549 = vrot.lane.b32.xlu0 %v2526, 96
    %v2550 = vpop.permute.xlu0 %2549
    %2551 = vrot.lane.b32.xlu0 %v2531, 96
    %v2552 = vpop.permute.xlu0 %2551
    %2553 = vrot.lane.b32.xlu0 %v2536, 96
    %v2554 = vpop.permute.xlu0 %2553
    %v2556 = vsel %vm49, %v2539, 0
    %v2559 = vsel %vm49, %v2540, 0
    %v2562 = vsel %vm49, %v2541, 0
    %v2565 = vsel %vm49, %v2542, 0
    %v2567 = vsel %vm49, %v2548, 0
    %v2569 = vsel %vm49, %v2550, 0
    %v2571 = vsel %vm49, %v2552, 0
    %v2573 = vsel %vm49, %v2554, 0
    %2575 = vmatprep.subr.mxu0 0.0
    %2576 = vmatpush1.xpose.msra.mxu0 %v2567
    %2577 = vmatprep.subr.mxu0 0.0
    %2578 = vmatpush1.xpose.msra.mxu0 %v2569
    %2579 = vmatprep.subr.mxu0 0.0
    %2580 = vmatpush1.xpose.msra.mxu0 %v2571
    %2581 = vmatprep.subr.mxu0 0.0
    %2582 = vmatpush1.xpose.msra.mxu0 %v2573
    %2583 = vmatprep.subr.mxu0 0.0
    %2584 = vmatpush1.xpose.msra.mxu0 0.0
    %2585 = vmatprep.subr.mxu0 0.0
    %2586 = vmatpush1.xpose.msra.mxu0 0.0
    %2587 = vmatprep.subr.mxu0 0.0
    %2588 = vmatpush1.xpose.msra.mxu0 0.0
    %2589 = vmatprep.subr.mxu0 0.0
    %2590 = vmatpush1.xpose.msra.mxu0 0.0
    %2591 = vmatprep.subr.mxu0 0.0
    %2592 = vmatpush1.xpose.msra.mxu0 0.0
    %2593 = vmatprep.subr.mxu0 0.0
    %2594 = vmatpush1.xpose.msra.mxu0 0.0
    %2595 = vmatprep.subr.mxu0 0.0
    %2596 = vmatpush1.xpose.msra.mxu0 0.0
    %2597 = vmatprep.subr.mxu0 0.0
    %2598 = vmatpush1.xpose.msra.mxu0 0.0
    %2599 = vmatprep.subr.mxu0 0.0
    %2600 = vmatpush1.xpose.msra.mxu0 0.0
    %2601 = vmatprep.subr.mxu0 0.0
    %2602 = vmatpush1.xpose.msra.mxu0 0.0
    %2603 = vmatprep.subr.mxu0 0.0
    %2604 = vmatpush1.xpose.msra.mxu0 0.0
    %2605 = vmatprep.subr.mxu0 0.0
    %2606 = vmatpush1.xpose.msra.mxu0 0.0
    %2607 = vmatprep.subr.mxu0 0.0
    %2608 = vmatpush1.xpose.msra.mxu0 0.0
    %2609 = vmatprep.subr.mxu0 0.0
    %2610 = vmatpush1.xpose.msra.mxu0 0.0
    %2611 = vmatprep.subr.mxu0 0.0
    %2612 = vmatpush1.xpose.msra.mxu0 0.0
    %2613 = vmatprep.subr.mxu0 0.0
    %2614 = vmatpush1.xpose.msra.mxu0 0.0
    %2615 = vmatprep.subr.mxu0 0.0
    %2616 = vmatpush1.xpose.msra.mxu0 0.0
    %2617 = vmatprep.subr.mxu0 0.0
    %2618 = vmatpush1.xpose.msra.mxu0 0.0
    %2619 = vmatprep.subr.mxu0 0.0
    %2620 = vmatpush1.xpose.msra.mxu0 0.0
    %2621 = vmatprep.subr.mxu0 0.0
    %2622 = vmatpush1.xpose.msra.mxu0 0.0
    %2623 = vmatprep.subr.mxu0 0.0
    %2624 = vmatpush1.xpose.msra.mxu0 0.0
    %2625 = vmatprep.subr.mxu0 0.0
    %2626 = vmatpush1.xpose.msra.mxu0 0.0
    %2627 = vmatprep.subr.mxu0 0.0
    %2628 = vmatpush1.xpose.msra.mxu0 0.0
    %2629 = vmatprep.subr.mxu0 0.0
    %2630 = vmatpush1.xpose.msra.mxu0 0.0
    %2631 = vmatprep.subr.mxu0 0.0
    %2632 = vmatpush1.xpose.msra.mxu0 0.0
    %2633 = vmatprep.subr.mxu0 0.0
    %2634 = vmatpush1.xpose.msra.mxu0 0.0
    %2635 = vmatprep.subr.mxu0 0.0
    %2636 = vmatpush1.xpose.msra.mxu0 0.0
    %2637 = vmatprep.subr.mxu0 0.0
    %2638 = vmatpush1.xpose.msra.mxu0 0.0
    %2639 = vmatprep.mubr.f32.mxu0 0.0
    %2640 = vmatmul.mubr.f32.gmra.mrb[0].mxu0 %v2556
    %v2641 = vpop.f32.mrb[0].mxu0
    %v2642 = vadd.f32 %v25, %v2641
    %v2643 = vpop.f32.mrb[0].mxu0
    %2644 = vmatprep.mubr.f32.mxu0 0.0
    %2645 = vmatmul.mubr.f32.gmra.mrb[0].mxu0 %v2559
    %v2646 = vpop.f32.mrb[0].mxu0
    %v2647 = vadd.f32 %v26, %v2646
    %v2648 = vpop.f32.mrb[0].mxu0
    %2649 = vmatprep.mubr.f32.mxu0 0.0
    %2650 = vmatmul.mubr.f32.gmra.mrb[0].mxu0 %v2562
    %v2651 = vpop.f32.mrb[0].mxu0
    %v2652 = vadd.f32 %v27, %v2651
    %v2653 = vpop.f32.mrb[0].mxu0
    %2654 = vmatprep.mubr.f32.mxu0 0.0
    %2655 = vmatmul.mubr.f32.gmra.mrb[0].mxu0 %v2565
    %v2656 = vpop.f32.mrb[0].mxu0
    %v2657 = vadd.f32 %v28, %v2656
    %v2658 = vpop.f32.mrb[0].mxu0
    %2659 = vdwg.mxu0
    %v2660 = vsel %vm561, %v2642, -inf
    %2661 = vmax.xlane.f32.xlu0 %v2660
    %v2662 = vpop.xlane.xlu0 %2661
    %v2663 = vsel %vm561, %v2647, -inf
    %2664 = vmax.xlane.f32.xlu0 %v2663
    %v2665 = vpop.xlane.xlu0 %2664
    %v2666 = vsel %vm561, %v2652, -inf
    %2667 = vmax.xlane.f32.xlu0 %v2666
    %v2668 = vpop.xlane.xlu0 %2667
    %v2669 = vsel %vm561, %v2657, -inf
    %2670 = vmax.xlane.f32.xlu0 %v2669
    %v2671 = vpop.xlane.xlu0 %2670
    %v2672 = vsub.f32 %v2642, %v2662
    %v2673 = vsub.f32 %v2647, %v2665
    %v2674 = vsub.f32 %v2652, %v2668
    %v2675 = vsub.f32 %v2657, %v2671
    %2676 = vrot.lane.b32.xlu0 %v2539, 120
    %v2677 = vpop.permute.xlu0 %2676
    %2678 = vrot.lane.b32.xlu0 %v2540, 120
    %v2679 = vpop.permute.xlu0 %2678
    %2680 = vrot.lane.b32.xlu0 %v2541, 120
    %v2681 = vpop.permute.xlu0 %2680
    %2682 = vrot.lane.b32.xlu0 %v2542, 120
    %v2683 = vpop.permute.xlu0 %2682
    %2684 = vrot.lane.b32.xlu0 %v2521, 88
    %v2685 = vpop.permute.xlu0 %2684
    %2686 = vrot.lane.b32.xlu0 %v2526, 88
    %v2687 = vpop.permute.xlu0 %2686
    %2688 = vrot.lane.b32.xlu0 %v2531, 88
    %v2689 = vpop.permute.xlu0 %2688
    %2690 = vrot.lane.b32.xlu0 %v2536, 88
    %v2691 = vpop.permute.xlu0 %2690
    %v2692 = vsel %vm49, %v2677, 0
    %v2694 = vsel %vm49, %v2679, 0
    %v2696 = vsel %vm49, %v2681, 0
    %v2698 = vsel %vm49, %v2683, 0
    %v2700 = vsel %vm49, %v2685, 0
    %v2702 = vsel %vm49, %v2687, 0
    %v2704 = vsel %vm49, %v2689, 0
    %v2706 = vsel %vm49, %v2691, 0
    %2708 = vmatprep.subr.mxu0 0.0
    %2709 = vmatpush1.xpose.msra.mxu0 %v2700
    %2710 = vmatprep.subr.mxu0 0.0
    %2711 = vmatpush1.xpose.msra.mxu0 %v2702
    %2712 = vmatprep.subr.mxu0 0.0
    %2713 = vmatpush1.xpose.msra.mxu0 %v2704
    %2714 = vmatprep.subr.mxu0 0.0
    %2715 = vmatpush1.xpose.msra.mxu0 %v2706
    %2716 = vmatprep.subr.mxu0 0.0
    %2717 = vmatpush1.xpose.msra.mxu0 0.0
    %2718 = vmatprep.subr.mxu0 0.0
    %2719 = vmatpush1.xpose.msra.mxu0 0.0
    %2720 = vmatprep.subr.mxu0 0.0
    %2721 = vmatpush1.xpose.msra.mxu0 0.0
    %2722 = vmatprep.subr.mxu0 0.0
    %2723 = vmatpush1.xpose.msra.mxu0 0.0
    %2724 = vmatprep.subr.mxu0 0.0
    %2725 = vmatpush1.xpose.msra.mxu0 0.0
    %2726 = vmatprep.subr.mxu0 0.0
    %2727 = vmatpush1.xpose.msra.mxu0 0.0
    %2728 = vmatprep.subr.mxu0 0.0
    %2729 = vmatpush1.xpose.msra.mxu0 0.0
    %2730 = vmatprep.subr.mxu0 0.0
    %2731 = vmatpush1.xpose.msra.mxu0 0.0
    %2732 = vmatprep.subr.mxu0 0.0
    %2733 = vmatpush1.xpose.msra.mxu0 0.0
    %2734 = vmatprep.subr.mxu0 0.0
    %2735 = vmatpush1.xpose.msra.mxu0 0.0
    %2736 = vmatprep.subr.mxu0 0.0
    %2737 = vmatpush1.xpose.msra.mxu0 0.0
    %2738 = vmatprep.subr.mxu0 0.0
    %2739 = vmatpush1.xpose.msra.mxu0 0.0
    %2740 = vmatprep.subr.mxu0 0.0
    %2741 = vmatpush1.xpose.msra.mxu0 0.0
    %2742 = vmatprep.subr.mxu0 0.0
    %2743 = vmatpush1.xpose.msra.mxu0 0.0
    %2744 = vmatprep.subr.mxu0 0.0
    %2745 = vmatpush1.xpose.msra.mxu0 0.0
    %2746 = vmatprep.subr.mxu0 0.0
    %2747 = vmatpush1.xpose.msra.mxu0 0.0
    %2748 = vmatprep.subr.mxu0 0.0
    %2749 = vmatpush1.xpose.msra.mxu0 0.0
    %2750 = vmatprep.subr.mxu0 0.0
    %2751 = vmatpush1.xpose.msra.mxu0 0.0
    %2752 = vmatprep.subr.mxu0 0.0
    %2753 = vmatpush1.xpose.msra.mxu0 0.0
    %2754 = vmatprep.subr.mxu0 0.0
    %2755 = vmatpush1.xpose.msra.mxu0 0.0
    %2756 = vmatprep.subr.mxu0 0.0
    %2757 = vmatpush1.xpose.msra.mxu0 0.0
    %2758 = vmatprep.subr.mxu0 0.0
    %2759 = vmatpush1.xpose.msra.mxu0 0.0
    %2760 = vmatprep.subr.mxu0 0.0
    %2761 = vmatpush1.xpose.msra.mxu0 0.0
    %2762 = vmatprep.subr.mxu0 0.0
    %2763 = vmatpush1.xpose.msra.mxu0 0.0
    %2764 = vmatprep.subr.mxu0 0.0
    %2765 = vmatpush1.xpose.msra.mxu0 0.0
    %2766 = vmatprep.subr.mxu0 0.0
    %2767 = vmatpush1.xpose.msra.mxu0 0.0
    %2768 = vmatprep.subr.mxu0 0.0
    %2769 = vmatpush1.xpose.msra.mxu0 0.0
    %2770 = vmatprep.subr.mxu0 0.0
    %2771 = vmatpush1.xpose.msra.mxu0 0.0
    %2772 = vmatprep.mubr.f32.mxu0 0.0
    %2773 = vmatmul.mubr.f32.gmra.mrb[0].mxu0 %v2692
    %v2774 = vpop.f32.mrb[0].mxu0
    %v2775 = vadd.f32 %v25, %v2774
    %v2776 = vpop.f32.mrb[0].mxu0
    %2777 = vmatprep.mubr.f32.mxu0 0.0
    %2778 = vmatmul.mubr.f32.gmra.mrb[0].mxu0 %v2694
    %v2779 = vpop.f32.mrb[0].mxu0
    %v2780 = vadd.f32 %v26, %v2779
    %v2781 = vpop.f32.mrb[0].mxu0
    %2782 = vmatprep.mubr.f32.mxu0 0.0
    %2783 = vmatmul.mubr.f32.gmra.mrb[0].mxu0 %v2696
    %v2784 = vpop.f32.mrb[0].mxu0
    %v2785 = vadd.f32 %v27, %v2784
    %v2786 = vpop.f32.mrb[0].mxu0
    %2787 = vmatprep.mubr.f32.mxu0 0.0
    %2788 = vmatmul.mubr.f32.gmra.mrb[0].mxu0 %v2698
    %v2789 = vpop.f32.mrb[0].mxu0
    %v2790 = vadd.f32 %v28, %v2789
    %v2791 = vpop.f32.mrb[0].mxu0
    %2792 = vdwg.mxu0
    %v2793 = vsel %vm561, %v2775, -inf
    %2794 = vmax.xlane.f32.xlu0 %v2793
    %v2795 = vpop.xlane.xlu0 %2794
    %v2796 = vsel %vm561, %v2780, -inf
    %2797 = vmax.xlane.f32.xlu0 %v2796
    %v2798 = vpop.xlane.xlu0 %2797
    %v2799 = vsel %vm561, %v2785, -inf
    %2800 = vmax.xlane.f32.xlu0 %v2799
    %v2801 = vpop.xlane.xlu0 %2800
    %v2802 = vsel %vm561, %v2790, -inf
    %2803 = vmax.xlane.f32.xlu0 %v2802
    %v2804 = vpop.xlane.xlu0 %2803
    %v2805 = vsub.f32 %v2775, %v2795
    %v2806 = vsub.f32 %v2780, %v2798
    %v2807 = vsub.f32 %v2785, %v2801
    %v2808 = vsub.f32 %v2790, %v2804
    %2809 = vrot.lane.b32.xlu0 %v2539, 112
    %v2810 = vpop.permute.xlu0 %2809
    %2811 = vrot.lane.b32.xlu0 %v2540, 112
    %v2812 = vpop.permute.xlu0 %2811
    %2813 = vrot.lane.b32.xlu0 %v2541, 112
    %v2814 = vpop.permute.xlu0 %2813
    %2815 = vrot.lane.b32.xlu0 %v2542, 112
    %v2816 = vpop.permute.xlu0 %2815
    %2817 = vrot.lane.b32.xlu0 %v2521, 80
    %v2818 = vpop.permute.xlu0 %2817
    %2819 = vrot.lane.b32.xlu0 %v2526, 80
    %v2820 = vpop.permute.xlu0 %2819
    %2821 = vrot.lane.b32.xlu0 %v2531, 80
    %v2822 = vpop.permute.xlu0 %2821
    %2823 = vrot.lane.b32.xlu0 %v2536, 80
    %v2824 = vpop.permute.xlu0 %2823
    %v2825 = vsel %vm49, %v2810, 0
    %v2827 = vsel %vm49, %v2812, 0
    %v2829 = vsel %vm49, %v2814, 0
    %v2831 = vsel %vm49, %v2816, 0
    %v2833 = vsel %vm49, %v2818, 0
    %v2835 = vsel %vm49, %v2820, 0
    %v2837 = vsel %vm49, %v2822, 0
    %v2839 = vsel %vm49, %v2824, 0
    %2841 = vmatprep.subr.mxu0 0.0
    %2842 = vmatpush1.xpose.msra.mxu0 %v2833
    %2843 = vmatprep.subr.mxu0 0.0
    %2844 = vmatpush1.xpose.msra.mxu0 %v2835
    %2845 = vmatprep.subr.mxu0 0.0
    %2846 = vmatpush1.xpose.msra.mxu0 %v2837
    %2847 = vmatprep.subr.mxu0 0.0
    %2848 = vmatpush1.xpose.msra.mxu0 %v2839
    %2849 = vmatprep.subr.mxu0 0.0
    %2850 = vmatpush1.xpose.msra.mxu0 0.0
    %2851 = vmatprep.subr.mxu0 0.0
    %2852 = vmatpush1.xpose.msra.mxu0 0.0
    %2853 = vmatprep.subr.mxu0 0.0
    %2854 = vmatpush1.xpose.msra.mxu0 0.0
    %2855 = vmatprep.subr.mxu0 0.0
    %2856 = vmatpush1.xpose.msra.mxu0 0.0
    %2857 = vmatprep.subr.mxu0 0.0
    %2858 = vmatpush1.xpose.msra.mxu0 0.0
    %2859 = vmatprep.subr.mxu0 0.0
    %2860 = vmatpush1.xpose.msra.mxu0 0.0
    %2861 = vmatprep.subr.mxu0 0.0
    %2862 = vmatpush1.xpose.msra.mxu0 0.0
    %2863 = vmatprep.subr.mxu0 0.0
    %2864 = vmatpush1.xpose.msra.mxu0 0.0
    %2865 = vmatprep.subr.mxu0 0.0
    %2866 = vmatpush1.xpose.msra.mxu0 0.0
    %2867 = vmatprep.subr.mxu0 0.0
    %2868 = vmatpush1.xpose.msra.mxu0 0.0
    %2869 = vmatprep.subr.mxu0 0.0
    %2870 = vmatpush1.xpose.msra.mxu0 0.0
    %2871 = vmatprep.subr.mxu0 0.0
    %2872 = vmatpush1.xpose.msra.mxu0 0.0
    %2873 = vmatprep.subr.mxu0 0.0
    %2874 = vmatpush1.xpose.msra.mxu0 0.0
    %2875 = vmatprep.subr.mxu0 0.0
    %2876 = vmatpush1.xpose.msra.mxu0 0.0
    %2877 = vmatprep.subr.mxu0 0.0
    %2878 = vmatpush1.xpose.msra.mxu0 0.0
    %2879 = vmatprep.subr.mxu0 0.0
    %2880 = vmatpush1.xpose.msra.mxu0 0.0
    %2881 = vmatprep.subr.mxu0 0.0
    %2882 = vmatpush1.xpose.msra.mxu0 0.0
    %2883 = vmatprep.subr.mxu0 0.0
    %2884 = vmatpush1.xpose.msra.mxu0 0.0
    %2885 = vmatprep.subr.mxu0 0.0
    %2886 = vmatpush1.xpose.msra.mxu0 0.0
    %2887 = vmatprep.subr.mxu0 0.0
    %2888 = vmatpush1.xpose.msra.mxu0 0.0
    %2889 = vmatprep.subr.mxu0 0.0
    %2890 = vmatpush1.xpose.msra.mxu0 0.0
    %2891 = vmatprep.subr.mxu0 0.0
    %2892 = vmatpush1.xpose.msra.mxu0 0.0
    %2893 = vmatprep.subr.mxu0 0.0
    %2894 = vmatpush1.xpose.msra.mxu0 0.0
    %2895 = vmatprep.subr.mxu0 0.0
    %2896 = vmatpush1.xpose.msra.mxu0 0.0
    %2897 = vmatprep.subr.mxu0 0.0
    %2898 = vmatpush1.xpose.msra.mxu0 0.0
    %2899 = vmatprep.subr.mxu0 0.0
    %2900 = vmatpush1.xpose.msra.mxu0 0.0
    %2901 = vmatprep.subr.mxu0 0.0
    %2902 = vmatpush1.xpose.msra.mxu0 0.0
    %2903 = vmatprep.subr.mxu0 0.0
    %2904 = vmatpush1.xpose.msra.mxu0 0.0
    %2905 = vmatprep.mubr.f32.mxu0 0.0
    %2906 = vmatmul.mubr.f32.gmra.mrb[0].mxu0 %v2825
    %v2907 = vpop.f32.mrb[0].mxu0
    %v2908 = vadd.f32 %v25, %v2907
    %v2909 = vpop.f32.mrb[0].mxu0
    %2910 = vmatprep.mubr.f32.mxu0 0.0
    %2911 = vmatmul.mubr.f32.gmra.mrb[0].mxu0 %v2827
    %v2912 = vpop.f32.mrb[0].mxu0
    %v2913 = vadd.f32 %v26, %v2912
    %v2914 = vpop.f32.mrb[0].mxu0
    %2915 = vmatprep.mubr.f32.mxu0 0.0
    %2916 = vmatmul.mubr.f32.gmra.mrb[0].mxu0 %v2829
    %v2917 = vpop.f32.mrb[0].mxu0
    %v2918 = vadd.f32 %v27, %v2917
    %v2919 = vpop.f32.mrb[0].mxu0
    %2920 = vmatprep.mubr.f32.mxu0 0.0
    %2921 = vmatmul.mubr.f32.gmra.mrb[0].mxu0 %v2831
    %v2922 = vpop.f32.mrb[0].mxu0
    %v2923 = vadd.f32 %v28, %v2922
    %v2924 = vpop.f32.mrb[0].mxu0
    %2925 = vdwg.mxu0
    %v2926 = vsel %vm561, %v2908, -inf
    %2927 = vmax.xlane.f32.xlu0 %v2926
    %v2928 = vpop.xlane.xlu0 %2927
    %v2929 = vsel %vm561, %v2913, -inf
    %2930 = vmax.xlane.f32.xlu0 %v2929
    %v2931 = vpop.xlane.xlu0 %2930
    %v2932 = vsel %vm561, %v2918, -inf
    %2933 = vmax.xlane.f32.xlu0 %v2932
    %v2934 = vpop.xlane.xlu0 %2933
    %v2935 = vsel %vm561, %v2923, -inf
    %2936 = vmax.xlane.f32.xlu0 %v2935
    %v2937 = vpop.xlane.xlu0 %2936
    %v2938 = vsub.f32 %v2908, %v2928
    %v2939 = vsub.f32 %v2913, %v2931
    %v2940 = vsub.f32 %v2918, %v2934
    %v2941 = vsub.f32 %v2923, %v2937
    %2942 = vrot.lane.b32.xlu0 %v2539, 104
    %v2943 = vpop.permute.xlu0 %2942
    %2944 = vrot.lane.b32.xlu0 %v2540, 104
    %v2945 = vpop.permute.xlu0 %2944
    %2946 = vrot.lane.b32.xlu0 %v2541, 104
    %v2947 = vpop.permute.xlu0 %2946
    %2948 = vrot.lane.b32.xlu0 %v2542, 104
    %v2949 = vpop.permute.xlu0 %2948
    %2950 = vrot.lane.b32.xlu0 %v2521, 72
    %v2951 = vpop.permute.xlu0 %2950
    %2952 = vrot.lane.b32.xlu0 %v2526, 72
    %v2953 = vpop.permute.xlu0 %2952
    %2954 = vrot.lane.b32.xlu0 %v2531, 72
    %v2955 = vpop.permute.xlu0 %2954
    %2956 = vrot.lane.b32.xlu0 %v2536, 72
    %v2957 = vpop.permute.xlu0 %2956
    %v2958 = vsel %vm49, %v2943, 0
    %v2960 = vsel %vm49, %v2945, 0
    %v2962 = vsel %vm49, %v2947, 0
    %v2964 = vsel %vm49, %v2949, 0
    %v2966 = vsel %vm49, %v2951, 0
    %v2968 = vsel %vm49, %v2953, 0
    %v2970 = vsel %vm49, %v2955, 0
    %v2972 = vsel %vm49, %v2957, 0
    %2974 = vmatprep.subr.mxu0 0.0
    %2975 = vmatpush1.xpose.msra.mxu0 %v2966
    %2976 = vmatprep.subr.mxu0 0.0
    %2977 = vmatpush1.xpose.msra.mxu0 %v2968
    %2978 = vmatprep.subr.mxu0 0.0
    %2979 = vmatpush1.xpose.msra.mxu0 %v2970
    %2980 = vmatprep.subr.mxu0 0.0
    %2981 = vmatpush1.xpose.msra.mxu0 %v2972
    %2982 = vmatprep.subr.mxu0 0.0
    %2983 = vmatpush1.xpose.msra.mxu0 0.0
    %2984 = vmatprep.subr.mxu0 0.0
    %2985 = vmatpush1.xpose.msra.mxu0 0.0
    %2986 = vmatprep.subr.mxu0 0.0
    %2987 = vmatpush1.xpose.msra.mxu0 0.0
    %2988 = vmatprep.subr.mxu0 0.0
    %2989 = vmatpush1.xpose.msra.mxu0 0.0
    %2990 = vmatprep.subr.mxu0 0.0
    %2991 = vmatpush1.xpose.msra.mxu0 0.0
    %2992 = vmatprep.subr.mxu0 0.0
    %2993 = vmatpush1.xpose.msra.mxu0 0.0
    %2994 = vmatprep.subr.mxu0 0.0
    %2995 = vmatpush1.xpose.msra.mxu0 0.0
    %2996 = vmatprep.subr.mxu0 0.0
    %2997 = vmatpush1.xpose.msra.mxu0 0.0
    %2998 = vmatprep.subr.mxu0 0.0
    %2999 = vmatpush1.xpose.msra.mxu0 0.0
    %3000 = vmatprep.subr.mxu0 0.0
    %3001 = vmatpush1.xpose.msra.mxu0 0.0
    %3002 = vmatprep.subr.mxu0 0.0
    %3003 = vmatpush1.xpose.msra.mxu0 0.0
    %3004 = vmatprep.subr.mxu0 0.0
    %3005 = vmatpush1.xpose.msra.mxu0 0.0
    %3006 = vmatprep.subr.mxu0 0.0
    %3007 = vmatpush1.xpose.msra.mxu0 0.0
    %3008 = vmatprep.subr.mxu0 0.0
    %3009 = vmatpush1.xpose.msra.mxu0 0.0
    %3010 = vmatprep.subr.mxu0 0.0
    %3011 = vmatpush1.xpose.msra.mxu0 0.0
    %3012 = vmatprep.subr.mxu0 0.0
    %3013 = vmatpush1.xpose.msra.mxu0 0.0
    %3014 = vmatprep.subr.mxu0 0.0
    %3015 = vmatpush1.xpose.msra.mxu0 0.0
    %3016 = vmatprep.subr.mxu0 0.0
    %3017 = vmatpush1.xpose.msra.mxu0 0.0
    %3018 = vmatprep.subr.mxu0 0.0
    %3019 = vmatpush1.xpose.msra.mxu0 0.0
    %3020 = vmatprep.subr.mxu0 0.0
    %3021 = vmatpush1.xpose.msra.mxu0 0.0
    %3022 = vmatprep.subr.mxu0 0.0
    %3023 = vmatpush1.xpose.msra.mxu0 0.0
    %3024 = vmatprep.subr.mxu0 0.0
    %3025 = vmatpush1.xpose.msra.mxu0 0.0
    %3026 = vmatprep.subr.mxu0 0.0
    %3027 = vmatpush1.xpose.msra.mxu0 0.0
    %3028 = vmatprep.subr.mxu0 0.0
    %3029 = vmatpush1.xpose.msra.mxu0 0.0
    %3030 = vmatprep.subr.mxu0 0.0
    %3031 = vmatpush1.xpose.msra.mxu0 0.0
    %3032 = vmatprep.subr.mxu0 0.0
    %3033 = vmatpush1.xpose.msra.mxu0 0.0
    %3034 = vmatprep.subr.mxu0 0.0
    %3035 = vmatpush1.xpose.msra.mxu0 0.0
    %3036 = vmatprep.subr.mxu0 0.0
    %3037 = vmatpush1.xpose.msra.mxu0 0.0
    %3038 = vmatprep.mubr.f32.mxu0 0.0
    %3039 = vmatmul.mubr.f32.gmra.mrb[0].mxu0 %v2958
    %v3040 = vpop.f32.mrb[0].mxu0
    %v3041 = vadd.f32 %v25, %v3040
    %v3042 = vpop.f32.mrb[0].mxu0
    %3043 = vmatprep.mubr.f32.mxu0 0.0
    %3044 = vmatmul.mubr.f32.gmra.mrb[0].mxu0 %v2960
    %v3045 = vpop.f32.mrb[0].mxu0
    %v3046 = vadd.f32 %v26, %v3045
    %v3047 = vpop.f32.mrb[0].mxu0
    %3048 = vmatprep.mubr.f32.mxu0 0.0
    %3049 = vmatmul.mubr.f32.gmra.mrb[0].mxu0 %v2962
    %v3050 = vpop.f32.mrb[0].mxu0
    %v3051 = vadd.f32 %v27, %v3050
    %v3052 = vpop.f32.mrb[0].mxu0
    %3053 = vmatprep.mubr.f32.mxu0 0.0
    %3054 = vmatmul.mubr.f32.gmra.mrb[0].mxu0 %v2964
    %v3055 = vpop.f32.mrb[0].mxu0
    %v3056 = vadd.f32 %v28, %v3055
    %v3057 = vpop.f32.mrb[0].mxu0
    %3058 = vdwg.mxu0
    %v3059 = vsel %vm561, %v3041, -inf
    %3060 = vmax.xlane.f32.xlu0 %v3059
    %v3061 = vpop.xlane.xlu0 %3060
    %v3062 = vsel %vm561, %v3046, -inf
    %3063 = vmax.xlane.f32.xlu0 %v3062
    %v3064 = vpop.xlane.xlu0 %3063
    %v3065 = vsel %vm561, %v3051, -inf
    %3066 = vmax.xlane.f32.xlu0 %v3065
    %v3067 = vpop.xlane.xlu0 %3066
    %v3068 = vsel %vm561, %v3056, -inf
    %3069 = vmax.xlane.f32.xlu0 %v3068
    %v3070 = vpop.xlane.xlu0 %3069
    %v3071 = vsub.f32 %v3041, %v3061
    %v3072 = vsub.f32 %v3046, %v3064
    %v3073 = vsub.f32 %v3051, %v3067
    %v3074 = vsub.f32 %v3056, %v3070
    %3079 = vrot.lane.b32.xlu0 %v2805, 32
    %v3080 = vpop.permute.xlu0 %3079
    %3081 = vrot.lane.b32.xlu0 %v2806, 32
    %v3082 = vpop.permute.xlu0 %3081
    %3083 = vrot.lane.b32.xlu0 %v2807, 32
    %v3084 = vpop.permute.xlu0 %3083
    %3085 = vrot.lane.b32.xlu0 %v2808, 32
    %v3086 = vpop.permute.xlu0 %3085
    %3095 = vrot.lane.b32.xlu0 %v2938, 64
    %v3096 = vpop.permute.xlu0 %3095
    %3097 = vrot.lane.b32.xlu0 %v2939, 64
    %v3098 = vpop.permute.xlu0 %3097
    %3099 = vrot.lane.b32.xlu0 %v2940, 64
    %v3100 = vpop.permute.xlu0 %3099
    %3101 = vrot.lane.b32.xlu0 %v2941, 64
    %v3102 = vpop.permute.xlu0 %3101
    %3111 = vrot.lane.b32.xlu0 %v3071, 96
    %v3112 = vpop.permute.xlu0 %3111
    %3113 = vrot.lane.b32.xlu0 %v3072, 96
    %v3114 = vpop.permute.xlu0 %3113
    %3115 = vrot.lane.b32.xlu0 %v3073, 96
    %v3116 = vpop.permute.xlu0 %3115
    %3117 = vrot.lane.b32.xlu0 %v3074, 96
    %v3118 = vpop.permute.xlu0 %3117
    %v3123 = vsel %vm561, %v2672, %v3080
    %v3124 = vsel %vm561, %v2673, %v3082
    %v3125 = vsel %vm561, %v2674, %v3084
    %v3126 = vsel %vm561, %v2675, %v3086
    %v3127 = vsel %vm1247, %v3123, %v3096
    %v3128 = vsel %vm1247, %v3124, %v3098
    %v3129 = vsel %vm1247, %v3125, %v3100
    %v3130 = vsel %vm1247, %v3126, %v3102
    %v3131 = vsel %vm1252, %v3127, %v3112
    %v3132 = vsel %vm1252, %v3128, %v3114
    %v3133 = vsel %vm1252, %v3129, %v3116
    %v3134 = vsel %vm1252, %v3130, %v3118
    %v3135 = vmul.f32 %v3131, 1.442695
    %v3136 = vpow.pop %v3135
    %v3137 = vmul.f32 %v3132, 1.442695
    %v3138 = vpow.pop %v3137
    %v3139 = vmul.f32 %v3133, 1.442695
    %v3140 = vpow.pop %v3139
    %v3141 = vmul.f32 %v3134, 1.442695
    %v3142 = vpow.pop %v3141
    %3143 = vmatprep.subr.mxu0 0.0
    %3144 = vmatpush1.msra.mxu0 %v29
    %3145 = vmatprep.subr.mxu0 0.0
    %3146 = vmatpush1.msra.mxu0 %v30
    %3147 = vmatprep.subr.mxu0 0.0
    %3148 = vmatpush1.msra.mxu0 %v31
    %3149 = vmatprep.subr.mxu0 0.0
    %3150 = vmatpush1.msra.mxu0 %v32
    %3151 = vmatprep.subr.mxu0 0.0
    %3152 = vmatpush1.msra.mxu0 %v33
    %3153 = vmatprep.subr.mxu0 0.0
    %3154 = vmatpush1.msra.mxu0 %v34
    %3155 = vmatprep.subr.mxu0 0.0
    %3156 = vmatpush1.msra.mxu0 %v35
    %3157 = vmatprep.subr.mxu0 0.0
    %3158 = vmatpush1.msra.mxu0 %v36
    %3159 = vmatprep.subr.mxu0 0.0
    %3160 = vmatpush1.msra.mxu0 %v37
    %3161 = vmatprep.subr.mxu0 0.0
    %3162 = vmatpush1.msra.mxu0 %v38
    %3163 = vmatprep.subr.mxu0 0.0
    %3164 = vmatpush1.msra.mxu0 %v39
    %3165 = vmatprep.subr.mxu0 0.0
    %3166 = vmatpush1.msra.mxu0 %v40
    %3167 = vmatprep.subr.mxu0 0.0
    %3168 = vmatpush1.msra.mxu0 %v41
    %3169 = vmatprep.subr.mxu0 0.0
    %3170 = vmatpush1.msra.mxu0 %v42
    %3171 = vmatprep.subr.mxu0 0.0
    %3172 = vmatpush1.msra.mxu0 %v43
    %3173 = vmatprep.subr.mxu0 0.0
    %3174 = vmatpush1.msra.mxu0 %v44
    %3175 = vmatprep.subr.mxu0 0.0
    %3176 = vmatpush1.msra.mxu0 0.0
    %3177 = vmatprep.subr.mxu0 0.0
    %3178 = vmatpush1.msra.mxu0 0.0
    %3179 = vmatprep.subr.mxu0 0.0
    %3180 = vmatpush1.msra.mxu0 0.0
    %3181 = vmatprep.subr.mxu0 0.0
    %3182 = vmatpush1.msra.mxu0 0.0
    %3183 = vmatprep.subr.mxu0 0.0
    %3184 = vmatpush1.msra.mxu0 0.0
    %3185 = vmatprep.subr.mxu0 0.0
    %3186 = vmatpush1.msra.mxu0 0.0
    %3187 = vmatprep.subr.mxu0 0.0
    %3188 = vmatpush1.msra.mxu0 0.0
    %3189 = vmatprep.subr.mxu0 0.0
    %3190 = vmatpush1.msra.mxu0 0.0
    %3191 = vmatprep.subr.mxu0 0.0
    %3192 = vmatpush1.msra.mxu0 0.0
    %3193 = vmatprep.subr.mxu0 0.0
    %3194 = vmatpush1.msra.mxu0 0.0
    %3195 = vmatprep.subr.mxu0 0.0
    %3196 = vmatpush1.msra.mxu0 0.0
    %3197 = vmatprep.subr.mxu0 0.0
    %3198 = vmatpush1.msra.mxu0 0.0
    %3199 = vmatprep.subr.mxu0 0.0
    %3200 = vmatpush1.msra.mxu0 0.0
    %3201 = vmatprep.subr.mxu0 0.0
    %3202 = vmatpush1.msra.mxu0 0.0
    %3203 = vmatprep.subr.mxu0 0.0
    %3204 = vmatpush1.msra.mxu0 0.0
    %3205 = vmatprep.subr.mxu0 0.0
    %3206 = vmatpush1.msra.mxu0 0.0
    %3207 = vmatprep.mubr.f32.mxu0 0.0
    %3208 = vmatmul.mubr.f32.gmra.mrb[0].mxu0 %v3136
    %v3209 = vpop.f32.mrb[0].mxu0
    %v3210 = vadd.f32 0.0, %v3209
    %v3211 = vpop.f32.mrb[0].mxu0
    %3212 = vmatprep.mubr.f32.mxu0 0.0
    %3213 = vmatmul.mubr.f32.gmra.mrb[0].mxu0 %v3138
    %v3214 = vpop.f32.mrb[0].mxu0
    %v3215 = vadd.f32 0.0, %v3214
    %v3216 = vpop.f32.mrb[0].mxu0
    %3217 = vmatprep.mubr.f32.mxu0 0.0
    %3218 = vmatmul.mubr.f32.gmra.mrb[0].mxu0 %v3140
    %v3219 = vpop.f32.mrb[0].mxu0
    %v3220 = vadd.f32 0.0, %v3219
    %v3221 = vpop.f32.mrb[0].mxu0
    %3222 = vmatprep.mubr.f32.mxu0 0.0
    %3223 = vmatmul.mubr.f32.gmra.mrb[0].mxu0 %v3142
    %v3224 = vpop.f32.mrb[0].mxu0
    %v3225 = vadd.f32 0.0, %v3224
    %v3226 = vpop.f32.mrb[0].mxu0
    %3227 = vdwg.mxu0
    %v3228 = vrcp.pop %v3210
    %v3229 = vrcp.pop %v3215
    %v3230 = vrcp.pop %v3220
    %v3231 = vrcp.pop %v3225
    %3233 = vset.pattern.permute.xlu0 0
    %3234 = vperm.xlu0 %3233, %v3228
    %v3235 = vpop.permute.xlu0 %3234
    %3238 = vset.pattern.permute.xlu0 0
    %3239 = vperm.xlu0 %3238, %v3229
    %v3240 = vpop.permute.xlu0 %3239
    %3243 = vset.pattern.permute.xlu0 0
    %3244 = vperm.xlu0 %3243, %v3230
    %v3245 = vpop.permute.xlu0 %3244
    %3248 = vset.pattern.permute.xlu0 0
    %3249 = vperm.xlu0 %3248, %v3231
    %v3250 = vpop.permute.xlu0 %3249
    %v3252 = vmul.f32 %v3136, %v3235
    %v3253 = vmul.f32 %v3138, %v3240
    %v3254 = vmul.f32 %v3140, %v3245
    %v3255 = vmul.f32 %v3142, %v3250
    %3256 = vrot.lane.b32.xlu0 %v2521, 64
    %v3257 = vpop.permute.xlu0 %3256
    %3258 = vrot.lane.b32.xlu0 %v2526, 64
    %v3259 = vpop.permute.xlu0 %3258
    %3260 = vrot.lane.b32.xlu0 %v2531, 64
    %v3261 = vpop.permute.xlu0 %3260
    %3262 = vrot.lane.b32.xlu0 %v2536, 64
    %v3263 = vpop.permute.xlu0 %3262
    %v3269 = vsel %vm561, %v3252, 0
    %v3272 = vsel %vm561, %v3253, 0
    %v3275 = vsel %vm561, %v3254, 0
    %v3278 = vsel %vm561, %v3255, 0
    %3280 = vmatprep.subr.mxu0 0.0
    %3281 = vmatpush1.msra.mxu0 %v3257
    %3282 = vmatprep.subr.mxu0 0.0
    %3283 = vmatpush1.msra.mxu0 %v3259
    %3284 = vmatprep.subr.mxu0 0.0
    %3285 = vmatpush1.msra.mxu0 %v3261
    %3286 = vmatprep.subr.mxu0 0.0
    %3287 = vmatpush1.msra.mxu0 %v3263
    %3288 = vmatprep.subr.mxu0 0.0
    %3289 = vmatpush1.msra.mxu0 0.0
    %3290 = vmatprep.subr.mxu0 0.0
    %3291 = vmatpush1.msra.mxu0 0.0
    %3292 = vmatprep.subr.mxu0 0.0
    %3293 = vmatpush1.msra.mxu0 0.0
    %3294 = vmatprep.subr.mxu0 0.0
    %3295 = vmatpush1.msra.mxu0 0.0
    %3296 = vmatprep.subr.mxu0 0.0
    %3297 = vmatpush1.msra.mxu0 0.0
    %3298 = vmatprep.subr.mxu0 0.0
    %3299 = vmatpush1.msra.mxu0 0.0
    %3300 = vmatprep.subr.mxu0 0.0
    %3301 = vmatpush1.msra.mxu0 0.0
    %3302 = vmatprep.subr.mxu0 0.0
    %3303 = vmatpush1.msra.mxu0 0.0
    %3304 = vmatprep.subr.mxu0 0.0
    %3305 = vmatpush1.msra.mxu0 0.0
    %3306 = vmatprep.subr.mxu0 0.0
    %3307 = vmatpush1.msra.mxu0 0.0
    %3308 = vmatprep.subr.mxu0 0.0
    %3309 = vmatpush1.msra.mxu0 0.0
    %3310 = vmatprep.subr.mxu0 0.0
    %3311 = vmatpush1.msra.mxu0 0.0
    %3312 = vmatprep.subr.mxu0 0.0
    %3313 = vmatpush1.msra.mxu0 0.0
    %3314 = vmatprep.subr.mxu0 0.0
    %3315 = vmatpush1.msra.mxu0 0.0
    %3316 = vmatprep.subr.mxu0 0.0
    %3317 = vmatpush1.msra.mxu0 0.0
    %3318 = vmatprep.subr.mxu0 0.0
    %3319 = vmatpush1.msra.mxu0 0.0
    %3320 = vmatprep.subr.mxu0 0.0
    %3321 = vmatpush1.msra.mxu0 0.0
    %3322 = vmatprep.subr.mxu0 0.0
    %3323 = vmatpush1.msra.mxu0 0.0
    %3324 = vmatprep.subr.mxu0 0.0
    %3325 = vmatpush1.msra.mxu0 0.0
    %3326 = vmatprep.subr.mxu0 0.0
    %3327 = vmatpush1.msra.mxu0 0.0
    %3328 = vmatprep.subr.mxu0 0.0
    %3329 = vmatpush1.msra.mxu0 0.0
    %3330 = vmatprep.subr.mxu0 0.0
    %3331 = vmatpush1.msra.mxu0 0.0
    %3332 = vmatprep.subr.mxu0 0.0
    %3333 = vmatpush1.msra.mxu0 0.0
    %3334 = vmatprep.subr.mxu0 0.0
    %3335 = vmatpush1.msra.mxu0 0.0
    %3336 = vmatprep.subr.mxu0 0.0
    %3337 = vmatpush1.msra.mxu0 0.0
    %3338 = vmatprep.subr.mxu0 0.0
    %3339 = vmatpush1.msra.mxu0 0.0
    %3340 = vmatprep.subr.mxu0 0.0
    %3341 = vmatpush1.msra.mxu0 0.0
    %3342 = vmatprep.subr.mxu0 0.0
    %3343 = vmatpush1.msra.mxu0 0.0
    %3344 = vmatprep.mubr.f32.mxu0 0.0
    %3345 = vmatmul.mubr.f32.gmra.mrb[0].mxu0 %v3269
    %v3346 = vpop.f32.mrb[0].mxu0
    %v3347 = vadd.f32 0.0, %v3346
    %v3348 = vpop.f32.mrb[0].mxu0
    %3349 = vmatprep.mubr.f32.mxu0 0.0
    %3350 = vmatmul.mubr.f32.gmra.mrb[0].mxu0 %v3272
    %v3351 = vpop.f32.mrb[0].mxu0
    %v3352 = vadd.f32 0.0, %v3351
    %v3353 = vpop.f32.mrb[0].mxu0
    %3354 = vmatprep.mubr.f32.mxu0 0.0
    %3355 = vmatmul.mubr.f32.gmra.mrb[0].mxu0 %v3275
    %v3356 = vpop.f32.mrb[0].mxu0
    %v3357 = vadd.f32 0.0, %v3356
    %v3358 = vpop.f32.mrb[0].mxu0
    %3359 = vmatprep.mubr.f32.mxu0 0.0
    %3360 = vmatmul.mubr.f32.gmra.mrb[0].mxu0 %v3278
    %v3361 = vpop.f32.mrb[0].mxu0
    %v3362 = vadd.f32 0.0, %v3361
    %v3363 = vpop.f32.mrb[0].mxu0
    %3364 = vdwg.mxu0
    %3365 = vset.pattern.permute.xlu0 1
    %3366 = vperm.xlu0 %3365, %v3228
    %v3367 = vpop.permute.xlu0 %3366
    %3369 = vset.pattern.permute.xlu0 1
    %3370 = vperm.xlu0 %3369, %v3229
    %v3371 = vpop.permute.xlu0 %3370
    %3373 = vset.pattern.permute.xlu0 1
    %3374 = vperm.xlu0 %3373, %v3230
    %v3375 = vpop.permute.xlu0 %3374
    %3377 = vset.pattern.permute.xlu0 1
    %3378 = vperm.xlu0 %3377, %v3231
    %v3379 = vpop.permute.xlu0 %3378
    %v3381 = vmul.f32 %v3136, %v3367
    %v3382 = vmul.f32 %v3138, %v3371
    %v3383 = vmul.f32 %v3140, %v3375
    %v3384 = vmul.f32 %v3142, %v3379
    %3389 = vrot.lane.b32.xlu0 %v3381, 96
    %v3390 = vpop.permute.xlu0 %3389
    %3391 = vrot.lane.b32.xlu0 %v3382, 96
    %v3392 = vpop.permute.xlu0 %3391
    %3393 = vrot.lane.b32.xlu0 %v3383, 96
    %v3394 = vpop.permute.xlu0 %3393
    %3395 = vrot.lane.b32.xlu0 %v3384, 96
    %v3396 = vpop.permute.xlu0 %3395
    %3397 = vrot.lane.b32.xlu0 %v2521, 56
    %v3398 = vpop.permute.xlu0 %3397
    %3399 = vrot.lane.b32.xlu0 %v2526, 56
    %v3400 = vpop.permute.xlu0 %3399
    %3401 = vrot.lane.b32.xlu0 %v2531, 56
    %v3402 = vpop.permute.xlu0 %3401
    %3403 = vrot.lane.b32.xlu0 %v2536, 56
    %v3404 = vpop.permute.xlu0 %3403
    %v3409 = vsel %vm561, %v3390, 0
    %v3411 = vsel %vm561, %v3392, 0
    %v3413 = vsel %vm561, %v3394, 0
    %v3415 = vsel %vm561, %v3396, 0
    %3417 = vmatprep.subr.mxu0 0.0
    %3418 = vmatpush1.msra.mxu0 %v3398
    %3419 = vmatprep.subr.mxu0 0.0
    %3420 = vmatpush1.msra.mxu0 %v3400
    %3421 = vmatprep.subr.mxu0 0.0
    %3422 = vmatpush1.msra.mxu0 %v3402
    %3423 = vmatprep.subr.mxu0 0.0
    %3424 = vmatpush1.msra.mxu0 %v3404
    %3425 = vmatprep.subr.mxu0 0.0
    %3426 = vmatpush1.msra.mxu0 0.0
    %3427 = vmatprep.subr.mxu0 0.0
    %3428 = vmatpush1.msra.mxu0 0.0
    %3429 = vmatprep.subr.mxu0 0.0
    %3430 = vmatpush1.msra.mxu0 0.0
    %3431 = vmatprep.subr.mxu0 0.0
    %3432 = vmatpush1.msra.mxu0 0.0
    %3433 = vmatprep.subr.mxu0 0.0
    %3434 = vmatpush1.msra.mxu0 0.0
    %3435 = vmatprep.subr.mxu0 0.0
    %3436 = vmatpush1.msra.mxu0 0.0
    %3437 = vmatprep.subr.mxu0 0.0
    %3438 = vmatpush1.msra.mxu0 0.0
    %3439 = vmatprep.subr.mxu0 0.0
    %3440 = vmatpush1.msra.mxu0 0.0
    %3441 = vmatprep.subr.mxu0 0.0
    %3442 = vmatpush1.msra.mxu0 0.0
    %3443 = vmatprep.subr.mxu0 0.0
    %3444 = vmatpush1.msra.mxu0 0.0
    %3445 = vmatprep.subr.mxu0 0.0
    %3446 = vmatpush1.msra.mxu0 0.0
    %3447 = vmatprep.subr.mxu0 0.0
    %3448 = vmatpush1.msra.mxu0 0.0
    %3449 = vmatprep.subr.mxu0 0.0
    %3450 = vmatpush1.msra.mxu0 0.0
    %3451 = vmatprep.subr.mxu0 0.0
    %3452 = vmatpush1.msra.mxu0 0.0
    %3453 = vmatprep.subr.mxu0 0.0
    %3454 = vmatpush1.msra.mxu0 0.0
    %3455 = vmatprep.subr.mxu0 0.0
    %3456 = vmatpush1.msra.mxu0 0.0
    %3457 = vmatprep.subr.mxu0 0.0
    %3458 = vmatpush1.msra.mxu0 0.0
    %3459 = vmatprep.subr.mxu0 0.0
    %3460 = vmatpush1.msra.mxu0 0.0
    %3461 = vmatprep.subr.mxu0 0.0
    %3462 = vmatpush1.msra.mxu0 0.0
    %3463 = vmatprep.subr.mxu0 0.0
    %3464 = vmatpush1.msra.mxu0 0.0
    %3465 = vmatprep.subr.mxu0 0.0
    %3466 = vmatpush1.msra.mxu0 0.0
    %3467 = vmatprep.subr.mxu0 0.0
    %3468 = vmatpush1.msra.mxu0 0.0
    %3469 = vmatprep.subr.mxu0 0.0
    %3470 = vmatpush1.msra.mxu0 0.0
    %3471 = vmatprep.subr.mxu0 0.0
    %3472 = vmatpush1.msra.mxu0 0.0
    %3473 = vmatprep.subr.mxu0 0.0
    %3474 = vmatpush1.msra.mxu0 0.0
    %3475 = vmatprep.subr.mxu0 0.0
    %3476 = vmatpush1.msra.mxu0 0.0
    %3477 = vmatprep.subr.mxu0 0.0
    %3478 = vmatpush1.msra.mxu0 0.0
    %3479 = vmatprep.subr.mxu0 0.0
    %3480 = vmatpush1.msra.mxu0 0.0
    %3481 = vmatprep.mubr.f32.mxu0 0.0
    %3482 = vmatmul.mubr.f32.gmra.mrb[0].mxu0 %v3409
    %v3483 = vpop.f32.mrb[0].mxu0
    %v3484 = vadd.f32 0.0, %v3483
    %v3485 = vpop.f32.mrb[0].mxu0
    %3486 = vmatprep.mubr.f32.mxu0 0.0
    %3487 = vmatmul.mubr.f32.gmra.mrb[0].mxu0 %v3411
    %v3488 = vpop.f32.mrb[0].mxu0
    %v3489 = vadd.f32 0.0, %v3488
    %v3490 = vpop.f32.mrb[0].mxu0
    %3491 = vmatprep.mubr.f32.mxu0 0.0
    %3492 = vmatmul.mubr.f32.gmra.mrb[0].mxu0 %v3413
    %v3493 = vpop.f32.mrb[0].mxu0
    %v3494 = vadd.f32 0.0, %v3493
    %v3495 = vpop.f32.mrb[0].mxu0
    %3496 = vmatprep.mubr.f32.mxu0 0.0
    %3497 = vmatmul.mubr.f32.gmra.mrb[0].mxu0 %v3415
    %v3498 = vpop.f32.mrb[0].mxu0
    %v3499 = vadd.f32 0.0, %v3498
    %v3500 = vpop.f32.mrb[0].mxu0
    %3501 = vdwg.mxu0
    %3502 = vset.pattern.permute.xlu0 2
    %3503 = vperm.xlu0 %3502, %v3228
    %v3504 = vpop.permute.xlu0 %3503
    %3506 = vset.pattern.permute.xlu0 2
    %3507 = vperm.xlu0 %3506, %v3229
    %v3508 = vpop.permute.xlu0 %3507
    %3510 = vset.pattern.permute.xlu0 2
    %3511 = vperm.xlu0 %3510, %v3230
    %v3512 = vpop.permute.xlu0 %3511
    %3514 = vset.pattern.permute.xlu0 2
    %3515 = vperm.xlu0 %3514, %v3231
    %v3516 = vpop.permute.xlu0 %3515
    %v3518 = vmul.f32 %v3136, %v3504
    %v3519 = vmul.f32 %v3138, %v3508
    %v3520 = vmul.f32 %v3140, %v3512
    %v3521 = vmul.f32 %v3142, %v3516
    %3526 = vrot.lane.b32.xlu0 %v3518, 64
    %v3527 = vpop.permute.xlu0 %3526
    %3528 = vrot.lane.b32.xlu0 %v3519, 64
    %v3529 = vpop.permute.xlu0 %3528
    %3530 = vrot.lane.b32.xlu0 %v3520, 64
    %v3531 = vpop.permute.xlu0 %3530
    %3532 = vrot.lane.b32.xlu0 %v3521, 64
    %v3533 = vpop.permute.xlu0 %3532
    %3534 = vrot.lane.b32.xlu0 %v2521, 48
    %v3535 = vpop.permute.xlu0 %3534
    %3536 = vrot.lane.b32.xlu0 %v2526, 48
    %v3537 = vpop.permute.xlu0 %3536
    %3538 = vrot.lane.b32.xlu0 %v2531, 48
    %v3539 = vpop.permute.xlu0 %3538
    %3540 = vrot.lane.b32.xlu0 %v2536, 48
    %v3541 = vpop.permute.xlu0 %3540
    %v3546 = vsel %vm561, %v3527, 0
    %v3548 = vsel %vm561, %v3529, 0
    %v3550 = vsel %vm561, %v3531, 0
    %v3552 = vsel %vm561, %v3533, 0
    %3554 = vmatprep.subr.mxu0 0.0
    %3555 = vmatpush1.msra.mxu0 %v3535
    %3556 = vmatprep.subr.mxu0 0.0
    %3557 = vmatpush1.msra.mxu0 %v3537
    %3558 = vmatprep.subr.mxu0 0.0
    %3559 = vmatpush1.msra.mxu0 %v3539
    %3560 = vmatprep.subr.mxu0 0.0
    %3561 = vmatpush1.msra.mxu0 %v3541
    %3562 = vmatprep.subr.mxu0 0.0
    %3563 = vmatpush1.msra.mxu0 0.0
    %3564 = vmatprep.subr.mxu0 0.0
    %3565 = vmatpush1.msra.mxu0 0.0
    %3566 = vmatprep.subr.mxu0 0.0
    %3567 = vmatpush1.msra.mxu0 0.0
    %3568 = vmatprep.subr.mxu0 0.0
    %3569 = vmatpush1.msra.mxu0 0.0
    %3570 = vmatprep.subr.mxu0 0.0
    %3571 = vmatpush1.msra.mxu0 0.0
    %3572 = vmatprep.subr.mxu0 0.0
    %3573 = vmatpush1.msra.mxu0 0.0
    %3574 = vmatprep.subr.mxu0 0.0
    %3575 = vmatpush1.msra.mxu0 0.0
    %3576 = vmatprep.subr.mxu0 0.0
    %3577 = vmatpush1.msra.mxu0 0.0
    %3578 = vmatprep.subr.mxu0 0.0
    %3579 = vmatpush1.msra.mxu0 0.0
    %3580 = vmatprep.subr.mxu0 0.0
    %3581 = vmatpush1.msra.mxu0 0.0
    %3582 = vmatprep.subr.mxu0 0.0
    %3583 = vmatpush1.msra.mxu0 0.0
    %3584 = vmatprep.subr.mxu0 0.0
    %3585 = vmatpush1.msra.mxu0 0.0
    %3586 = vmatprep.subr.mxu0 0.0
    %3587 = vmatpush1.msra.mxu0 0.0
    %3588 = vmatprep.subr.mxu0 0.0
    %3589 = vmatpush1.msra.mxu0 0.0
    %3590 = vmatprep.subr.mxu0 0.0
    %3591 = vmatpush1.msra.mxu0 0.0
    %3592 = vmatprep.subr.mxu0 0.0
    %3593 = vmatpush1.msra.mxu0 0.0
    %3594 = vmatprep.subr.mxu0 0.0
    %3595 = vmatpush1.msra.mxu0 0.0
    %3596 = vmatprep.subr.mxu0 0.0
    %3597 = vmatpush1.msra.mxu0 0.0
    %3598 = vmatprep.subr.mxu0 0.0
    %3599 = vmatpush1.msra.mxu0 0.0
    %3600 = vmatprep.subr.mxu0 0.0
    %3601 = vmatpush1.msra.mxu0 0.0
    %3602 = vmatprep.subr.mxu0 0.0
    %3603 = vmatpush1.msra.mxu0 0.0
    %3604 = vmatprep.subr.mxu0 0.0
    %3605 = vmatpush1.msra.mxu0 0.0
    %3606 = vmatprep.subr.mxu0 0.0
    %3607 = vmatpush1.msra.mxu0 0.0
    %3608 = vmatprep.subr.mxu0 0.0
    %3609 = vmatpush1.msra.mxu0 0.0
    %3610 = vmatprep.subr.mxu0 0.0
    %3611 = vmatpush1.msra.mxu0 0.0
    %3612 = vmatprep.subr.mxu0 0.0
    %3613 = vmatpush1.msra.mxu0 0.0
    %3614 = vmatprep.subr.mxu0 0.0
    %3615 = vmatpush1.msra.mxu0 0.0
    %3616 = vmatprep.subr.mxu0 0.0
    %3617 = vmatpush1.msra.mxu0 0.0
    %3618 = vmatprep.mubr.f32.mxu0 0.0
    %3619 = vmatmul.mubr.f32.gmra.mrb[0].mxu0 %v3546
    %v3620 = vpop.f32.mrb[0].mxu0
    %v3621 = vadd.f32 0.0, %v3620
    %v3622 = vpop.f32.mrb[0].mxu0
    %3623 = vmatprep.mubr.f32.mxu0 0.0
    %3624 = vmatmul.mubr.f32.gmra.mrb[0].mxu0 %v3548
    %v3625 = vpop.f32.mrb[0].mxu0
    %v3626 = vadd.f32 0.0, %v3625
    %v3627 = vpop.f32.mrb[0].mxu0
    %3628 = vmatprep.mubr.f32.mxu0 0.0
    %3629 = vmatmul.mubr.f32.gmra.mrb[0].mxu0 %v3550
    %v3630 = vpop.f32.mrb[0].mxu0
    %v3631 = vadd.f32 0.0, %v3630
    %v3632 = vpop.f32.mrb[0].mxu0
    %3633 = vmatprep.mubr.f32.mxu0 0.0
    %3634 = vmatmul.mubr.f32.gmra.mrb[0].mxu0 %v3552
    %v3635 = vpop.f32.mrb[0].mxu0
    %v3636 = vadd.f32 0.0, %v3635
    %v3637 = vpop.f32.mrb[0].mxu0
    %3638 = vdwg.mxu0
    %3639 = vset.pattern.permute.xlu0 3
    %3640 = vperm.xlu0 %3639, %v3228
    %v3641 = vpop.permute.xlu0 %3640
    %3643 = vset.pattern.permute.xlu0 3
    %3644 = vperm.xlu0 %3643, %v3229
    %v3645 = vpop.permute.xlu0 %3644
    %3647 = vset.pattern.permute.xlu0 3
    %3648 = vperm.xlu0 %3647, %v3230
    %v3649 = vpop.permute.xlu0 %3648
    %3651 = vset.pattern.permute.xlu0 3
    %3652 = vperm.xlu0 %3651, %v3231
    %v3653 = vpop.permute.xlu0 %3652
    %v3655 = vmul.f32 %v3136, %v3641
    %v3656 = vmul.f32 %v3138, %v3645
    %v3657 = vmul.f32 %v3140, %v3649
    %v3658 = vmul.f32 %v3142, %v3653
    %3663 = vrot.lane.b32.xlu0 %v3655, 32
    %v3664 = vpop.permute.xlu0 %3663
    %3665 = vrot.lane.b32.xlu0 %v3656, 32
    %v3666 = vpop.permute.xlu0 %3665
    %3667 = vrot.lane.b32.xlu0 %v3657, 32
    %v3668 = vpop.permute.xlu0 %3667
    %3669 = vrot.lane.b32.xlu0 %v3658, 32
    %v3670 = vpop.permute.xlu0 %3669
    %3671 = vrot.lane.b32.xlu0 %v2521, 40
    %v3672 = vpop.permute.xlu0 %3671
    %3673 = vrot.lane.b32.xlu0 %v2526, 40
    %v3674 = vpop.permute.xlu0 %3673
    %3675 = vrot.lane.b32.xlu0 %v2531, 40
    %v3676 = vpop.permute.xlu0 %3675
    %3677 = vrot.lane.b32.xlu0 %v2536, 40
    %v3678 = vpop.permute.xlu0 %3677
    %v3683 = vsel %vm561, %v3664, 0
    %v3685 = vsel %vm561, %v3666, 0
    %v3687 = vsel %vm561, %v3668, 0
    %v3689 = vsel %vm561, %v3670, 0
    %3691 = vmatprep.subr.mxu0 0.0
    %3692 = vmatpush1.msra.mxu0 %v3672
    %3693 = vmatprep.subr.mxu0 0.0
    %3694 = vmatpush1.msra.mxu0 %v3674
    %3695 = vmatprep.subr.mxu0 0.0
    %3696 = vmatpush1.msra.mxu0 %v3676
    %3697 = vmatprep.subr.mxu0 0.0
    %3698 = vmatpush1.msra.mxu0 %v3678
    %3699 = vmatprep.subr.mxu0 0.0
    %3700 = vmatpush1.msra.mxu0 0.0
    %3701 = vmatprep.subr.mxu0 0.0
    %3702 = vmatpush1.msra.mxu0 0.0
    %3703 = vmatprep.subr.mxu0 0.0
    %3704 = vmatpush1.msra.mxu0 0.0
    %3705 = vmatprep.subr.mxu0 0.0
    %3706 = vmatpush1.msra.mxu0 0.0
    %3707 = vmatprep.subr.mxu0 0.0
    %3708 = vmatpush1.msra.mxu0 0.0
    %3709 = vmatprep.subr.mxu0 0.0
    %3710 = vmatpush1.msra.mxu0 0.0
    %3711 = vmatprep.subr.mxu0 0.0
    %3712 = vmatpush1.msra.mxu0 0.0
    %3713 = vmatprep.subr.mxu0 0.0
    %3714 = vmatpush1.msra.mxu0 0.0
    %3715 = vmatprep.subr.mxu0 0.0
    %3716 = vmatpush1.msra.mxu0 0.0
    %3717 = vmatprep.subr.mxu0 0.0
    %3718 = vmatpush1.msra.mxu0 0.0
    %3719 = vmatprep.subr.mxu0 0.0
    %3720 = vmatpush1.msra.mxu0 0.0
    %3721 = vmatprep.subr.mxu0 0.0
    %3722 = vmatpush1.msra.mxu0 0.0
    %3723 = vmatprep.subr.mxu0 0.0
    %3724 = vmatpush1.msra.mxu0 0.0
    %3725 = vmatprep.subr.mxu0 0.0
    %3726 = vmatpush1.msra.mxu0 0.0
    %3727 = vmatprep.subr.mxu0 0.0
    %3728 = vmatpush1.msra.mxu0 0.0
    %3729 = vmatprep.subr.mxu0 0.0
    %3730 = vmatpush1.msra.mxu0 0.0
    %3731 = vmatprep.subr.mxu0 0.0
    %3732 = vmatpush1.msra.mxu0 0.0
    %3733 = vmatprep.subr.mxu0 0.0
    %3734 = vmatpush1.msra.mxu0 0.0
    %3735 = vmatprep.subr.mxu0 0.0
    %3736 = vmatpush1.msra.mxu0 0.0
    %3737 = vmatprep.subr.mxu0 0.0
    %3738 = vmatpush1.msra.mxu0 0.0
    %3739 = vmatprep.subr.mxu0 0.0
    %3740 = vmatpush1.msra.mxu0 0.0
    %3741 = vmatprep.subr.mxu0 0.0
    %3742 = vmatpush1.msra.mxu0 0.0
    %3743 = vmatprep.subr.mxu0 0.0
    %3744 = vmatpush1.msra.mxu0 0.0
    %3745 = vmatprep.subr.mxu0 0.0
    %3746 = vmatpush1.msra.mxu0 0.0
    %3747 = vmatprep.subr.mxu0 0.0
    %3748 = vmatpush1.msra.mxu0 0.0
    %3749 = vmatprep.subr.mxu0 0.0
    %3750 = vmatpush1.msra.mxu0 0.0
    %3751 = vmatprep.subr.mxu0 0.0
    %3752 = vmatpush1.msra.mxu0 0.0
    %3753 = vmatprep.subr.mxu0 0.0
    %3754 = vmatpush1.msra.mxu0 0.0
    %3755 = vmatprep.mubr.f32.mxu0 0.0
    %3756 = vmatmul.mubr.f32.gmra.mrb[0].mxu0 %v3683
    %v3757 = vpop.f32.mrb[0].mxu0
    %v3758 = vadd.f32 0.0, %v3757
    %v3759 = vpop.f32.mrb[0].mxu0
    %3760 = vmatprep.mubr.f32.mxu0 0.0
    %3761 = vmatmul.mubr.f32.gmra.mrb[0].mxu0 %v3685
    %v3762 = vpop.f32.mrb[0].mxu0
    %v3763 = vadd.f32 0.0, %v3762
    %v3764 = vpop.f32.mrb[0].mxu0
    %3765 = vmatprep.mubr.f32.mxu0 0.0
    %3766 = vmatmul.mubr.f32.gmra.mrb[0].mxu0 %v3687
    %v3767 = vpop.f32.mrb[0].mxu0
    %v3768 = vadd.f32 0.0, %v3767
    %v3769 = vpop.f32.mrb[0].mxu0
    %3770 = vmatprep.mubr.f32.mxu0 0.0
    %3771 = vmatmul.mubr.f32.gmra.mrb[0].mxu0 %v3689
    %v3772 = vpop.f32.mrb[0].mxu0
    %v3773 = vadd.f32 0.0, %v3772
    %v3774 = vpop.f32.mrb[0].mxu0
    %3775 = vdwg.mxu0
    %3780 = vrot.lane.b32.xlu0 %v3484, 8
    %v3781 = vpop.permute.xlu0 %3780
    %3782 = vrot.lane.b32.xlu0 %v3489, 8
    %v3783 = vpop.permute.xlu0 %3782
    %3784 = vrot.lane.b32.xlu0 %v3494, 8
    %v3785 = vpop.permute.xlu0 %3784
    %3786 = vrot.lane.b32.xlu0 %v3499, 8
    %v3787 = vpop.permute.xlu0 %3786
    %3796 = vrot.lane.b32.xlu0 %v3621, 16
    %v3797 = vpop.permute.xlu0 %3796
    %3798 = vrot.lane.b32.xlu0 %v3626, 16
    %v3799 = vpop.permute.xlu0 %3798
    %3800 = vrot.lane.b32.xlu0 %v3631, 16
    %v3801 = vpop.permute.xlu0 %3800
    %3802 = vrot.lane.b32.xlu0 %v3636, 16
    %v3803 = vpop.permute.xlu0 %3802
    %3812 = vrot.lane.b32.xlu0 %v3758, 24
    %v3813 = vpop.permute.xlu0 %3812
    %3814 = vrot.lane.b32.xlu0 %v3763, 24
    %v3815 = vpop.permute.xlu0 %3814
    %3816 = vrot.lane.b32.xlu0 %v3768, 24
    %v3817 = vpop.permute.xlu0 %3816
    %3818 = vrot.lane.b32.xlu0 %v3773, 24
    %v3819 = vpop.permute.xlu0 %3818
    %v3824 = vsel %vm49, %v3347, %v3781
    %v3825 = vsel %vm49, %v3352, %v3783
    %v3826 = vsel %vm49, %v3357, %v3785
    %v3827 = vsel %vm49, %v3362, %v3787
    %v3828 = vsel %vm330, %v3824, %v3797
    %v3829 = vsel %vm330, %v3825, %v3799
    %v3830 = vsel %vm330, %v3826, %v3801
    %v3831 = vsel %vm330, %v3827, %v3803
    %v3832 = vsel %vm339, %v3828, %v3813
    %v3833 = vsel %vm339, %v3829, %v3815
    %v3834 = vsel %vm339, %v3830, %v3817
    %v3835 = vsel %vm339, %v3831, %v3819
    %v3836 = vld [vmem:[#allocation3 + $0x170] sm:$0xff]
    %v3837 = vld [vmem:[#allocation3 + $0x178] sm:$0xff]
    %v3838 = vld [vmem:[#allocation3 + $0x180] sm:$0xff]
    %v3839 = vld [vmem:[#allocation3 + $0x188] sm:$0xff]
    %v3840 = vld [vmem:[#allocation3 + $0x190] sm:$0x1]
    %v3841 = vlaneseq
    %v3842 = vshrl.u32 %v3841, 7
    %v3843 = vsub.s32 0, %v3842
    %v3844 = vrot.slane %v3840, %v3843
    %v3846 = vsel %vm561, %v3832, 0
    %v3849 = vsel %vm561, %v3833, 0
    %v3852 = vsel %vm561, %v3834, 0
    %v3855 = vsel %vm561, %v3835, 0
    %3857 = vmatprep.subr.mxu0 0.0
    %3858 = vmatpush1.msra.mxu0 %v3836
    %3859 = vmatprep.subr.mxu0 0.0
    %3860 = vmatpush1.msra.mxu0 %v3837
    %3861 = vmatprep.subr.mxu0 0.0
    %3862 = vmatpush1.msra.mxu0 %v3838
    %3863 = vmatprep.subr.mxu0 0.0
    %3864 = vmatpush1.msra.mxu0 %v3839
    %3865 = vmatprep.subr.mxu0 0.0
    %3866 = vmatpush1.msra.mxu0 0.0
    %3867 = vmatprep.subr.mxu0 0.0
    %3868 = vmatpush1.msra.mxu0 0.0
    %3869 = vmatprep.subr.mxu0 0.0
    %3870 = vmatpush1.msra.mxu0 0.0
    %3871 = vmatprep.subr.mxu0 0.0
    %3872 = vmatpush1.msra.mxu0 0.0
    %3873 = vmatprep.subr.mxu0 0.0
    %3874 = vmatpush1.msra.mxu0 0.0
    %3875 = vmatprep.subr.mxu0 0.0
    %3876 = vmatpush1.msra.mxu0 0.0
    %3877 = vmatprep.subr.mxu0 0.0
    %3878 = vmatpush1.msra.mxu0 0.0
    %3879 = vmatprep.subr.mxu0 0.0
    %3880 = vmatpush1.msra.mxu0 0.0
    %3881 = vmatprep.subr.mxu0 0.0
    %3882 = vmatpush1.msra.mxu0 0.0
    %3883 = vmatprep.subr.mxu0 0.0
    %3884 = vmatpush1.msra.mxu0 0.0
    %3885 = vmatprep.subr.mxu0 0.0
    %3886 = vmatpush1.msra.mxu0 0.0
    %3887 = vmatprep.subr.mxu0 0.0
    %3888 = vmatpush1.msra.mxu0 0.0
    %3889 = vmatprep.subr.mxu0 0.0
    %3890 = vmatpush1.msra.mxu0 0.0
    %3891 = vmatprep.subr.mxu0 0.0
    %3892 = vmatpush1.msra.mxu0 0.0
    %3893 = vmatprep.subr.mxu0 0.0
    %3894 = vmatpush1.msra.mxu0 0.0
    %3895 = vmatprep.subr.mxu0 0.0
    %3896 = vmatpush1.msra.mxu0 0.0
    %3897 = vmatprep.subr.mxu0 0.0
    %3898 = vmatpush1.msra.mxu0 0.0
    %3899 = vmatprep.subr.mxu0 0.0
    %3900 = vmatpush1.msra.mxu0 0.0
    %3901 = vmatprep.subr.mxu0 0.0
    %3902 = vmatpush1.msra.mxu0 0.0
    %3903 = vmatprep.subr.mxu0 0.0
    %3904 = vmatpush1.msra.mxu0 0.0
    %3905 = vmatprep.subr.mxu0 0.0
    %3906 = vmatpush1.msra.mxu0 0.0
    %3907 = vmatprep.subr.mxu0 0.0
    %3908 = vmatpush1.msra.mxu0 0.0
    %3909 = vmatprep.subr.mxu0 0.0
    %3910 = vmatpush1.msra.mxu0 0.0
    %3911 = vmatprep.subr.mxu0 0.0
    %3912 = vmatpush1.msra.mxu0 0.0
    %3913 = vmatprep.subr.mxu0 0.0
    %3914 = vmatpush1.msra.mxu0 0.0
    %3915 = vmatprep.subr.mxu0 0.0
    %3916 = vmatpush1.msra.mxu0 0.0
    %3917 = vmatprep.subr.mxu0 0.0
    %3918 = vmatpush1.msra.mxu0 0.0
    %3919 = vmatprep.subr.mxu0 0.0
    %3920 = vmatpush1.msra.mxu0 0.0
    %3921 = vmatprep.mubr.f32.mxu0 0.0
    %3922 = vmatmul.mubr.f32.gmra.mrb[0].mxu0 %v3846
    %v3923 = vpop.f32.mrb[0].mxu0
    %v3924 = vadd.f32 %v3844, %v3923
    %v3925 = vpop.f32.mrb[0].mxu0
    %3926 = vmatprep.mubr.f32.mxu0 0.0
    %3927 = vmatmul.mubr.f32.gmra.mrb[0].mxu0 %v3849
    %v3928 = vpop.f32.mrb[0].mxu0
    %v3929 = vadd.f32 %v3844, %v3928
    %v3930 = vpop.f32.mrb[0].mxu0
    %3931 = vmatprep.mubr.f32.mxu0 0.0
    %3932 = vmatmul.mubr.f32.gmra.mrb[0].mxu0 %v3852
    %v3933 = vpop.f32.mrb[0].mxu0
    %v3934 = vadd.f32 %v3844, %v3933
    %v3935 = vpop.f32.mrb[0].mxu0
    %3936 = vmatprep.mubr.f32.mxu0 0.0
    %3937 = vmatmul.mubr.f32.gmra.mrb[0].mxu0 %v3855
    %v3938 = vpop.f32.mrb[0].mxu0
    %v3939 = vadd.f32 %v3844, %v3938
    %v3940 = vpop.f32.mrb[0].mxu0
    %3941 = vdwg.mxu0
    %v3942 = vadd.f32 %v2429, %v3924
    %v3943 = vadd.f32 %v2430, %v3929
    %v3944 = vadd.f32 %v2431, %v3934
    %v3945 = vadd.f32 %v2432, %v3939
    %v3946 = vld [vmem:[#allocation3 + $0x198] sm:$0x1]
    %v3947 = vld [vmem:[#allocation3 + $0x1a0] sm:$0x1]
    %v3948 = vsel %vm561, %v3942, 0.0
    %3949 = vadd.xlane.f32.xlu0 %v3948
    %v3950 = vpop.xlane.xlu0 %3949
    %v3951 = vsel %vm561, %v3943, 0.0
    %3952 = vadd.xlane.f32.xlu0 %v3951
    %v3953 = vpop.xlane.xlu0 %3952
    %v3954 = vsel %vm561, %v3944, 0.0
    %3955 = vadd.xlane.f32.xlu0 %v3954
    %v3956 = vpop.xlane.xlu0 %3955
    %v3957 = vsel %vm561, %v3945, 0.0
    %3958 = vadd.xlane.f32.xlu0 %v3957
    %v3959 = vpop.xlane.xlu0 %3958
    %v3960 = vmul.f32 %v3950, %v2082
    %v3961 = vmul.f32 %v3953, %v2082
    %v3962 = vmul.f32 %v3956, %v2082
    %v3963 = vmul.f32 %v3959, %v2082
    %v3964 = vsub.f32 %v3942, %v3960
    %v3965 = vsub.f32 %v3943, %v3961
    %v3966 = vsub.f32 %v3944, %v3962
    %v3967 = vsub.f32 %v3945, %v3963
    %v3968 = vmul.f32 %v3964, %v3964
    %v3969 = vmul.f32 %v3965, %v3965
    %v3970 = vmul.f32 %v3966, %v3966
    %v3971 = vmul.f32 %v3967, %v3967
    %v3972 = vsel %vm561, %v3968, 0.0
    %3973 = vadd.xlane.f32.xlu0 %v3972
    %v3974 = vpop.xlane.xlu0 %3973
    %v3975 = vsel %vm561, %v3969, 0.0
    %3976 = vadd.xlane.f32.xlu0 %v3975
    %v3977 = vpop.xlane.xlu0 %3976
    %v3978 = vsel %vm561, %v3970, 0.0
    %3979 = vadd.xlane.f32.xlu0 %v3978
    %v3980 = vpop.xlane.xlu0 %3979
    %v3981 = vsel %vm561, %v3971, 0.0
    %3982 = vadd.xlane.f32.xlu0 %v3981
    %v3983 = vpop.xlane.xlu0 %3982
    %v3984 = vmul.f32 %v3974, %v2082
    %v3985 = vmul.f32 %v3977, %v2082
    %v3986 = vmul.f32 %v3980, %v2082
    %v3987 = vmul.f32 %v3983, %v2082
    %v3988 = vadd.f32 %v3984, 1e-05
    %v3989 = vadd.f32 %v3985, 1e-05
    %v3990 = vadd.f32 %v3986, 1e-05
    %v3991 = vadd.f32 %v3987, 1e-05
    %v3992 = vrsqrt.pop %v3988
    %v3993 = vrsqrt.pop %v3989
    %v3994 = vrsqrt.pop %v3990
    %v3995 = vrsqrt.pop %v3991
    %v3996 = vmul.f32 %v3964, %v3992
    %v3997 = vmul.f32 %v3965, %v3993
    %v3998 = vmul.f32 %v3966, %v3994
    %v3999 = vmul.f32 %v3967, %v3995
    %v4000 = vlaneseq
    %v4001 = vshrl.u32 %v4000, 7
    %v4002 = vsub.s32 0, %v4001
    %v4003 = vrot.slane %v3946, %v4002
    %v4004 = vmul.f32 %v3996, %v4003
    %v4005 = vmul.f32 %v3997, %v4003
    %v4006 = vmul.f32 %v3998, %v4003
    %v4007 = vmul.f32 %v3999, %v4003
    %v4008 = vlaneseq
    %v4009 = vshrl.u32 %v4008, 7
    %v4010 = vsub.s32 0, %v4009
    %v4011 = vrot.slane %v3947, %v4010
    %v4012 = vadd.f32 %v4004, %v4011
    %v4013 = vadd.f32 %v4005, %v4011
    %v4014 = vadd.f32 %v4006, %v4011
    %v4015 = vadd.f32 %v4007, %v4011
    %v4016 = vld [vmem:[#allocation3 + $0x1a8] sm:$0xff]
    %v4017 = vld [vmem:[#allocation3 + $0x1b0] sm:$0xff]
    %v4018 = vld [vmem:[#allocation3 + $0x1b8] sm:$0xff]
    %v4019 = vld [vmem:[#allocation3 + $0x1c0] sm:$0xff]
    %v4020 = vld [vmem:[#allocation3 + $0x1c8] sm:$0x1]
    %v4021 = vlaneseq
    %v4022 = vshrl.u32 %v4021, 7
    %v4023 = vsub.s32 0, %v4022
    %v4024 = vrot.slane %v4020, %v4023
    %v4026 = vsel %vm561, %v4012, 0
    %v4029 = vsel %vm561, %v4013, 0
    %v4032 = vsel %vm561, %v4014, 0
    %v4035 = vsel %vm561, %v4015, 0
    %4037 = vmatprep.subr.mxu0 0.0
    %4038 = vmatpush1.msra.mxu0 %v4016
    %4039 = vmatprep.subr.mxu0 0.0
    %4040 = vmatpush1.msra.mxu0 %v4017
    %4041 = vmatprep.subr.mxu0 0.0
    %4042 = vmatpush1.msra.mxu0 %v4018
    %4043 = vmatprep.subr.mxu0 0.0
    %4044 = vmatpush1.msra.mxu0 %v4019
    %4045 = vmatprep.subr.mxu0 0.0
    %4046 = vmatpush1.msra.mxu0 0.0
    %4047 = vmatprep.subr.mxu0 0.0
    %4048 = vmatpush1.msra.mxu0 0.0
    %4049 = vmatprep.subr.mxu0 0.0
    %4050 = vmatpush1.msra.mxu0 0.0
    %4051 = vmatprep.subr.mxu0 0.0
    %4052 = vmatpush1.msra.mxu0 0.0
    %4053 = vmatprep.subr.mxu0 0.0
    %4054 = vmatpush1.msra.mxu0 0.0
    %4055 = vmatprep.subr.mxu0 0.0
    %4056 = vmatpush1.msra.mxu0 0.0
    %4057 = vmatprep.subr.mxu0 0.0
    %4058 = vmatpush1.msra.mxu0 0.0
    %4059 = vmatprep.subr.mxu0 0.0
    %4060 = vmatpush1.msra.mxu0 0.0
    %4061 = vmatprep.subr.mxu0 0.0
    %4062 = vmatpush1.msra.mxu0 0.0
    %4063 = vmatprep.subr.mxu0 0.0
    %4064 = vmatpush1.msra.mxu0 0.0
    %4065 = vmatprep.subr.mxu0 0.0
    %4066 = vmatpush1.msra.mxu0 0.0
    %4067 = vmatprep.subr.mxu0 0.0
    %4068 = vmatpush1.msra.mxu0 0.0
    %4069 = vmatprep.subr.mxu0 0.0
    %4070 = vmatpush1.msra.mxu0 0.0
    %4071 = vmatprep.subr.mxu0 0.0
    %4072 = vmatpush1.msra.mxu0 0.0
    %4073 = vmatprep.subr.mxu0 0.0
    %4074 = vmatpush1.msra.mxu0 0.0
    %4075 = vmatprep.subr.mxu0 0.0
    %4076 = vmatpush1.msra.mxu0 0.0
    %4077 = vmatprep.subr.mxu0 0.0
    %4078 = vmatpush1.msra.mxu0 0.0
    %4079 = vmatprep.subr.mxu0 0.0
    %4080 = vmatpush1.msra.mxu0 0.0
    %4081 = vmatprep.subr.mxu0 0.0
    %4082 = vmatpush1.msra.mxu0 0.0
    %4083 = vmatprep.subr.mxu0 0.0
    %4084 = vmatpush1.msra.mxu0 0.0
    %4085 = vmatprep.subr.mxu0 0.0
    %4086 = vmatpush1.msra.mxu0 0.0
    %4087 = vmatprep.subr.mxu0 0.0
    %4088 = vmatpush1.msra.mxu0 0.0
    %4089 = vmatprep.subr.mxu0 0.0
    %4090 = vmatpush1.msra.mxu0 0.0
    %4091 = vmatprep.subr.mxu0 0.0
    %4092 = vmatpush1.msra.mxu0 0.0
    %4093 = vmatprep.subr.mxu0 0.0
    %4094 = vmatpush1.msra.mxu0 0.0
    %4095 = vmatprep.subr.mxu0 0.0
    %4096 = vmatpush1.msra.mxu0 0.0
    %4097 = vmatprep.subr.mxu0 0.0
    %4098 = vmatpush1.msra.mxu0 0.0
    %4099 = vmatprep.subr.mxu0 0.0
    %4100 = vmatpush1.msra.mxu0 0.0
    %4101 = vmatprep.mubr.f32.mxu0 0.0
    %4102 = vmatmul.mubr.f32.gmra.mrb[0].mxu0 %v4026
    %v4103 = vpop.f32.mrb[0].mxu0
    %v4104 = vadd.f32 %v4024, %v4103
    %v4105 = vpop.f32.mrb[0].mxu0
    %4106 = vmatprep.mubr.f32.mxu0 0.0
    %4107 = vmatmul.mubr.f32.gmra.mrb[0].mxu0 %v4029
    %v4108 = vpop.f32.mrb[0].mxu0
    %v4109 = vadd.f32 %v4024, %v4108
    %v4110 = vpop.f32.mrb[0].mxu0
    %4111 = vmatprep.mubr.f32.mxu0 0.0
    %4112 = vmatmul.mubr.f32.gmra.mrb[0].mxu0 %v4032
    %v4113 = vpop.f32.mrb[0].mxu0
    %v4114 = vadd.f32 %v4024, %v4113
    %v4115 = vpop.f32.mrb[0].mxu0
    %4116 = vmatprep.mubr.f32.mxu0 0.0
    %4117 = vmatmul.mubr.f32.gmra.mrb[0].mxu0 %v4035
    %v4118 = vpop.f32.mrb[0].mxu0
    %v4119 = vadd.f32 %v4024, %v4118
    %v4120 = vpop.f32.mrb[0].mxu0
    %4121 = vdwg.mxu0
    %v4122 = vmax.f32 %v4104, 0.0
    %v4123 = vmax.f32 %v4109, 0.0
    %v4124 = vmax.f32 %v4114, 0.0
    %v4125 = vmax.f32 %v4119, 0.0
    %v4126 = vld [vmem:[#allocation3 + $0x1d0] sm:$0xff]
    %v4127 = vld [vmem:[#allocation3 + $0x1d8] sm:$0xff]
    %v4128 = vld [vmem:[#allocation3 + $0x1e0] sm:$0xff]
    %v4129 = vld [vmem:[#allocation3 + $0x1e8] sm:$0xff]
    %v4130 = vld [vmem:[#allocation3 + $0x1f0] sm:$0xff]
    %v4131 = vld [vmem:[#allocation3 + $0x1f8] sm:$0xff]
    %v4132 = vld [vmem:[#allocation3 + $0x200] sm:$0xff]
    %v4133 = vld [vmem:[#allocation3 + $0x208] sm:$0xff]
    %v4134 = vld [vmem:[#allocation3 + $0x210] sm:$0x1]
    %v4135 = vlaneseq
    %v4136 = vshrl.u32 %v4135, 7
    %v4137 = vsub.s32 0, %v4136
    %v4138 = vrot.slane %v4134, %v4137
    %v4140 = vsel %vm1247, %v4122, 0
    %v4143 = vsel %vm1247, %v4123, 0
    %v4146 = vsel %vm1247, %v4124, 0
    %v4149 = vsel %vm1247, %v4125, 0
    %4151 = vmatprep.subr.mxu0 0.0
    %4152 = vmatpush1.msra.mxu0 %v4126
    %4153 = vmatprep.subr.mxu0 0.0
    %4154 = vmatpush1.msra.mxu0 %v4127
    %4155 = vmatprep.subr.mxu0 0.0
    %4156 = vmatpush1.msra.mxu0 %v4128
    %4157 = vmatprep.subr.mxu0 0.0
    %4158 = vmatpush1.msra.mxu0 %v4129
    %4159 = vmatprep.subr.mxu0 0.0
    %4160 = vmatpush1.msra.mxu0 %v4130
    %4161 = vmatprep.subr.mxu0 0.0
    %4162 = vmatpush1.msra.mxu0 %v4131
    %4163 = vmatprep.subr.mxu0 0.0
    %4164 = vmatpush1.msra.mxu0 %v4132
    %4165 = vmatprep.subr.mxu0 0.0
    %4166 = vmatpush1.msra.mxu0 %v4133
    %4167 = vmatprep.subr.mxu0 0.0
    %4168 = vmatpush1.msra.mxu0 0.0
    %4169 = vmatprep.subr.mxu0 0.0
    %4170 = vmatpush1.msra.mxu0 0.0
    %4171 = vmatprep.subr.mxu0 0.0
    %4172 = vmatpush1.msra.mxu0 0.0
    %4173 = vmatprep.subr.mxu0 0.0
    %4174 = vmatpush1.msra.mxu0 0.0
    %4175 = vmatprep.subr.mxu0 0.0
    %4176 = vmatpush1.msra.mxu0 0.0
    %4177 = vmatprep.subr.mxu0 0.0
    %4178 = vmatpush1.msra.mxu0 0.0
    %4179 = vmatprep.subr.mxu0 0.0
    %4180 = vmatpush1.msra.mxu0 0.0
    %4181 = vmatprep.subr.mxu0 0.0
    %4182 = vmatpush1.msra.mxu0 0.0
    %4183 = vmatprep.subr.mxu0 0.0
    %4184 = vmatpush1.msra.mxu0 0.0
    %4185 = vmatprep.subr.mxu0 0.0
    %4186 = vmatpush1.msra.mxu0 0.0
    %4187 = vmatprep.subr.mxu0 0.0
    %4188 = vmatpush1.msra.mxu0 0.0
    %4189 = vmatprep.subr.mxu0 0.0
    %4190 = vmatpush1.msra.mxu0 0.0
    %4191 = vmatprep.subr.mxu0 0.0
    %4192 = vmatpush1.msra.mxu0 0.0
    %4193 = vmatprep.subr.mxu0 0.0
    %4194 = vmatpush1.msra.mxu0 0.0
    %4195 = vmatprep.subr.mxu0 0.0
    %4196 = vmatpush1.msra.mxu0 0.0
    %4197 = vmatprep.subr.mxu0 0.0
    %4198 = vmatpush1.msra.mxu0 0.0
    %4199 = vmatprep.subr.mxu0 0.0
    %4200 = vmatpush1.msra.mxu0 0.0
    %4201 = vmatprep.subr.mxu0 0.0
    %4202 = vmatpush1.msra.mxu0 0.0
    %4203 = vmatprep.subr.mxu0 0.0
    %4204 = vmatpush1.msra.mxu0 0.0
    %4205 = vmatprep.subr.mxu0 0.0
    %4206 = vmatpush1.msra.mxu0 0.0
    %4207 = vmatprep.subr.mxu0 0.0
    %4208 = vmatpush1.msra.mxu0 0.0
    %4209 = vmatprep.subr.mxu0 0.0
    %4210 = vmatpush1.msra.mxu0 0.0
    %4211 = vmatprep.subr.mxu0 0.0
    %4212 = vmatpush1.msra.mxu0 0.0
    %4213 = vmatprep.subr.mxu0 0.0
    %4214 = vmatpush1.msra.mxu0 0.0
    %4215 = vmatprep.mubr.f32.mxu0 0.0
    %4216 = vmatmul.mubr.f32.gmra.mrb[0].mxu0 %v4140
    %v4217 = vpop.f32.mrb[0].mxu0
    %v4218 = vadd.f32 %v4138, %v4217
    %v4219 = vpop.f32.mrb[0].mxu0
    %4220 = vmatprep.mubr.f32.mxu0 0.0
    %4221 = vmatmul.mubr.f32.gmra.mrb[0].mxu0 %v4143
    %v4222 = vpop.f32.mrb[0].mxu0
    %v4223 = vadd.f32 %v4138, %v4222
    %v4224 = vpop.f32.mrb[0].mxu0
    %4225 = vmatprep.mubr.f32.mxu0 0.0
    %4226 = vmatmul.mubr.f32.gmra.mrb[0].mxu0 %v4146
    %v4227 = vpop.f32.mrb[0].mxu0
    %v4228 = vadd.f32 %v4138, %v4227
    %v4229 = vpop.f32.mrb[0].mxu0
    %4230 = vmatprep.mubr.f32.mxu0 0.0
    %4231 = vmatmul.mubr.f32.gmra.mrb[0].mxu0 %v4149
    %v4232 = vpop.f32.mrb[0].mxu0
    %v4233 = vadd.f32 %v4138, %v4232
    %v4234 = vpop.f32.mrb[0].mxu0
    %4235 = vdwg.mxu0
    %v4236 = vadd.f32 %v4012, %v4218
    %v4237 = vadd.f32 %v4013, %v4223
    %v4238 = vadd.f32 %v4014, %v4228
    %v4239 = vadd.f32 %v4015, %v4233
    %v4240 = vld [vmem:[#allocation3 + $0x218] sm:$0x1]
    %v4241 = vld [vmem:[#allocation3 + $0x220] sm:$0x1]
    %v4242 = vsel %vm561, %v4236, 0.0
    %4243 = vadd.xlane.f32.xlu0 %v4242
    %v4244 = vpop.xlane.xlu0 %4243
    %v4245 = vsel %vm561, %v4237, 0.0
    %4246 = vadd.xlane.f32.xlu0 %v4245
    %v4247 = vpop.xlane.xlu0 %4246
    %v4248 = vsel %vm561, %v4238, 0.0
    %4249 = vadd.xlane.f32.xlu0 %v4248
    %v4250 = vpop.xlane.xlu0 %4249
    %v4251 = vsel %vm561, %v4239, 0.0
    %4252 = vadd.xlane.f32.xlu0 %v4251
    %v4253 = vpop.xlane.xlu0 %4252
    %v4254 = vmul.f32 %v4244, %v2082
    %v4255 = vmul.f32 %v4247, %v2082
    %v4256 = vmul.f32 %v4250, %v2082
    %v4257 = vmul.f32 %v4253, %v2082
    %v4258 = vsub.f32 %v4236, %v4254
    %v4259 = vsub.f32 %v4237, %v4255
    %v4260 = vsub.f32 %v4238, %v4256
    %v4261 = vsub.f32 %v4239, %v4257
    %v4262 = vmul.f32 %v4258, %v4258
    %v4263 = vmul.f32 %v4259, %v4259
    %v4264 = vmul.f32 %v4260, %v4260
    %v4265 = vmul.f32 %v4261, %v4261
    %v4266 = vsel %vm561, %v4262, 0.0
    %4267 = vadd.xlane.f32.xlu0 %v4266
    %v4268 = vpop.xlane.xlu0 %4267
    %v4269 = vsel %vm561, %v4263, 0.0
    %4270 = vadd.xlane.f32.xlu0 %v4269
    %v4271 = vpop.xlane.xlu0 %4270
    %v4272 = vsel %vm561, %v4264, 0.0
    %4273 = vadd.xlane.f32.xlu0 %v4272
    %v4274 = vpop.xlane.xlu0 %4273
    %v4275 = vsel %vm561, %v4265, 0.0
    %4276 = vadd.xlane.f32.xlu0 %v4275
    %v4277 = vpop.xlane.xlu0 %4276
    %v4278 = vmul.f32 %v4268, %v2082
    %v4279 = vmul.f32 %v4271, %v2082
    %v4280 = vmul.f32 %v4274, %v2082
    %v4281 = vmul.f32 %v4277, %v2082
    %v4282 = vadd.f32 %v4278, 1e-05
    %v4283 = vadd.f32 %v4279, 1e-05
    %v4284 = vadd.f32 %v4280, 1e-05
    %v4285 = vadd.f32 %v4281, 1e-05
    %v4286 = vrsqrt.pop %v4282
    %v4287 = vrsqrt.pop %v4283
    %v4288 = vrsqrt.pop %v4284
    %v4289 = vrsqrt.pop %v4285
    %v4290 = vmul.f32 %v4258, %v4286
    %v4291 = vmul.f32 %v4259, %v4287
    %v4292 = vmul.f32 %v4260, %v4288
    %v4293 = vmul.f32 %v4261, %v4289
    %v4294 = vlaneseq
    %v4295 = vshrl.u32 %v4294, 7
    %v4296 = vsub.s32 0, %v4295
    %v4297 = vrot.slane %v4240, %v4296
    %v4298 = vmul.f32 %v4290, %v4297
    %v4299 = vmul.f32 %v4291, %v4297
    %v4300 = vmul.f32 %v4292, %v4297
    %v4301 = vmul.f32 %v4293, %v4297
    %v4302 = vlaneseq
    %v4303 = vshrl.u32 %v4302, 7
    %v4304 = vsub.s32 0, %v4303
    %v4305 = vrot.slane %v4241, %v4304
    %v4306 = vadd.f32 %v4298, %v4305
    %v4307 = vadd.f32 %v4299, %v4305
    %v4308 = vadd.f32 %v4300, %v4305
    %v4309 = vadd.f32 %v4301, %v4305
    %v4310 = vld [vmem:[#allocation3 + $0x228] sm:$0xff]
    %v4311 = vld [vmem:[#allocation3 + $0x230] sm:$0xff]
    %v4312 = vld [vmem:[#allocation3 + $0x238] sm:$0xff]
    %v4313 = vld [vmem:[#allocation3 + $0x240] sm:$0xff]
    %v4314 = vld [vmem:[#allocation3 + $0x248] sm:$0x1]
    %v4315 = vlaneseq
    %v4316 = vshrl.u32 %v4315, 7
    %v4317 = vsub.s32 0, %v4316
    %v4318 = vrot.slane %v4314, %v4317
    %v4320 = vsel %vm561, %v4306, 0
    %v4323 = vsel %vm561, %v4307, 0
    %v4326 = vsel %vm561, %v4308, 0
    %v4329 = vsel %vm561, %v4309, 0
    %4331 = vmatprep.subr.mxu0 0.0
    %4332 = vmatpush1.msra.mxu0 %v4310
    %4333 = vmatprep.subr.mxu0 0.0
    %4334 = vmatpush1.msra.mxu0 %v4311
    %4335 = vmatprep.subr.mxu0 0.0
    %4336 = vmatpush1.msra.mxu0 %v4312
    %4337 = vmatprep.subr.mxu0 0.0
    %4338 = vmatpush1.msra.mxu0 %v4313
    %4339 = vmatprep.subr.mxu0 0.0
    %4340 = vmatpush1.msra.mxu0 0.0
    %4341 = vmatprep.subr.mxu0 0.0
    %4342 = vmatpush1.msra.mxu0 0.0
    %4343 = vmatprep.subr.mxu0 0.0
    %4344 = vmatpush1.msra.mxu0 0.0
    %4345 = vmatprep.subr.mxu0 0.0
    %4346 = vmatpush1.msra.mxu0 0.0
    %4347 = vmatprep.subr.mxu0 0.0
    %4348 = vmatpush1.msra.mxu0 0.0
    %4349 = vmatprep.subr.mxu0 0.0
    %4350 = vmatpush1.msra.mxu0 0.0
    %4351 = vmatprep.subr.mxu0 0.0
    %4352 = vmatpush1.msra.mxu0 0.0
    %4353 = vmatprep.subr.mxu0 0.0
    %4354 = vmatpush1.msra.mxu0 0.0
    %4355 = vmatprep.subr.mxu0 0.0
    %4356 = vmatpush1.msra.mxu0 0.0
    %4357 = vmatprep.subr.mxu0 0.0
    %4358 = vmatpush1.msra.mxu0 0.0
    %4359 = vmatprep.subr.mxu0 0.0
    %4360 = vmatpush1.msra.mxu0 0.0
    %4361 = vmatprep.subr.mxu0 0.0
    %4362 = vmatpush1.msra.mxu0 0.0
    %4363 = vmatprep.subr.mxu0 0.0
    %4364 = vmatpush1.msra.mxu0 0.0
    %4365 = vmatprep.subr.mxu0 0.0
    %4366 = vmatpush1.msra.mxu0 0.0
    %4367 = vmatprep.subr.mxu0 0.0
    %4368 = vmatpush1.msra.mxu0 0.0
    %4369 = vmatprep.subr.mxu0 0.0
    %4370 = vmatpush1.msra.mxu0 0.0
    %4371 = vmatprep.subr.mxu0 0.0
    %4372 = vmatpush1.msra.mxu0 0.0
    %4373 = vmatprep.subr.mxu0 0.0
    %4374 = vmatpush1.msra.mxu0 0.0
    %4375 = vmatprep.subr.mxu0 0.0
    %4376 = vmatpush1.msra.mxu0 0.0
    %4377 = vmatprep.subr.mxu0 0.0
    %4378 = vmatpush1.msra.mxu0 0.0
    %4379 = vmatprep.subr.mxu0 0.0
    %4380 = vmatpush1.msra.mxu0 0.0
    %4381 = vmatprep.subr.mxu0 0.0
    %4382 = vmatpush1.msra.mxu0 0.0
    %4383 = vmatprep.subr.mxu0 0.0
    %4384 = vmatpush1.msra.mxu0 0.0
    %4385 = vmatprep.subr.mxu0 0.0
    %4386 = vmatpush1.msra.mxu0 0.0
    %4387 = vmatprep.subr.mxu0 0.0
    %4388 = vmatpush1.msra.mxu0 0.0
    %4389 = vmatprep.subr.mxu0 0.0
    %4390 = vmatpush1.msra.mxu0 0.0
    %4391 = vmatprep.subr.mxu0 0.0
    %4392 = vmatpush1.msra.mxu0 0.0
    %4393 = vmatprep.subr.mxu0 0.0
    %4394 = vmatpush1.msra.mxu0 0.0
    %4395 = vmatprep.mubr.f32.mxu0 0.0
    %4396 = vmatmul.mubr.f32.gmra.mrb[0].mxu0 %v4320
    %v4397 = vpop.f32.mrb[0].mxu0
    %v4398 = vadd.f32 %v4318, %v4397
    %v4399 = vpop.f32.mrb[0].mxu0
    %4400 = vmatprep.mubr.f32.mxu0 0.0
    %4401 = vmatmul.mubr.f32.gmra.mrb[0].mxu0 %v4323
    %v4402 = vpop.f32.mrb[0].mxu0
    %v4403 = vadd.f32 %v4318, %v4402
    %v4404 = vpop.f32.mrb[0].mxu0
    %4405 = vmatprep.mubr.f32.mxu0 0.0
    %4406 = vmatmul.mubr.f32.gmra.mrb[0].mxu0 %v4326
    %v4407 = vpop.f32.mrb[0].mxu0
    %v4408 = vadd.f32 %v4318, %v4407
    %v4409 = vpop.f32.mrb[0].mxu0
    %4410 = vmatprep.mubr.f32.mxu0 0.0
    %4411 = vmatmul.mubr.f32.gmra.mrb[0].mxu0 %v4329
    %v4412 = vpop.f32.mrb[0].mxu0
    %v4413 = vadd.f32 %v4318, %v4412
    %v4414 = vpop.f32.mrb[0].mxu0
    %4415 = vdwg.mxu0
    %4416 = vst [vmem:[%s2] sm:$0xff] %v4398
    %4417 = vst [vmem:[%s2 + $0x8] sm:$0xff] %v4403
    %4418 = vst [vmem:[%s2 + $0x10] sm:$0xff] %v4408
    %4419 = vst [vmem:[%s2 + $0x18] sm:$0xff] %v4413
    // Predicated region
    $region14: #{forward.1} parent=1 // pred_check
      _
    $region15: #{forward.1} parent=1 // pred_check_branch
      %4421 = sbr.rel (0) target = $region17
    $region16: #{forward.1} parent=1 // pred_region
      _
    $region17: #{forward.1} parent=1 // pred_fallthru
      _
    // Predicated region
    $region18: #{forward.1} parent=1 // pred_check
      _
    $region19: #{forward.1} parent=1 // pred_check_branch
      %4423 = sbr.rel (0) target = $region21
    $region20: #{forward.1} parent=1 // pred_region
      _
    $region21: #{forward.1} parent=1 // pred_fallthru
      _
    %4424 = vsyncpa [#allocation4], 1

</llo_original>
